<compile_context>
chip_gen: v7x
topology: tpu7x:2x2x1
jax: 0.10.0
libtpu: 0.0.40
codegen_flags: <defaults>
</compile_context>

<pallas_src>
import numpy as np
import jax
import jax.numpy as jnp
from jax import lax
from jax.experimental import pallas as pl
from jax.experimental.pallas import tpu as pltpu


# ----------------------------- configuration ------------------------------
UPSCALE = 2                         # r  (PixelShuffle factor)
NUM_IN_CH = 4                       # C
NUM_COPIES = 2 ** UPSCALE           # channel copies concatenated along dim=1
H, W = 16, 16
N = 2

C_CAT = NUM_IN_CH * NUM_COPIES      # channels after concat (16)
assert C_CAT % (UPSCALE * UPSCALE) == 0, "PixelShuffle needs channels % r^2 == 0"
C_OUT = C_CAT // (UPSCALE * UPSCALE)        # 4
OH, OW = H * UPSCALE, W * UPSCALE           # output spatial dims (32, 32)

# Lane-dense packing of the final (row-major) layout: 128 consecutive flat
# elements of one output channel == PACK consecutive output rows.
assert 128 % OW == 0, "TODO(synk): tile along W when W*r does not divide 128"
PACK = 128 // OW                    # output rows packed per 128-lane row (4)
assert OH % PACK == 0
ROWS = OH // PACK                   # kernel-output rows per output channel (8)


def _left_nonzero(i: int, m: int) -> bool:
    """Trace-time (numpy) check: does the (i, m) row-selection matrix have any 1s?"""
    kk, hh = np.meshgrid(np.arange(ROWS), np.arange(H), indexing="ij")
    return bool(np.any(kk * PACK + m == hh * UPSCALE + i))


def _fused_scale_shuffle_kernel(p_ref, x_ref, o_ref):
    """Fused  (x * p) -> concat x NUM_COPIES -> PixelShuffle(r)  kernel.

    p_ref : (1,)                   SMEM scalar (the nn.Parameter)
    x_ref : (N, C, H, W)           VMEM input
    o_ref : (N, C_OUT*ROWS, 128)   VMEM, final memory order, lane-dense
    """
    r = UPSCALE
    p = p_ref[0]

    # 2-D iotas for building the constant 0/1 selection matrices in-kernel.
    k_idx = lax.broadcasted_iota(jnp.int32, (ROWS, H), 0)   # kernel-output row k
    h_idx = lax.broadcasted_iota(jnp.int32, (ROWS, H), 1)   # input row h
    w_idx = lax.broadcasted_iota(jnp.int32, (W, 128), 0)    # input col w
    l_idx = lax.broadcasted_iota(jnp.int32, (W, 128), 1)    # output lane l

    def left_mat(i, m):
        # (ROWS, H): 1 where output row (k*PACK + m) == h*r + i
        return jnp.where(k_idx * PACK + m == h_idx * r + i, 1.0, 0.0)

    def right_mat(j, m):
        # (W, 128): 1 where lane l == m*OW + w*r + j
        return jnp.where(l_idx == m * OW + w_idx * r + j, 1.0, 0.0)

    for n in range(N):
        # Scale each input channel once (VPU); keep the (H, W) planes around.
        xs = [x_ref[n, c] * p for c in range(NUM_IN_CH)]

        # Output channels whose source-channel pattern is identical share one
        # interleaved plane (here: all of them, since C == r*r == NUM_COPIES).
        memo = {}
        for co in range(C_OUT):
            key = tuple((co * r * r + i * r + j) % NUM_IN_CH
                        for i in range(r) for j in range(r))
            if key not in memo:
                acc = jnp.zeros((ROWS, 128), jnp.float32)
                for m in range(PACK):                 # 128-lane chunk index
                    for i in range(r):                # output-row parity
                        if not _left_nonzero(i, m):
                            continue                  # identically-zero term
                        lm = left_mat(i, m)
                        for j in range(r):            # output-col parity
                            c_src = (co * r * r + i * r + j) % NUM_IN_CH
                            t = jnp.dot(lm, xs[c_src],
                                        preferred_element_type=jnp.float32)
                            acc = acc + jnp.dot(t, right_mat(j, m),
                                                preferred_element_type=jnp.float32)
                memo[key] = acc
            # One aligned, unmasked (ROWS, 128) store per output channel.
            o_ref[n, co * ROWS:(co + 1) * ROWS, :] = memo[key].astype(o_ref.dtype)


def debug_arch_forward(x: jax.Array, parameter: jax.Array) -> jax.Array:
    """x: (N, C, H, W) float32 -> (N, C_OUT, H*r, W*r) via a single pallas_call."""
    n, c, h, w = x.shape
    assert (n, c, h, w) == (N, NUM_IN_CH, H, W)

    out_flat = pl.pallas_call(
        _fused_scale_shuffle_kernel,
        out_shape=jax.ShapeDtypeStruct((N, C_OUT * ROWS, 128), x.dtype),
        grid=(1,),
        in_specs=[
            pl.BlockSpec(memory_space=pltpu.SMEM),                       # parameter
            pl.BlockSpec((N, NUM_IN_CH, H, W), lambda i: (0, 0, 0, 0)),  # x (full)
        ],
        out_specs=pl.BlockSpec((N, C_OUT * ROWS, 128), lambda i: (0, 0, 0)),
        compiler_params=pltpu.CompilerParams(
            dimension_semantics=("arbitrary",),
        ),
    )(parameter, x)

    # The kernel already wrote the final memory order: this reshape is a free view.
    return out_flat.reshape(N, C_OUT, OH, OW)


def _reference(x, parameter):
    """Pure-JAX reference matching the PyTorch forward exactly."""
    n, c, h, w = x.shape
    r = UPSCALE
    cat = jnp.concatenate([x * parameter[0]] * NUM_COPIES, axis=1)
    c_out = cat.shape[1] // (r * r)
    y = cat.reshape(n, c_out, r, r, h, w)
    y = jnp.transpose(y, (0, 1, 4, 2, 5, 3))
    return y.reshape(n, c_out, h * r, w * r)


if __name__ == "__main__":
    key = jax.random.PRNGKey(0)
    x = jax.random.normal(key, (N, NUM_IN_CH, H, W), dtype=jnp.float32)

    # nn.Parameter(torch.ones(1)) -> deterministic ones (faithful to the module).
    parameter = jnp.ones((1,), dtype=jnp.float32)
    out = jax.block_until_ready(debug_arch_forward(x, parameter))
    ref = _reference(x, parameter)
    assert out.shape == (N, C_OUT, OH, OW)
    # Tolerance is loose enough to be robust to the MXU's reduced-precision f32
    # path (the selection matmuls may round operands on some generations) while
    # still catching any mis-indexing, which would produce O(1) errors.
    assert jnp.allclose(out, ref, atol=5e-2, rtol=5e-2)

    # Non-trivial scale to exercise the multiply path.
    parameter2 = jnp.full((1,), 0.73, dtype=jnp.float32)
    out2 = jax.block_until_ready(debug_arch_forward(x, parameter2))
    assert jnp.allclose(out2, _reference(x, parameter2), atol=5e-2, rtol=5e-2)

    print("KERNEL_OK")
</pallas_src>

<mosaic_0001>
module attributes {stable_mosaic.version = 11 : i64} {
  func.func @_fused_scale_shuffle_kernel(%arg0: i32, %arg1: memref<1xf32, #tpu.memory_space<smem>>, %arg2: memref<2x4x16x16xf32, #tpu.memory_space<vmem>>, %arg3: memref<2x32x128xf32, #tpu.memory_space<vmem>>) attributes {dimension_semantics = [#tpu.dimension_semantics<arbitrary>], iteration_bounds = array<i64: 1>, scalar_prefetch = 0 : i64, scratch_operands = 0 : i64, tpu.core_type = #tpu.core_type<tc>, window_params = [{transform_indices = @transform_0, window_bounds = array<i64: 1>}, {pipeline_mode = #tpu.pipeline_mode<synchronous>, transform_indices = @transform_1, window_bounds = array<i64: 2, 4, 16, 16>}, {pipeline_mode = #tpu.pipeline_mode<synchronous>, transform_indices = @transform_2, window_bounds = array<i64: 2, 32, 128>}]} {
    %c0 = arith.constant 0 : index
    %0 = memref.load %arg1[%c0] : memref<1xf32, #tpu.memory_space<smem>>
    %1 = tpu.iota {dimensions = array<i32: 0>} : vector<8x16xi32>
    %2 = tpu.iota {dimensions = array<i32: 1>} : vector<8x16xi32>
    %3 = tpu.iota {dimensions = array<i32: 0>} : vector<16x128xi32>
    %4 = tpu.iota {dimensions = array<i32: 1>} : vector<16x128xi32>
    %c0_0 = arith.constant 0 : index
    %c0_1 = arith.constant 0 : index
    %c0_2 = arith.constant 0 : index
    %c0_3 = arith.constant 0 : index
    %5 = vector.load %arg2[%c0_0, %c0_1, %c0_2, %c0_3] : memref<2x4x16x16xf32, #tpu.memory_space<vmem>>, vector<1x1x16x16xf32>
    %6 = vector.shape_cast %5 : vector<1x1x16x16xf32> to vector<16x16xf32>
    %7 = vector.broadcast %0 : f32 to vector<16x16xf32>
    %8 = arith.mulf %6, %7 : vector<16x16xf32>
    %c0_4 = arith.constant 0 : index
    %c1 = arith.constant 1 : index
    %c0_5 = arith.constant 0 : index
    %c0_6 = arith.constant 0 : index
    %9 = vector.load %arg2[%c0_4, %c1, %c0_5, %c0_6] : memref<2x4x16x16xf32, #tpu.memory_space<vmem>>, vector<1x1x16x16xf32>
    %10 = vector.shape_cast %9 : vector<1x1x16x16xf32> to vector<16x16xf32>
    %11 = vector.broadcast %0 : f32 to vector<16x16xf32>
    %12 = arith.mulf %10, %11 : vector<16x16xf32>
    %c0_7 = arith.constant 0 : index
    %c2 = arith.constant 2 : index
    %c0_8 = arith.constant 0 : index
    %c0_9 = arith.constant 0 : index
    %13 = vector.load %arg2[%c0_7, %c2, %c0_8, %c0_9] : memref<2x4x16x16xf32, #tpu.memory_space<vmem>>, vector<1x1x16x16xf32>
    %14 = vector.shape_cast %13 : vector<1x1x16x16xf32> to vector<16x16xf32>
    %15 = vector.broadcast %0 : f32 to vector<16x16xf32>
    %16 = arith.mulf %14, %15 : vector<16x16xf32>
    %c0_10 = arith.constant 0 : index
    %c3 = arith.constant 3 : index
    %c0_11 = arith.constant 0 : index
    %c0_12 = arith.constant 0 : index
    %17 = vector.load %arg2[%c0_10, %c3, %c0_11, %c0_12] : memref<2x4x16x16xf32, #tpu.memory_space<vmem>>, vector<1x1x16x16xf32>
    %18 = vector.shape_cast %17 : vector<1x1x16x16xf32> to vector<16x16xf32>
    %19 = vector.broadcast %0 : f32 to vector<16x16xf32>
    %20 = arith.mulf %18, %19 : vector<16x16xf32>
    %cst = arith.constant 0.000000e+00 : f32
    %21 = vector.broadcast %cst : f32 to vector<8x128xf32>
    %c4_i32 = arith.constant 4 : i32
    %22 = vector.broadcast %c4_i32 : i32 to vector<8x16xi32>
    %23 = arith.muli %1, %22 : vector<8x16xi32>
    %c0_i32 = arith.constant 0 : i32
    %24 = vector.broadcast %c0_i32 : i32 to vector<8x16xi32>
    %25 = arith.addi %23, %24 : vector<8x16xi32>
    %c2_i32 = arith.constant 2 : i32
    %26 = vector.broadcast %c2_i32 : i32 to vector<8x16xi32>
    %27 = arith.muli %2, %26 : vector<8x16xi32>
    %c0_i32_13 = arith.constant 0 : i32
    %28 = vector.broadcast %c0_i32_13 : i32 to vector<8x16xi32>
    %29 = arith.addi %27, %28 : vector<8x16xi32>
    %30 = arith.cmpi eq, %25, %29 : vector<8x16xi32>
    %cst_14 = arith.constant 1.000000e+00 : f32
    %cst_15 = arith.constant 0.000000e+00 : f32
    %31 = vector.broadcast %cst_14 : f32 to vector<8x16xf32>
    %32 = vector.broadcast %cst_15 : f32 to vector<8x16xf32>
    %33 = arith.select %30, %31, %32 : vector<8x16xi1>, vector<8x16xf32>
    %cst_16 = arith.constant dense<0.000000e+00> : vector<8x16xf32>
    %34 = tpu.matmul %33, %8, %cst_16 {dimension_numbers = #tpu.dot_dimension_numbers<[1], [0], [0], [1], [0, 0, 1, 1], [], []>} : vector<8x16xf32>, vector<16x16xf32>, vector<8x16xf32> -> vector<8x16xf32>
    %c2_i32_17 = arith.constant 2 : i32
    %35 = vector.broadcast %c2_i32_17 : i32 to vector<16x128xi32>
    %36 = arith.muli %3, %35 : vector<16x128xi32>
    %c0_i32_18 = arith.constant 0 : i32
    %37 = vector.broadcast %c0_i32_18 : i32 to vector<16x128xi32>
    %38 = arith.addi %37, %36 : vector<16x128xi32>
    %c0_i32_19 = arith.constant 0 : i32
    %39 = vector.broadcast %c0_i32_19 : i32 to vector<16x128xi32>
    %40 = arith.addi %38, %39 : vector<16x128xi32>
    %41 = arith.cmpi eq, %4, %40 : vector<16x128xi32>
    %cst_20 = arith.constant 1.000000e+00 : f32
    %cst_21 = arith.constant 0.000000e+00 : f32
    %42 = vector.broadcast %cst_20 : f32 to vector<16x128xf32>
    %43 = vector.broadcast %cst_21 : f32 to vector<16x128xf32>
    %44 = arith.select %41, %42, %43 : vector<16x128xi1>, vector<16x128xf32>
    %cst_22 = arith.constant dense<0.000000e+00> : vector<8x128xf32>
    %45 = tpu.matmul %34, %44, %cst_22 {dimension_numbers = #tpu.dot_dimension_numbers<[1], [0], [0], [1], [0, 0, 1, 1], [], []>} : vector<8x16xf32>, vector<16x128xf32>, vector<8x128xf32> -> vector<8x128xf32>
    %46 = arith.addf %21, %45 : vector<8x128xf32>
    %cst_23 = arith.constant dense<0.000000e+00> : vector<8x16xf32>
    %47 = tpu.matmul %33, %12, %cst_23 {dimension_numbers = #tpu.dot_dimension_numbers<[1], [0], [0], [1], [0, 0, 1, 1], [], []>} : vector<8x16xf32>, vector<16x16xf32>, vector<8x16xf32> -> vector<8x16xf32>
    %c2_i32_24 = arith.constant 2 : i32
    %48 = vector.broadcast %c2_i32_24 : i32 to vector<16x128xi32>
    %49 = arith.muli %3, %48 : vector<16x128xi32>
    %c0_i32_25 = arith.constant 0 : i32
    %50 = vector.broadcast %c0_i32_25 : i32 to vector<16x128xi32>
    %51 = arith.addi %50, %49 : vector<16x128xi32>
    %c1_i32 = arith.constant 1 : i32
    %52 = vector.broadcast %c1_i32 : i32 to vector<16x128xi32>
    %53 = arith.addi %51, %52 : vector<16x128xi32>
    %54 = arith.cmpi eq, %4, %53 : vector<16x128xi32>
    %cst_26 = arith.constant 1.000000e+00 : f32
    %cst_27 = arith.constant 0.000000e+00 : f32
    %55 = vector.broadcast %cst_26 : f32 to vector<16x128xf32>
    %56 = vector.broadcast %cst_27 : f32 to vector<16x128xf32>
    %57 = arith.select %54, %55, %56 : vector<16x128xi1>, vector<16x128xf32>
    %cst_28 = arith.constant dense<0.000000e+00> : vector<8x128xf32>
    %58 = tpu.matmul %47, %57, %cst_28 {dimension_numbers = #tpu.dot_dimension_numbers<[1], [0], [0], [1], [0, 0, 1, 1], [], []>} : vector<8x16xf32>, vector<16x128xf32>, vector<8x128xf32> -> vector<8x128xf32>
    %59 = arith.addf %46, %58 : vector<8x128xf32>
    %c4_i32_29 = arith.constant 4 : i32
    %60 = vector.broadcast %c4_i32_29 : i32 to vector<8x16xi32>
    %61 = arith.muli %1, %60 : vector<8x16xi32>
    %c1_i32_30 = arith.constant 1 : i32
    %62 = vector.broadcast %c1_i32_30 : i32 to vector<8x16xi32>
    %63 = arith.addi %61, %62 : vector<8x16xi32>
    %c2_i32_31 = arith.constant 2 : i32
    %64 = vector.broadcast %c2_i32_31 : i32 to vector<8x16xi32>
    %65 = arith.muli %2, %64 : vector<8x16xi32>
    %c1_i32_32 = arith.constant 1 : i32
    %66 = vector.broadcast %c1_i32_32 : i32 to vector<8x16xi32>
    %67 = arith.addi %65, %66 : vector<8x16xi32>
    %68 = arith.cmpi eq, %63, %67 : vector<8x16xi32>
    %cst_33 = arith.constant 1.000000e+00 : f32
    %cst_34 = arith.constant 0.000000e+00 : f32
    %69 = vector.broadcast %cst_33 : f32 to vector<8x16xf32>
    %70 = vector.broadcast %cst_34 : f32 to vector<8x16xf32>
    %71 = arith.select %68, %69, %70 : vector<8x16xi1>, vector<8x16xf32>
    %cst_35 = arith.constant dense<0.000000e+00> : vector<8x16xf32>
    %72 = tpu.matmul %71, %16, %cst_35 {dimension_numbers = #tpu.dot_dimension_numbers<[1], [0], [0], [1], [0, 0, 1, 1], [], []>} : vector<8x16xf32>, vector<16x16xf32>, vector<8x16xf32> -> vector<8x16xf32>
    %c2_i32_36 = arith.constant 2 : i32
    %73 = vector.broadcast %c2_i32_36 : i32 to vector<16x128xi32>
    %74 = arith.muli %3, %73 : vector<16x128xi32>
    %c32_i32 = arith.constant 32 : i32
    %75 = vector.broadcast %c32_i32 : i32 to vector<16x128xi32>
    %76 = arith.addi %75, %74 : vector<16x128xi32>
    %c0_i32_37 = arith.constant 0 : i32
    %77 = vector.broadcast %c0_i32_37 : i32 to vector<16x128xi32>
    %78 = arith.addi %76, %77 : vector<16x128xi32>
    %79 = arith.cmpi eq, %4, %78 : vector<16x128xi32>
    %cst_38 = arith.constant 1.000000e+00 : f32
    %cst_39 = arith.constant 0.000000e+00 : f32
    %80 = vector.broadcast %cst_38 : f32 to vector<16x128xf32>
    %81 = vector.broadcast %cst_39 : f32 to vector<16x128xf32>
    %82 = arith.select %79, %80, %81 : vector<16x128xi1>, vector<16x128xf32>
    %cst_40 = arith.constant dense<0.000000e+00> : vector<8x128xf32>
    %83 = tpu.matmul %72, %82, %cst_40 {dimension_numbers = #tpu.dot_dimension_numbers<[1], [0], [0], [1], [0, 0, 1, 1], [], []>} : vector<8x16xf32>, vector<16x128xf32>, vector<8x128xf32> -> vector<8x128xf32>
    %84 = arith.addf %59, %83 : vector<8x128xf32>
    %cst_41 = arith.constant dense<0.000000e+00> : vector<8x16xf32>
    %85 = tpu.matmul %71, %20, %cst_41 {dimension_numbers = #tpu.dot_dimension_numbers<[1], [0], [0], [1], [0, 0, 1, 1], [], []>} : vector<8x16xf32>, vector<16x16xf32>, vector<8x16xf32> -> vector<8x16xf32>
    %c2_i32_42 = arith.constant 2 : i32
    %86 = vector.broadcast %c2_i32_42 : i32 to vector<16x128xi32>
    %87 = arith.muli %3, %86 : vector<16x128xi32>
    %c32_i32_43 = arith.constant 32 : i32
    %88 = vector.broadcast %c32_i32_43 : i32 to vector<16x128xi32>
    %89 = arith.addi %88, %87 : vector<16x128xi32>
    %c1_i32_44 = arith.constant 1 : i32
    %90 = vector.broadcast %c1_i32_44 : i32 to vector<16x128xi32>
    %91 = arith.addi %89, %90 : vector<16x128xi32>
    %92 = arith.cmpi eq, %4, %91 : vector<16x128xi32>
    %cst_45 = arith.constant 1.000000e+00 : f32
    %cst_46 = arith.constant 0.000000e+00 : f32
    %93 = vector.broadcast %cst_45 : f32 to vector<16x128xf32>
    %94 = vector.broadcast %cst_46 : f32 to vector<16x128xf32>
    %95 = arith.select %92, %93, %94 : vector<16x128xi1>, vector<16x128xf32>
    %cst_47 = arith.constant dense<0.000000e+00> : vector<8x128xf32>
    %96 = tpu.matmul %85, %95, %cst_47 {dimension_numbers = #tpu.dot_dimension_numbers<[1], [0], [0], [1], [0, 0, 1, 1], [], []>} : vector<8x16xf32>, vector<16x128xf32>, vector<8x128xf32> -> vector<8x128xf32>
    %97 = arith.addf %84, %96 : vector<8x128xf32>
    %c4_i32_48 = arith.constant 4 : i32
    %98 = vector.broadcast %c4_i32_48 : i32 to vector<8x16xi32>
    %99 = arith.muli %1, %98 : vector<8x16xi32>
    %c2_i32_49 = arith.constant 2 : i32
    %100 = vector.broadcast %c2_i32_49 : i32 to vector<8x16xi32>
    %101 = arith.addi %99, %100 : vector<8x16xi32>
    %c2_i32_50 = arith.constant 2 : i32
    %102 = vector.broadcast %c2_i32_50 : i32 to vector<8x16xi32>
    %103 = arith.muli %2, %102 : vector<8x16xi32>
    %c0_i32_51 = arith.constant 0 : i32
    %104 = vector.broadcast %c0_i32_51 : i32 to vector<8x16xi32>
    %105 = arith.addi %103, %104 : vector<8x16xi32>
    %106 = arith.cmpi eq, %101, %105 : vector<8x16xi32>
    %cst_52 = arith.constant 1.000000e+00 : f32
    %cst_53 = arith.constant 0.000000e+00 : f32
    %107 = vector.broadcast %cst_52 : f32 to vector<8x16xf32>
    %108 = vector.broadcast %cst_53 : f32 to vector<8x16xf32>
    %109 = arith.select %106, %107, %108 : vector<8x16xi1>, vector<8x16xf32>
    %cst_54 = arith.constant dense<0.000000e+00> : vector<8x16xf32>
    %110 = tpu.matmul %109, %8, %cst_54 {dimension_numbers = #tpu.dot_dimension_numbers<[1], [0], [0], [1], [0, 0, 1, 1], [], []>} : vector<8x16xf32>, vector<16x16xf32>, vector<8x16xf32> -> vector<8x16xf32>
    %c2_i32_55 = arith.constant 2 : i32
    %111 = vector.broadcast %c2_i32_55 : i32 to vector<16x128xi32>
    %112 = arith.muli %3, %111 : vector<16x128xi32>
    %c64_i32 = arith.constant 64 : i32
    %113 = vector.broadcast %c64_i32 : i32 to vector<16x128xi32>
    %114 = arith.addi %113, %112 : vector<16x128xi32>
    %c0_i32_56 = arith.constant 0 : i32
    %115 = vector.broadcast %c0_i32_56 : i32 to vector<16x128xi32>
    %116 = arith.addi %114, %115 : vector<16x128xi32>
    %117 = arith.cmpi eq, %4, %116 : vector<16x128xi32>
    %cst_57 = arith.constant 1.000000e+00 : f32
    %cst_58 = arith.constant 0.000000e+00 : f32
    %118 = vector.broadcast %cst_57 : f32 to vector<16x128xf32>
    %119 = vector.broadcast %cst_58 : f32 to vector<16x128xf32>
    %120 = arith.select %117, %118, %119 : vector<16x128xi1>, vector<16x128xf32>
    %cst_59 = arith.constant dense<0.000000e+00> : vector<8x128xf32>
    %121 = tpu.matmul %110, %120, %cst_59 {dimension_numbers = #tpu.dot_dimension_numbers<[1], [0], [0], [1], [0, 0, 1, 1], [], []>} : vector<8x16xf32>, vector<16x128xf32>, vector<8x128xf32> -> vector<8x128xf32>
    %122 = arith.addf %97, %121 : vector<8x128xf32>
    %cst_60 = arith.constant dense<0.000000e+00> : vector<8x16xf32>
    %123 = tpu.matmul %109, %12, %cst_60 {dimension_numbers = #tpu.dot_dimension_numbers<[1], [0], [0], [1], [0, 0, 1, 1], [], []>} : vector<8x16xf32>, vector<16x16xf32>, vector<8x16xf32> -> vector<8x16xf32>
    %c2_i32_61 = arith.constant 2 : i32
    %124 = vector.broadcast %c2_i32_61 : i32 to vector<16x128xi32>
    %125 = arith.muli %3, %124 : vector<16x128xi32>
    %c64_i32_62 = arith.constant 64 : i32
    %126 = vector.broadcast %c64_i32_62 : i32 to vector<16x128xi32>
    %127 = arith.addi %126, %125 : vector<16x128xi32>
    %c1_i32_63 = arith.constant 1 : i32
    %128 = vector.broadcast %c1_i32_63 : i32 to vector<16x128xi32>
    %129 = arith.addi %127, %128 : vector<16x128xi32>
    %130 = arith.cmpi eq, %4, %129 : vector<16x128xi32>
    %cst_64 = arith.constant 1.000000e+00 : f32
    %cst_65 = arith.constant 0.000000e+00 : f32
    %131 = vector.broadcast %cst_64 : f32 to vector<16x128xf32>
    %132 = vector.broadcast %cst_65 : f32 to vector<16x128xf32>
    %133 = arith.select %130, %131, %132 : vector<16x128xi1>, vector<16x128xf32>
    %cst_66 = arith.constant dense<0.000000e+00> : vector<8x128xf32>
    %134 = tpu.matmul %123, %133, %cst_66 {dimension_numbers = #tpu.dot_dimension_numbers<[1], [0], [0], [1], [0, 0, 1, 1], [], []>} : vector<8x16xf32>, vector<16x128xf32>, vector<8x128xf32> -> vector<8x128xf32>
    %135 = arith.addf %122, %134 : vector<8x128xf32>
    %c4_i32_67 = arith.constant 4 : i32
    %136 = vector.broadcast %c4_i32_67 : i32 to vector<8x16xi32>
    %137 = arith.muli %1, %136 : vector<8x16xi32>
    %c3_i32 = arith.constant 3 : i32
    %138 = vector.broadcast %c3_i32 : i32 to vector<8x16xi32>
    %139 = arith.addi %137, %138 : vector<8x16xi32>
    %c2_i32_68 = arith.constant 2 : i32
    %140 = vector.broadcast %c2_i32_68 : i32 to vector<8x16xi32>
    %141 = arith.muli %2, %140 : vector<8x16xi32>
    %c1_i32_69 = arith.constant 1 : i32
    %142 = vector.broadcast %c1_i32_69 : i32 to vector<8x16xi32>
    %143 = arith.addi %141, %142 : vector<8x16xi32>
    %144 = arith.cmpi eq, %139, %143 : vector<8x16xi32>
    %cst_70 = arith.constant 1.000000e+00 : f32
    %cst_71 = arith.constant 0.000000e+00 : f32
    %145 = vector.broadcast %cst_70 : f32 to vector<8x16xf32>
    %146 = vector.broadcast %cst_71 : f32 to vector<8x16xf32>
    %147 = arith.select %144, %145, %146 : vector<8x16xi1>, vector<8x16xf32>
    %cst_72 = arith.constant dense<0.000000e+00> : vector<8x16xf32>
    %148 = tpu.matmul %147, %16, %cst_72 {dimension_numbers = #tpu.dot_dimension_numbers<[1], [0], [0], [1], [0, 0, 1, 1], [], []>} : vector<8x16xf32>, vector<16x16xf32>, vector<8x16xf32> -> vector<8x16xf32>
    %c2_i32_73 = arith.constant 2 : i32
    %149 = vector.broadcast %c2_i32_73 : i32 to vector<16x128xi32>
    %150 = arith.muli %3, %149 : vector<16x128xi32>
    %c96_i32 = arith.constant 96 : i32
    %151 = vector.broadcast %c96_i32 : i32 to vector<16x128xi32>
    %152 = arith.addi %151, %150 : vector<16x128xi32>
    %c0_i32_74 = arith.constant 0 : i32
    %153 = vector.broadcast %c0_i32_74 : i32 to vector<16x128xi32>
    %154 = arith.addi %152, %153 : vector<16x128xi32>
    %155 = arith.cmpi eq, %4, %154 : vector<16x128xi32>
    %cst_75 = arith.constant 1.000000e+00 : f32
    %cst_76 = arith.constant 0.000000e+00 : f32
    %156 = vector.broadcast %cst_75 : f32 to vector<16x128xf32>
    %157 = vector.broadcast %cst_76 : f32 to vector<16x128xf32>
    %158 = arith.select %155, %156, %157 : vector<16x128xi1>, vector<16x128xf32>
    %cst_77 = arith.constant dense<0.000000e+00> : vector<8x128xf32>
    %159 = tpu.matmul %148, %158, %cst_77 {dimension_numbers = #tpu.dot_dimension_numbers<[1], [0], [0], [1], [0, 0, 1, 1], [], []>} : vector<8x16xf32>, vector<16x128xf32>, vector<8x128xf32> -> vector<8x128xf32>
    %160 = arith.addf %135, %159 : vector<8x128xf32>
    %cst_78 = arith.constant dense<0.000000e+00> : vector<8x16xf32>
    %161 = tpu.matmul %147, %20, %cst_78 {dimension_numbers = #tpu.dot_dimension_numbers<[1], [0], [0], [1], [0, 0, 1, 1], [], []>} : vector<8x16xf32>, vector<16x16xf32>, vector<8x16xf32> -> vector<8x16xf32>
    %c2_i32_79 = arith.constant 2 : i32
    %162 = vector.broadcast %c2_i32_79 : i32 to vector<16x128xi32>
    %163 = arith.muli %3, %162 : vector<16x128xi32>
    %c96_i32_80 = arith.constant 96 : i32
    %164 = vector.broadcast %c96_i32_80 : i32 to vector<16x128xi32>
    %165 = arith.addi %164, %163 : vector<16x128xi32>
    %c1_i32_81 = arith.constant 1 : i32
    %166 = vector.broadcast %c1_i32_81 : i32 to vector<16x128xi32>
    %167 = arith.addi %165, %166 : vector<16x128xi32>
    %168 = arith.cmpi eq, %4, %167 : vector<16x128xi32>
    %cst_82 = arith.constant 1.000000e+00 : f32
    %cst_83 = arith.constant 0.000000e+00 : f32
    %169 = vector.broadcast %cst_82 : f32 to vector<16x128xf32>
    %170 = vector.broadcast %cst_83 : f32 to vector<16x128xf32>
    %171 = arith.select %168, %169, %170 : vector<16x128xi1>, vector<16x128xf32>
    %cst_84 = arith.constant dense<0.000000e+00> : vector<8x128xf32>
    %172 = tpu.matmul %161, %171, %cst_84 {dimension_numbers = #tpu.dot_dimension_numbers<[1], [0], [0], [1], [0, 0, 1, 1], [], []>} : vector<8x16xf32>, vector<16x128xf32>, vector<8x128xf32> -> vector<8x128xf32>
    %173 = arith.addf %160, %172 : vector<8x128xf32>
    %c0_85 = arith.constant 0 : index
    %c0_86 = arith.constant 0 : index
    %c0_87 = arith.constant 0 : index
    %174 = vector.load %arg3[%c0_85, %c0_86, %c0_87] : memref<2x32x128xf32, #tpu.memory_space<vmem>>, vector<1x8x128xf32>
    %175 = vector.shape_cast %174 : vector<1x8x128xf32> to vector<8x128xf32>
    %176 = vector.shape_cast %173 : vector<8x128xf32> to vector<1x8x128xf32>
    tpu.vector_store %arg3[%c0_85, %c0_86, %c0_87], %176 {strides = array<i32>} : memref<2x32x128xf32, #tpu.memory_space<vmem>>, vector<1x8x128xf32>,
    %c0_88 = arith.constant 0 : index
    %c8 = arith.constant 8 : index
    %c0_89 = arith.constant 0 : index
    %177 = vector.load %arg3[%c0_88, %c8, %c0_89] : memref<2x32x128xf32, #tpu.memory_space<vmem>>, vector<1x8x128xf32>
    %178 = vector.shape_cast %177 : vector<1x8x128xf32> to vector<8x128xf32>
    %179 = vector.shape_cast %173 : vector<8x128xf32> to vector<1x8x128xf32>
    tpu.vector_store %arg3[%c0_88, %c8, %c0_89], %179 {strides = array<i32>} : memref<2x32x128xf32, #tpu.memory_space<vmem>>, vector<1x8x128xf32>,
    %c0_90 = arith.constant 0 : index
    %c16 = arith.constant 16 : index
    %c0_91 = arith.constant 0 : index
    %180 = vector.load %arg3[%c0_90, %c16, %c0_91] : memref<2x32x128xf32, #tpu.memory_space<vmem>>, vector<1x8x128xf32>
    %181 = vector.shape_cast %180 : vector<1x8x128xf32> to vector<8x128xf32>
    %182 = vector.shape_cast %173 : vector<8x128xf32> to vector<1x8x128xf32>
    tpu.vector_store %arg3[%c0_90, %c16, %c0_91], %182 {strides = array<i32>} : memref<2x32x128xf32, #tpu.memory_space<vmem>>, vector<1x8x128xf32>,
    %c0_92 = arith.constant 0 : index
    %c24 = arith.constant 24 : index
    %c0_93 = arith.constant 0 : index
    %183 = vector.load %arg3[%c0_92, %c24, %c0_93] : memref<2x32x128xf32, #tpu.memory_space<vmem>>, vector<1x8x128xf32>
    %184 = vector.shape_cast %183 : vector<1x8x128xf32> to vector<8x128xf32>
    %185 = vector.shape_cast %173 : vector<8x128xf32> to vector<1x8x128xf32>
    tpu.vector_store %arg3[%c0_92, %c24, %c0_93], %185 {strides = array<i32>} : memref<2x32x128xf32, #tpu.memory_space<vmem>>, vector<1x8x128xf32>,
    %c1_94 = arith.constant 1 : index
    %c0_95 = arith.constant 0 : index
    %c0_96 = arith.constant 0 : index
    %c0_97 = arith.constant 0 : index
    %186 = vector.load %arg2[%c1_94, %c0_95, %c0_96, %c0_97] : memref<2x4x16x16xf32, #tpu.memory_space<vmem>>, vector<1x1x16x16xf32>
    %187 = vector.shape_cast %186 : vector<1x1x16x16xf32> to vector<16x16xf32>
    %188 = vector.broadcast %0 : f32 to vector<16x16xf32>
    %189 = arith.mulf %187, %188 : vector<16x16xf32>
    %c1_98 = arith.constant 1 : index
    %c1_99 = arith.constant 1 : index
    %c0_100 = arith.constant 0 : index
    %c0_101 = arith.constant 0 : index
    %190 = vector.load %arg2[%c1_98, %c1_99, %c0_100, %c0_101] : memref<2x4x16x16xf32, #tpu.memory_space<vmem>>, vector<1x1x16x16xf32>
    %191 = vector.shape_cast %190 : vector<1x1x16x16xf32> to vector<16x16xf32>
    %192 = vector.broadcast %0 : f32 to vector<16x16xf32>
    %193 = arith.mulf %191, %192 : vector<16x16xf32>
    %c1_102 = arith.constant 1 : index
    %c2_103 = arith.constant 2 : index
    %c0_104 = arith.constant 0 : index
    %c0_105 = arith.constant 0 : index
    %194 = vector.load %arg2[%c1_102, %c2_103, %c0_104, %c0_105] : memref<2x4x16x16xf32, #tpu.memory_space<vmem>>, vector<1x1x16x16xf32>
    %195 = vector.shape_cast %194 : vector<1x1x16x16xf32> to vector<16x16xf32>
    %196 = vector.broadcast %0 : f32 to vector<16x16xf32>
    %197 = arith.mulf %195, %196 : vector<16x16xf32>
    %c1_106 = arith.constant 1 : index
    %c3_107 = arith.constant 3 : index
    %c0_108 = arith.constant 0 : index
    %c0_109 = arith.constant 0 : index
    %198 = vector.load %arg2[%c1_106, %c3_107, %c0_108, %c0_109] : memref<2x4x16x16xf32, #tpu.memory_space<vmem>>, vector<1x1x16x16xf32>
    %199 = vector.shape_cast %198 : vector<1x1x16x16xf32> to vector<16x16xf32>
    %200 = vector.broadcast %0 : f32 to vector<16x16xf32>
    %201 = arith.mulf %199, %200 : vector<16x16xf32>
    %cst_110 = arith.constant 0.000000e+00 : f32
    %202 = vector.broadcast %cst_110 : f32 to vector<8x128xf32>
    %c4_i32_111 = arith.constant 4 : i32
    %203 = vector.broadcast %c4_i32_111 : i32 to vector<8x16xi32>
    %204 = arith.muli %1, %203 : vector<8x16xi32>
    %c0_i32_112 = arith.constant 0 : i32
    %205 = vector.broadcast %c0_i32_112 : i32 to vector<8x16xi32>
    %206 = arith.addi %204, %205 : vector<8x16xi32>
    %c2_i32_113 = arith.constant 2 : i32
    %207 = vector.broadcast %c2_i32_113 : i32 to vector<8x16xi32>
    %208 = arith.muli %2, %207 : vector<8x16xi32>
    %c0_i32_114 = arith.constant 0 : i32
    %209 = vector.broadcast %c0_i32_114 : i32 to vector<8x16xi32>
    %210 = arith.addi %208, %209 : vector<8x16xi32>
    %211 = arith.cmpi eq, %206, %210 : vector<8x16xi32>
    %cst_115 = arith.constant 1.000000e+00 : f32
    %cst_116 = arith.constant 0.000000e+00 : f32
    %212 = vector.broadcast %cst_115 : f32 to vector<8x16xf32>
    %213 = vector.broadcast %cst_116 : f32 to vector<8x16xf32>
    %214 = arith.select %211, %212, %213 : vector<8x16xi1>, vector<8x16xf32>
    %cst_117 = arith.constant dense<0.000000e+00> : vector<8x16xf32>
    %215 = tpu.matmul %214, %189, %cst_117 {dimension_numbers = #tpu.dot_dimension_numbers<[1], [0], [0], [1], [0, 0, 1, 1], [], []>} : vector<8x16xf32>, vector<16x16xf32>, vector<8x16xf32> -> vector<8x16xf32>
    %c2_i32_118 = arith.constant 2 : i32
    %216 = vector.broadcast %c2_i32_118 : i32 to vector<16x128xi32>
    %217 = arith.muli %3, %216 : vector<16x128xi32>
    %c0_i32_119 = arith.constant 0 : i32
    %218 = vector.broadcast %c0_i32_119 : i32 to vector<16x128xi32>
    %219 = arith.addi %218, %217 : vector<16x128xi32>
    %c0_i32_120 = arith.constant 0 : i32
    %220 = vector.broadcast %c0_i32_120 : i32 to vector<16x128xi32>
    %221 = arith.addi %219, %220 : vector<16x128xi32>
    %222 = arith.cmpi eq, %4, %221 : vector<16x128xi32>
    %cst_121 = arith.constant 1.000000e+00 : f32
    %cst_122 = arith.constant 0.000000e+00 : f32
    %223 = vector.broadcast %cst_121 : f32 to vector<16x128xf32>
    %224 = vector.broadcast %cst_122 : f32 to vector<16x128xf32>
    %225 = arith.select %222, %223, %224 : vector<16x128xi1>, vector<16x128xf32>
    %cst_123 = arith.constant dense<0.000000e+00> : vector<8x128xf32>
    %226 = tpu.matmul %215, %225, %cst_123 {dimension_numbers = #tpu.dot_dimension_numbers<[1], [0], [0], [1], [0, 0, 1, 1], [], []>} : vector<8x16xf32>, vector<16x128xf32>, vector<8x128xf32> -> vector<8x128xf32>
    %227 = arith.addf %202, %226 : vector<8x128xf32>
    %cst_124 = arith.constant dense<0.000000e+00> : vector<8x16xf32>
    %228 = tpu.matmul %214, %193, %cst_124 {dimension_numbers = #tpu.dot_dimension_numbers<[1], [0], [0], [1], [0, 0, 1, 1], [], []>} : vector<8x16xf32>, vector<16x16xf32>, vector<8x16xf32> -> vector<8x16xf32>
    %c2_i32_125 = arith.constant 2 : i32
    %229 = vector.broadcast %c2_i32_125 : i32 to vector<16x128xi32>
    %230 = arith.muli %3, %229 : vector<16x128xi32>
    %c0_i32_126 = arith.constant 0 : i32
    %231 = vector.broadcast %c0_i32_126 : i32 to vector<16x128xi32>
    %232 = arith.addi %231, %230 : vector<16x128xi32>
    %c1_i32_127 = arith.constant 1 : i32
    %233 = vector.broadcast %c1_i32_127 : i32 to vector<16x128xi32>
    %234 = arith.addi %232, %233 : vector<16x128xi32>
    %235 = arith.cmpi eq, %4, %234 : vector<16x128xi32>
    %cst_128 = arith.constant 1.000000e+00 : f32
    %cst_129 = arith.constant 0.000000e+00 : f32
    %236 = vector.broadcast %cst_128 : f32 to vector<16x128xf32>
    %237 = vector.broadcast %cst_129 : f32 to vector<16x128xf32>
    %238 = arith.select %235, %236, %237 : vector<16x128xi1>, vector<16x128xf32>
    %cst_130 = arith.constant dense<0.000000e+00> : vector<8x128xf32>
    %239 = tpu.matmul %228, %238, %cst_130 {dimension_numbers = #tpu.dot_dimension_numbers<[1], [0], [0], [1], [0, 0, 1, 1], [], []>} : vector<8x16xf32>, vector<16x128xf32>, vector<8x128xf32> -> vector<8x128xf32>
    %240 = arith.addf %227, %239 : vector<8x128xf32>
    %c4_i32_131 = arith.constant 4 : i32
    %241 = vector.broadcast %c4_i32_131 : i32 to vector<8x16xi32>
    %242 = arith.muli %1, %241 : vector<8x16xi32>
    %c1_i32_132 = arith.constant 1 : i32
    %243 = vector.broadcast %c1_i32_132 : i32 to vector<8x16xi32>
    %244 = arith.addi %242, %243 : vector<8x16xi32>
    %c2_i32_133 = arith.constant 2 : i32
    %245 = vector.broadcast %c2_i32_133 : i32 to vector<8x16xi32>
    %246 = arith.muli %2, %245 : vector<8x16xi32>
    %c1_i32_134 = arith.constant 1 : i32
    %247 = vector.broadcast %c1_i32_134 : i32 to vector<8x16xi32>
    %248 = arith.addi %246, %247 : vector<8x16xi32>
    %249 = arith.cmpi eq, %244, %248 : vector<8x16xi32>
    %cst_135 = arith.constant 1.000000e+00 : f32
    %cst_136 = arith.constant 0.000000e+00 : f32
    %250 = vector.broadcast %cst_135 : f32 to vector<8x16xf32>
    %251 = vector.broadcast %cst_136 : f32 to vector<8x16xf32>
    %252 = arith.select %249, %250, %251 : vector<8x16xi1>, vector<8x16xf32>
    %cst_137 = arith.constant dense<0.000000e+00> : vector<8x16xf32>
    %253 = tpu.matmul %252, %197, %cst_137 {dimension_numbers = #tpu.dot_dimension_numbers<[1], [0], [0], [1], [0, 0, 1, 1], [], []>} : vector<8x16xf32>, vector<16x16xf32>, vector<8x16xf32> -> vector<8x16xf32>
    %c2_i32_138 = arith.constant 2 : i32
    %254 = vector.broadcast %c2_i32_138 : i32 to vector<16x128xi32>
    %255 = arith.muli %3, %254 : vector<16x128xi32>
    %c32_i32_139 = arith.constant 32 : i32
    %256 = vector.broadcast %c32_i32_139 : i32 to vector<16x128xi32>
    %257 = arith.addi %256, %255 : vector<16x128xi32>
    %c0_i32_140 = arith.constant 0 : i32
    %258 = vector.broadcast %c0_i32_140 : i32 to vector<16x128xi32>
    %259 = arith.addi %257, %258 : vector<16x128xi32>
    %260 = arith.cmpi eq, %4, %259 : vector<16x128xi32>
    %cst_141 = arith.constant 1.000000e+00 : f32
    %cst_142 = arith.constant 0.000000e+00 : f32
    %261 = vector.broadcast %cst_141 : f32 to vector<16x128xf32>
    %262 = vector.broadcast %cst_142 : f32 to vector<16x128xf32>
    %263 = arith.select %260, %261, %262 : vector<16x128xi1>, vector<16x128xf32>
    %cst_143 = arith.constant dense<0.000000e+00> : vector<8x128xf32>
    %264 = tpu.matmul %253, %263, %cst_143 {dimension_numbers = #tpu.dot_dimension_numbers<[1], [0], [0], [1], [0, 0, 1, 1], [], []>} : vector<8x16xf32>, vector<16x128xf32>, vector<8x128xf32> -> vector<8x128xf32>
    %265 = arith.addf %240, %264 : vector<8x128xf32>
    %cst_144 = arith.constant dense<0.000000e+00> : vector<8x16xf32>
    %266 = tpu.matmul %252, %201, %cst_144 {dimension_numbers = #tpu.dot_dimension_numbers<[1], [0], [0], [1], [0, 0, 1, 1], [], []>} : vector<8x16xf32>, vector<16x16xf32>, vector<8x16xf32> -> vector<8x16xf32>
    %c2_i32_145 = arith.constant 2 : i32
    %267 = vector.broadcast %c2_i32_145 : i32 to vector<16x128xi32>
    %268 = arith.muli %3, %267 : vector<16x128xi32>
    %c32_i32_146 = arith.constant 32 : i32
    %269 = vector.broadcast %c32_i32_146 : i32 to vector<16x128xi32>
    %270 = arith.addi %269, %268 : vector<16x128xi32>
    %c1_i32_147 = arith.constant 1 : i32
    %271 = vector.broadcast %c1_i32_147 : i32 to vector<16x128xi32>
    %272 = arith.addi %270, %271 : vector<16x128xi32>
    %273 = arith.cmpi eq, %4, %272 : vector<16x128xi32>
    %cst_148 = arith.constant 1.000000e+00 : f32
    %cst_149 = arith.constant 0.000000e+00 : f32
    %274 = vector.broadcast %cst_148 : f32 to vector<16x128xf32>
    %275 = vector.broadcast %cst_149 : f32 to vector<16x128xf32>
    %276 = arith.select %273, %274, %275 : vector<16x128xi1>, vector<16x128xf32>
    %cst_150 = arith.constant dense<0.000000e+00> : vector<8x128xf32>
    %277 = tpu.matmul %266, %276, %cst_150 {dimension_numbers = #tpu.dot_dimension_numbers<[1], [0], [0], [1], [0, 0, 1, 1], [], []>} : vector<8x16xf32>, vector<16x128xf32>, vector<8x128xf32> -> vector<8x128xf32>
    %278 = arith.addf %265, %277 : vector<8x128xf32>
    %c4_i32_151 = arith.constant 4 : i32
    %279 = vector.broadcast %c4_i32_151 : i32 to vector<8x16xi32>
    %280 = arith.muli %1, %279 : vector<8x16xi32>
    %c2_i32_152 = arith.constant 2 : i32
    %281 = vector.broadcast %c2_i32_152 : i32 to vector<8x16xi32>
    %282 = arith.addi %280, %281 : vector<8x16xi32>
    %c2_i32_153 = arith.constant 2 : i32
    %283 = vector.broadcast %c2_i32_153 : i32 to vector<8x16xi32>
    %284 = arith.muli %2, %283 : vector<8x16xi32>
    %c0_i32_154 = arith.constant 0 : i32
    %285 = vector.broadcast %c0_i32_154 : i32 to vector<8x16xi32>
    %286 = arith.addi %284, %285 : vector<8x16xi32>
    %287 = arith.cmpi eq, %282, %286 : vector<8x16xi32>
    %cst_155 = arith.constant 1.000000e+00 : f32
    %cst_156 = arith.constant 0.000000e+00 : f32
    %288 = vector.broadcast %cst_155 : f32 to vector<8x16xf32>
    %289 = vector.broadcast %cst_156 : f32 to vector<8x16xf32>
    %290 = arith.select %287, %288, %289 : vector<8x16xi1>, vector<8x16xf32>
    %cst_157 = arith.constant dense<0.000000e+00> : vector<8x16xf32>
    %291 = tpu.matmul %290, %189, %cst_157 {dimension_numbers = #tpu.dot_dimension_numbers<[1], [0], [0], [1], [0, 0, 1, 1], [], []>} : vector<8x16xf32>, vector<16x16xf32>, vector<8x16xf32> -> vector<8x16xf32>
    %c2_i32_158 = arith.constant 2 : i32
    %292 = vector.broadcast %c2_i32_158 : i32 to vector<16x128xi32>
    %293 = arith.muli %3, %292 : vector<16x128xi32>
    %c64_i32_159 = arith.constant 64 : i32
    %294 = vector.broadcast %c64_i32_159 : i32 to vector<16x128xi32>
    %295 = arith.addi %294, %293 : vector<16x128xi32>
    %c0_i32_160 = arith.constant 0 : i32
    %296 = vector.broadcast %c0_i32_160 : i32 to vector<16x128xi32>
    %297 = arith.addi %295, %296 : vector<16x128xi32>
    %298 = arith.cmpi eq, %4, %297 : vector<16x128xi32>
    %cst_161 = arith.constant 1.000000e+00 : f32
    %cst_162 = arith.constant 0.000000e+00 : f32
    %299 = vector.broadcast %cst_161 : f32 to vector<16x128xf32>
    %300 = vector.broadcast %cst_162 : f32 to vector<16x128xf32>
    %301 = arith.select %298, %299, %300 : vector<16x128xi1>, vector<16x128xf32>
    %cst_163 = arith.constant dense<0.000000e+00> : vector<8x128xf32>
    %302 = tpu.matmul %291, %301, %cst_163 {dimension_numbers = #tpu.dot_dimension_numbers<[1], [0], [0], [1], [0, 0, 1, 1], [], []>} : vector<8x16xf32>, vector<16x128xf32>, vector<8x128xf32> -> vector<8x128xf32>
    %303 = arith.addf %278, %302 : vector<8x128xf32>
    %cst_164 = arith.constant dense<0.000000e+00> : vector<8x16xf32>
    %304 = tpu.matmul %290, %193, %cst_164 {dimension_numbers = #tpu.dot_dimension_numbers<[1], [0], [0], [1], [0, 0, 1, 1], [], []>} : vector<8x16xf32>, vector<16x16xf32>, vector<8x16xf32> -> vector<8x16xf32>
    %c2_i32_165 = arith.constant 2 : i32
    %305 = vector.broadcast %c2_i32_165 : i32 to vector<16x128xi32>
    %306 = arith.muli %3, %305 : vector<16x128xi32>
    %c64_i32_166 = arith.constant 64 : i32
    %307 = vector.broadcast %c64_i32_166 : i32 to vector<16x128xi32>
    %308 = arith.addi %307, %306 : vector<16x128xi32>
    %c1_i32_167 = arith.constant 1 : i32
    %309 = vector.broadcast %c1_i32_167 : i32 to vector<16x128xi32>
    %310 = arith.addi %308, %309 : vector<16x128xi32>
    %311 = arith.cmpi eq, %4, %310 : vector<16x128xi32>
    %cst_168 = arith.constant 1.000000e+00 : f32
    %cst_169 = arith.constant 0.000000e+00 : f32
    %312 = vector.broadcast %cst_168 : f32 to vector<16x128xf32>
    %313 = vector.broadcast %cst_169 : f32 to vector<16x128xf32>
    %314 = arith.select %311, %312, %313 : vector<16x128xi1>, vector<16x128xf32>
    %cst_170 = arith.constant dense<0.000000e+00> : vector<8x128xf32>
    %315 = tpu.matmul %304, %314, %cst_170 {dimension_numbers = #tpu.dot_dimension_numbers<[1], [0], [0], [1], [0, 0, 1, 1], [], []>} : vector<8x16xf32>, vector<16x128xf32>, vector<8x128xf32> -> vector<8x128xf32>
    %316 = arith.addf %303, %315 : vector<8x128xf32>
    %c4_i32_171 = arith.constant 4 : i32
    %317 = vector.broadcast %c4_i32_171 : i32 to vector<8x16xi32>
    %318 = arith.muli %1, %317 : vector<8x16xi32>
    %c3_i32_172 = arith.constant 3 : i32
    %319 = vector.broadcast %c3_i32_172 : i32 to vector<8x16xi32>
    %320 = arith.addi %318, %319 : vector<8x16xi32>
    %c2_i32_173 = arith.constant 2 : i32
    %321 = vector.broadcast %c2_i32_173 : i32 to vector<8x16xi32>
    %322 = arith.muli %2, %321 : vector<8x16xi32>
    %c1_i32_174 = arith.constant 1 : i32
    %323 = vector.broadcast %c1_i32_174 : i32 to vector<8x16xi32>
    %324 = arith.addi %322, %323 : vector<8x16xi32>
    %325 = arith.cmpi eq, %320, %324 : vector<8x16xi32>
    %cst_175 = arith.constant 1.000000e+00 : f32
    %cst_176 = arith.constant 0.000000e+00 : f32
    %326 = vector.broadcast %cst_175 : f32 to vector<8x16xf32>
    %327 = vector.broadcast %cst_176 : f32 to vector<8x16xf32>
    %328 = arith.select %325, %326, %327 : vector<8x16xi1>, vector<8x16xf32>
    %cst_177 = arith.constant dense<0.000000e+00> : vector<8x16xf32>
    %329 = tpu.matmul %328, %197, %cst_177 {dimension_numbers = #tpu.dot_dimension_numbers<[1], [0], [0], [1], [0, 0, 1, 1], [], []>} : vector<8x16xf32>, vector<16x16xf32>, vector<8x16xf32> -> vector<8x16xf32>
    %c2_i32_178 = arith.constant 2 : i32
    %330 = vector.broadcast %c2_i32_178 : i32 to vector<16x128xi32>
    %331 = arith.muli %3, %330 : vector<16x128xi32>
    %c96_i32_179 = arith.constant 96 : i32
    %332 = vector.broadcast %c96_i32_179 : i32 to vector<16x128xi32>
    %333 = arith.addi %332, %331 : vector<16x128xi32>
    %c0_i32_180 = arith.constant 0 : i32
    %334 = vector.broadcast %c0_i32_180 : i32 to vector<16x128xi32>
    %335 = arith.addi %333, %334 : vector<16x128xi32>
    %336 = arith.cmpi eq, %4, %335 : vector<16x128xi32>
    %cst_181 = arith.constant 1.000000e+00 : f32
    %cst_182 = arith.constant 0.000000e+00 : f32
    %337 = vector.broadcast %cst_181 : f32 to vector<16x128xf32>
    %338 = vector.broadcast %cst_182 : f32 to vector<16x128xf32>
    %339 = arith.select %336, %337, %338 : vector<16x128xi1>, vector<16x128xf32>
    %cst_183 = arith.constant dense<0.000000e+00> : vector<8x128xf32>
    %340 = tpu.matmul %329, %339, %cst_183 {dimension_numbers = #tpu.dot_dimension_numbers<[1], [0], [0], [1], [0, 0, 1, 1], [], []>} : vector<8x16xf32>, vector<16x128xf32>, vector<8x128xf32> -> vector<8x128xf32>
    %341 = arith.addf %316, %340 : vector<8x128xf32>
    %cst_184 = arith.constant dense<0.000000e+00> : vector<8x16xf32>
    %342 = tpu.matmul %328, %201, %cst_184 {dimension_numbers = #tpu.dot_dimension_numbers<[1], [0], [0], [1], [0, 0, 1, 1], [], []>} : vector<8x16xf32>, vector<16x16xf32>, vector<8x16xf32> -> vector<8x16xf32>
    %c2_i32_185 = arith.constant 2 : i32
    %343 = vector.broadcast %c2_i32_185 : i32 to vector<16x128xi32>
    %344 = arith.muli %3, %343 : vector<16x128xi32>
    %c96_i32_186 = arith.constant 96 : i32
    %345 = vector.broadcast %c96_i32_186 : i32 to vector<16x128xi32>
    %346 = arith.addi %345, %344 : vector<16x128xi32>
    %c1_i32_187 = arith.constant 1 : i32
    %347 = vector.broadcast %c1_i32_187 : i32 to vector<16x128xi32>
    %348 = arith.addi %346, %347 : vector<16x128xi32>
    %349 = arith.cmpi eq, %4, %348 : vector<16x128xi32>
    %cst_188 = arith.constant 1.000000e+00 : f32
    %cst_189 = arith.constant 0.000000e+00 : f32
    %350 = vector.broadcast %cst_188 : f32 to vector<16x128xf32>
    %351 = vector.broadcast %cst_189 : f32 to vector<16x128xf32>
    %352 = arith.select %349, %350, %351 : vector<16x128xi1>, vector<16x128xf32>
    %cst_190 = arith.constant dense<0.000000e+00> : vector<8x128xf32>
    %353 = tpu.matmul %342, %352, %cst_190 {dimension_numbers = #tpu.dot_dimension_numbers<[1], [0], [0], [1], [0, 0, 1, 1], [], []>} : vector<8x16xf32>, vector<16x128xf32>, vector<8x128xf32> -> vector<8x128xf32>
    %354 = arith.addf %341, %353 : vector<8x128xf32>
    %c1_191 = arith.constant 1 : index
    %c0_192 = arith.constant 0 : index
    %c0_193 = arith.constant 0 : index
    %355 = vector.load %arg3[%c1_191, %c0_192, %c0_193] : memref<2x32x128xf32, #tpu.memory_space<vmem>>, vector<1x8x128xf32>
    %356 = vector.shape_cast %355 : vector<1x8x128xf32> to vector<8x128xf32>
    %357 = vector.shape_cast %354 : vector<8x128xf32> to vector<1x8x128xf32>
    tpu.vector_store %arg3[%c1_191, %c0_192, %c0_193], %357 {strides = array<i32>} : memref<2x32x128xf32, #tpu.memory_space<vmem>>, vector<1x8x128xf32>,
    %c1_194 = arith.constant 1 : index
    %c8_195 = arith.constant 8 : index
    %c0_196 = arith.constant 0 : index
    %358 = vector.load %arg3[%c1_194, %c8_195, %c0_196] : memref<2x32x128xf32, #tpu.memory_space<vmem>>, vector<1x8x128xf32>
    %359 = vector.shape_cast %358 : vector<1x8x128xf32> to vector<8x128xf32>
    %360 = vector.shape_cast %354 : vector<8x128xf32> to vector<1x8x128xf32>
    tpu.vector_store %arg3[%c1_194, %c8_195, %c0_196], %360 {strides = array<i32>} : memref<2x32x128xf32, #tpu.memory_space<vmem>>, vector<1x8x128xf32>,
    %c1_197 = arith.constant 1 : index
    %c16_198 = arith.constant 16 : index
    %c0_199 = arith.constant 0 : index
    %361 = vector.load %arg3[%c1_197, %c16_198, %c0_199] : memref<2x32x128xf32, #tpu.memory_space<vmem>>, vector<1x8x128xf32>
    %362 = vector.shape_cast %361 : vector<1x8x128xf32> to vector<8x128xf32>
    %363 = vector.shape_cast %354 : vector<8x128xf32> to vector<1x8x128xf32>
    tpu.vector_store %arg3[%c1_197, %c16_198, %c0_199], %363 {strides = array<i32>} : memref<2x32x128xf32, #tpu.memory_space<vmem>>, vector<1x8x128xf32>,
    %c1_200 = arith.constant 1 : index
    %c24_201 = arith.constant 24 : index
    %c0_202 = arith.constant 0 : index
    %364 = vector.load %arg3[%c1_200, %c24_201, %c0_202] : memref<2x32x128xf32, #tpu.memory_space<vmem>>, vector<1x8x128xf32>
    %365 = vector.shape_cast %364 : vector<1x8x128xf32> to vector<8x128xf32>
    %366 = vector.shape_cast %354 : vector<8x128xf32> to vector<1x8x128xf32>
    tpu.vector_store %arg3[%c1_200, %c24_201, %c0_202], %366 {strides = array<i32>} : memref<2x32x128xf32, #tpu.memory_space<vmem>>, vector<1x8x128xf32>,
    return
  }
  func.func @transform_0(%arg0: i32) -> i32 {
    %c0_i32 = arith.constant 0 : i32
    %c0_i32_0 = arith.constant 0 : i32
    return %c0_i32 : i32
  }
  func.func @transform_1(%arg0: i32) -> (i32, i32, i32, i32) {
    %c0_i32 = arith.constant 0 : i32
    %c0_i32_0 = arith.constant 0 : i32
    %c0_i32_1 = arith.constant 0 : i32
    %c0_i32_2 = arith.constant 0 : i32
    %c0_i32_3 = arith.constant 0 : i32
    return %c0_i32, %c0_i32_0, %c0_i32_1, %c0_i32_2 : i32, i32, i32, i32
  }
  func.func @transform_2(%arg0: i32) -> (i32, i32, i32) {
    %c0_i32 = arith.constant 0 : i32
    %c0_i32_0 = arith.constant 0 : i32
    %c0_i32_1 = arith.constant 0 : i32
    %c0_i32_2 = arith.constant 0 : i32
    return %c0_i32, %c0_i32_0, %c0_i32_1 : i32, i32, i32
  }
}

</mosaic_0001>

<llo_original>
// kernel: tpu_custom_call.1
$region0: #{tpu_custom_call.1}
  #allocation0 [shape = 'u32[]', space=smem, size = 0x4, offset = 0x4, fixed_abs, tag = 'smem constant byte address 0x4 - core index']
  #allocation1 [shape = 'u32[144,128]{1,0:T(1,128)}', space=vmem, size = 0x12000, scoped, tag = 'internal scratch']
  #allocation2 [shape = 'f32[1]{0:T(128)S(6)}', space=smem, size = 0x200, scoped, tag = 'scoped memory for tpu_custom_call.1']
  %s0 = inlined_call_operand.<no memory space> [shape: f32[1], index: 0, kind: input, shape index: {}]
  %s1 = inlined_call_operand.hbm [shape: f32[2,4,16,16], index: 1, kind: input, shape index: {}]
  %s2 = inlined_call_operand.hbm [shape: f32[2,32,128], index: 2, kind: output, shape index: {}]
  %s3 = sld [smem:[#allocation0]]
  $region22: #{tpu_custom_call.1} parent=0
    _
  %s5 = ssub.s32 1, %s3
  %s6 = scalar_select 0, %s5, %s3
  %7 = sst [smem:[#allocation2]] %s0
  $region1: #{tpu_custom_call.1} parent=0
    #allocation3 [shape = 'u8[65536]{0}', space=vmem, size = 0x10000, scoped, tag = 'input window, operand 1, single buffered']
    #allocation4 [shape = 's32[1]{0}', space=sflag, size = 0x4, scoped, tag = 'scoped memory for tpu_custom_call.1']
    #allocation5 [shape = 's32[1]{0}', space=sflag, size = 0x4, scoped, tag = 'scoped memory for tpu_custom_call.1']
    #allocation6 [shape = 'u8[32768]{0}', space=vmem, size = 0x8000, scoped, tag = 'output window, operand 0, single buffered']
    %8 = vsyncpa [#allocation4], 0
    %9 = vsyncpa [#allocation5], 0
    // Predicated region
    $region2: #{tpu_custom_call.1} parent=1 // pred_check
      _
    $region3: #{tpu_custom_call.1} parent=1 // pred_check_branch
      %11 = sbr.rel (0) target = $region5
    $region4: #{tpu_custom_call.1} parent=1 // pred_region
      _
    $region5: #{tpu_custom_call.1} parent=1 // pred_fallthru
      _
    // Predicated region
    $region6: #{tpu_custom_call.1} parent=1 // pred_check
      _
    $region7: #{tpu_custom_call.1} parent=1 // pred_check_branch
      %13 = sbr.rel (0) target = $region9
    $region8: #{tpu_custom_call.1} parent=1 // pred_region
      %s15 = ssub.s32 2048, 2048
      %16 = vsyncadd [#allocation4], %s15
      %s17 = sshll.u32 [#allocation3], 4
      %s18 = int_to_ptr.vmem [resolvable:$true] %s17
      %23 = dma.hbm_to_vmem [thread:$0]  %s1, 2048, %s18, [#allocation4], 128, 128, 8
    $region9: #{tpu_custom_call.1} parent=1 // pred_fallthru
      _
    // Predicated region
    $region10: #{tpu_custom_call.1} parent=1 // pred_check
      _
    $region11: #{tpu_custom_call.1} parent=1 // pred_check_branch
      %25 = sbr.rel (0) target = $region13
    $region12: #{tpu_custom_call.1} parent=1 // pred_region
      %26 = dma.done [#allocation4], 2048
    $region13: #{tpu_custom_call.1} parent=1 // pred_fallthru
      _
    %s27 = sld [smem:[#allocation2]]
    %v28 = vlaneseq
    %v29 = vshrl.u32 %v28, 7
    %v30 = vlaneseq
    %v31 = vand.u32 %v30, 127
    %v32 = vadd.s32 %v29, 8
    %v33 = vld [vmem:[#allocation3] sm:$0xff]
    %v34 = vld [vmem:[#allocation3 + $0x8] sm:$0xff]
    %v35 = vstv %s27
    %v36 = vmul.f32 %v33, %v35
    %v37 = vmul.f32 %v34, %v35
    %s38 = scalar_lea.vmem [#allocation3], 16
    %v39 = vld [vmem:[%s38] sm:$0xff]
    %v40 = vld [vmem:[%s38 + $0x8] sm:$0xff]
    %v41 = vmul.f32 %v39, %v35
    %v42 = vmul.f32 %v40, %v35
    %s43 = scalar_lea.vmem [#allocation3], 32
    %v44 = vld [vmem:[%s43] sm:$0xff]
    %v45 = vld [vmem:[%s43 + $0x8] sm:$0xff]
    %v46 = vmul.f32 %v44, %v35
    %v47 = vmul.f32 %v45, %v35
    %s48 = scalar_lea.vmem [#allocation3], 48
    %v49 = vld [vmem:[%s48] sm:$0xff]
    %v50 = vld [vmem:[%s48 + $0x8] sm:$0xff]
    %v51 = vmul.f32 %v49, %v35
    %v52 = vmul.f32 %v50, %v35
    %v53 = vmul.u32 %v29, 4
    %v54 = vmul.u32 %v31, 2
    %vm55 = vcmp.eq.s32.totalorder %v53, %v54
    %v56 = vsel %vm55, 1.0, 0.0
    %vm57 = vcmask 130048
    %v59 = vsel %vm57, %v56, 0
    %61 = vmatprep.subr.mxu0 0.0
    %62 = vmatpush1.msra.mxu0 %v36
    %63 = vmatprep.subr.mxu0 0.0
    %64 = vmatpush1.msra.mxu0 %v37
    %65 = vmatprep.subr.mxu0 0.0
    %66 = vmatpush1.msra.mxu0 0.0
    %67 = vmatprep.subr.mxu0 0.0
    %68 = vmatpush1.msra.mxu0 0.0
    %69 = vmatprep.subr.mxu0 0.0
    %70 = vmatpush1.msra.mxu0 0.0
    %71 = vmatprep.subr.mxu0 0.0
    %72 = vmatpush1.msra.mxu0 0.0
    %73 = vmatprep.subr.mxu0 0.0
    %74 = vmatpush1.msra.mxu0 0.0
    %75 = vmatprep.subr.mxu0 0.0
    %76 = vmatpush1.msra.mxu0 0.0
    %77 = vmatprep.subr.mxu0 0.0
    %78 = vmatpush1.msra.mxu0 0.0
    %79 = vmatprep.subr.mxu0 0.0
    %80 = vmatpush1.msra.mxu0 0.0
    %81 = vmatprep.subr.mxu0 0.0
    %82 = vmatpush1.msra.mxu0 0.0
    %83 = vmatprep.subr.mxu0 0.0
    %84 = vmatpush1.msra.mxu0 0.0
    %85 = vmatprep.subr.mxu0 0.0
    %86 = vmatpush1.msra.mxu0 0.0
    %87 = vmatprep.subr.mxu0 0.0
    %88 = vmatpush1.msra.mxu0 0.0
    %89 = vmatprep.subr.mxu0 0.0
    %90 = vmatpush1.msra.mxu0 0.0
    %91 = vmatprep.subr.mxu0 0.0
    %92 = vmatpush1.msra.mxu0 0.0
    %93 = vmatprep.subr.mxu0 0.0
    %94 = vmatpush1.msra.mxu0 0.0
    %95 = vmatprep.subr.mxu0 0.0
    %96 = vmatpush1.msra.mxu0 0.0
    %97 = vmatprep.subr.mxu0 0.0
    %98 = vmatpush1.msra.mxu0 0.0
    %99 = vmatprep.subr.mxu0 0.0
    %100 = vmatpush1.msra.mxu0 0.0
    %101 = vmatprep.subr.mxu0 0.0
    %102 = vmatpush1.msra.mxu0 0.0
    %103 = vmatprep.subr.mxu0 0.0
    %104 = vmatpush1.msra.mxu0 0.0
    %105 = vmatprep.subr.mxu0 0.0
    %106 = vmatpush1.msra.mxu0 0.0
    %107 = vmatprep.subr.mxu0 0.0
    %108 = vmatpush1.msra.mxu0 0.0
    %109 = vmatprep.subr.mxu0 0.0
    %110 = vmatpush1.msra.mxu0 0.0
    %111 = vmatprep.subr.mxu0 0.0
    %112 = vmatpush1.msra.mxu0 0.0
    %113 = vmatprep.subr.mxu0 0.0
    %114 = vmatpush1.msra.mxu0 0.0
    %115 = vmatprep.subr.mxu0 0.0
    %116 = vmatpush1.msra.mxu0 0.0
    %117 = vmatprep.subr.mxu0 0.0
    %118 = vmatpush1.msra.mxu0 0.0
    %119 = vmatprep.subr.mxu0 0.0
    %120 = vmatpush1.msra.mxu0 0.0
    %121 = vmatprep.subr.mxu0 0.0
    %122 = vmatpush1.msra.mxu0 0.0
    %123 = vmatprep.subr.mxu0 0.0
    %124 = vmatpush1.msra.mxu0 0.0
    %125 = vmatprep.mubr.f32.mxu0 0.0
    %126 = vmatmul.mubr.f32.gmra.mrb[0].mxu0 %v59
    %v127 = vpop.f32.mrb[0].mxu0
    %v128 = vadd.f32 0.0, %v127
    %v129 = vpop.f32.mrb[0].mxu0
    %130 = vdwg.mxu0
    %v131 = vmul.u32 %v29, 2
    %v132 = vmul.u32 %v32, 2
    %vm133 = vcmp.eq.s32.totalorder %v31, %v131
    %vm134 = vcmp.eq.s32.totalorder %v31, %v132
    %v135 = vsel %vm133, 1.0, 0.0
    %v136 = vsel %vm134, 1.0, 0.0
    %137 = vmatprep.subr.mxu0 0.0
    %138 = vmatpush1.msra.mxu0 %v41
    %139 = vmatprep.subr.mxu0 0.0
    %140 = vmatpush1.msra.mxu0 %v42
    %141 = vmatprep.subr.mxu0 0.0
    %142 = vmatpush1.msra.mxu0 0.0
    %143 = vmatprep.subr.mxu0 0.0
    %144 = vmatpush1.msra.mxu0 0.0
    %145 = vmatprep.subr.mxu0 0.0
    %146 = vmatpush1.msra.mxu0 0.0
    %147 = vmatprep.subr.mxu0 0.0
    %148 = vmatpush1.msra.mxu0 0.0
    %149 = vmatprep.subr.mxu0 0.0
    %150 = vmatpush1.msra.mxu0 0.0
    %151 = vmatprep.subr.mxu0 0.0
    %152 = vmatpush1.msra.mxu0 0.0
    %153 = vmatprep.subr.mxu0 0.0
    %154 = vmatpush1.msra.mxu0 0.0
    %155 = vmatprep.subr.mxu0 0.0
    %156 = vmatpush1.msra.mxu0 0.0
    %157 = vmatprep.subr.mxu0 0.0
    %158 = vmatpush1.msra.mxu0 0.0
    %159 = vmatprep.subr.mxu0 0.0
    %160 = vmatpush1.msra.mxu0 0.0
    %161 = vmatprep.subr.mxu0 0.0
    %162 = vmatpush1.msra.mxu0 0.0
    %163 = vmatprep.subr.mxu0 0.0
    %164 = vmatpush1.msra.mxu0 0.0
    %165 = vmatprep.subr.mxu0 0.0
    %166 = vmatpush1.msra.mxu0 0.0
    %167 = vmatprep.subr.mxu0 0.0
    %168 = vmatpush1.msra.mxu0 0.0
    %169 = vmatprep.subr.mxu0 0.0
    %170 = vmatpush1.msra.mxu0 0.0
    %171 = vmatprep.subr.mxu0 0.0
    %172 = vmatpush1.msra.mxu0 0.0
    %173 = vmatprep.subr.mxu0 0.0
    %174 = vmatpush1.msra.mxu0 0.0
    %175 = vmatprep.subr.mxu0 0.0
    %176 = vmatpush1.msra.mxu0 0.0
    %177 = vmatprep.subr.mxu0 0.0
    %178 = vmatpush1.msra.mxu0 0.0
    %179 = vmatprep.subr.mxu0 0.0
    %180 = vmatpush1.msra.mxu0 0.0
    %181 = vmatprep.subr.mxu0 0.0
    %182 = vmatpush1.msra.mxu0 0.0
    %183 = vmatprep.subr.mxu0 0.0
    %184 = vmatpush1.msra.mxu0 0.0
    %185 = vmatprep.subr.mxu0 0.0
    %186 = vmatpush1.msra.mxu0 0.0
    %187 = vmatprep.subr.mxu0 0.0
    %188 = vmatpush1.msra.mxu0 0.0
    %189 = vmatprep.subr.mxu0 0.0
    %190 = vmatpush1.msra.mxu0 0.0
    %191 = vmatprep.subr.mxu0 0.0
    %192 = vmatpush1.msra.mxu0 0.0
    %193 = vmatprep.subr.mxu0 0.0
    %194 = vmatpush1.msra.mxu0 0.0
    %195 = vmatprep.subr.mxu0 0.0
    %196 = vmatpush1.msra.mxu0 0.0
    %197 = vmatprep.subr.mxu0 0.0
    %198 = vmatpush1.msra.mxu0 0.0
    %199 = vmatprep.subr.mxu0 0.0
    %200 = vmatpush1.msra.mxu0 0.0
    %201 = vmatprep.mubr.f32.mxu0 0.0
    %202 = vmatmul.mubr.f32.gmra.mrb[0].mxu0 %v59
    %v203 = vpop.f32.mrb[0].mxu0
    %v204 = vadd.f32 0.0, %v203
    %v205 = vpop.f32.mrb[0].mxu0
    %206 = vdwg.mxu0
    %v207 = vadd.s32 %v131, 1
    %v208 = vadd.s32 %v132, 1
    %vm209 = vcmp.eq.s32.totalorder %v31, %v207
    %vm210 = vcmp.eq.s32.totalorder %v31, %v208
    %v211 = vsel %vm209, 1.0, 0.0
    %v212 = vsel %vm210, 1.0, 0.0
    %v214 = vsel %vm57, %v204, 0
    %216 = vmatprep.subr.mxu0 0.0
    %217 = vmatpush1.msra.mxu0 %v211
    %218 = vmatprep.subr.mxu0 0.0
    %219 = vmatpush1.msra.mxu0 %v212
    %220 = vmatprep.subr.mxu0 0.0
    %221 = vmatpush1.msra.mxu0 0.0
    %222 = vmatprep.subr.mxu0 0.0
    %223 = vmatpush1.msra.mxu0 0.0
    %224 = vmatprep.subr.mxu0 0.0
    %225 = vmatpush1.msra.mxu0 0.0
    %226 = vmatprep.subr.mxu0 0.0
    %227 = vmatpush1.msra.mxu0 0.0
    %228 = vmatprep.subr.mxu0 0.0
    %229 = vmatpush1.msra.mxu0 0.0
    %230 = vmatprep.subr.mxu0 0.0
    %231 = vmatpush1.msra.mxu0 0.0
    %232 = vmatprep.subr.mxu0 0.0
    %233 = vmatpush1.msra.mxu0 0.0
    %234 = vmatprep.subr.mxu0 0.0
    %235 = vmatpush1.msra.mxu0 0.0
    %236 = vmatprep.subr.mxu0 0.0
    %237 = vmatpush1.msra.mxu0 0.0
    %238 = vmatprep.subr.mxu0 0.0
    %239 = vmatpush1.msra.mxu0 0.0
    %240 = vmatprep.subr.mxu0 0.0
    %241 = vmatpush1.msra.mxu0 0.0
    %242 = vmatprep.subr.mxu0 0.0
    %243 = vmatpush1.msra.mxu0 0.0
    %244 = vmatprep.subr.mxu0 0.0
    %245 = vmatpush1.msra.mxu0 0.0
    %246 = vmatprep.subr.mxu0 0.0
    %247 = vmatpush1.msra.mxu0 0.0
    %248 = vmatprep.subr.mxu0 0.0
    %249 = vmatpush1.msra.mxu0 0.0
    %250 = vmatprep.subr.mxu0 0.0
    %251 = vmatpush1.msra.mxu0 0.0
    %252 = vmatprep.subr.mxu0 0.0
    %253 = vmatpush1.msra.mxu0 0.0
    %254 = vmatprep.subr.mxu0 0.0
    %255 = vmatpush1.msra.mxu0 0.0
    %256 = vmatprep.subr.mxu0 0.0
    %257 = vmatpush1.msra.mxu0 0.0
    %258 = vmatprep.subr.mxu0 0.0
    %259 = vmatpush1.msra.mxu0 0.0
    %260 = vmatprep.subr.mxu0 0.0
    %261 = vmatpush1.msra.mxu0 0.0
    %262 = vmatprep.subr.mxu0 0.0
    %263 = vmatpush1.msra.mxu0 0.0
    %264 = vmatprep.subr.mxu0 0.0
    %265 = vmatpush1.msra.mxu0 0.0
    %266 = vmatprep.subr.mxu0 0.0
    %267 = vmatpush1.msra.mxu0 0.0
    %268 = vmatprep.subr.mxu0 0.0
    %269 = vmatpush1.msra.mxu0 0.0
    %270 = vmatprep.subr.mxu0 0.0
    %271 = vmatpush1.msra.mxu0 0.0
    %272 = vmatprep.subr.mxu0 0.0
    %273 = vmatpush1.msra.mxu0 0.0
    %274 = vmatprep.subr.mxu0 0.0
    %275 = vmatpush1.msra.mxu0 0.0
    %276 = vmatprep.subr.mxu0 0.0
    %277 = vmatpush1.msra.mxu0 0.0
    %278 = vmatprep.subr.mxu0 0.0
    %279 = vmatpush1.msra.mxu0 0.0
    %280 = vmatprep.mubr.f32.mxu0 0.0
    %281 = vmatmul.mubr.f32.gmra.mrb[0].mxu0 %v214
    %v282 = vpop.f32.mrb[0].mxu0
    %v283 = vadd.f32 0.0, %v282
    %v284 = vpop.f32.mrb[0].mxu0
    %285 = vdwg.mxu0
    %v287 = vsel %vm57, %v128, 0
    %289 = vmatprep.subr.mxu0 0.0
    %290 = vmatpush1.msra.mxu0 %v135
    %291 = vmatprep.subr.mxu0 0.0
    %292 = vmatpush1.msra.mxu0 %v136
    %293 = vmatprep.subr.mxu0 0.0
    %294 = vmatpush1.msra.mxu0 0.0
    %295 = vmatprep.subr.mxu0 0.0
    %296 = vmatpush1.msra.mxu0 0.0
    %297 = vmatprep.subr.mxu0 0.0
    %298 = vmatpush1.msra.mxu0 0.0
    %299 = vmatprep.subr.mxu0 0.0
    %300 = vmatpush1.msra.mxu0 0.0
    %301 = vmatprep.subr.mxu0 0.0
    %302 = vmatpush1.msra.mxu0 0.0
    %303 = vmatprep.subr.mxu0 0.0
    %304 = vmatpush1.msra.mxu0 0.0
    %305 = vmatprep.subr.mxu0 0.0
    %306 = vmatpush1.msra.mxu0 0.0
    %307 = vmatprep.subr.mxu0 0.0
    %308 = vmatpush1.msra.mxu0 0.0
    %309 = vmatprep.subr.mxu0 0.0
    %310 = vmatpush1.msra.mxu0 0.0
    %311 = vmatprep.subr.mxu0 0.0
    %312 = vmatpush1.msra.mxu0 0.0
    %313 = vmatprep.subr.mxu0 0.0
    %314 = vmatpush1.msra.mxu0 0.0
    %315 = vmatprep.subr.mxu0 0.0
    %316 = vmatpush1.msra.mxu0 0.0
    %317 = vmatprep.subr.mxu0 0.0
    %318 = vmatpush1.msra.mxu0 0.0
    %319 = vmatprep.subr.mxu0 0.0
    %320 = vmatpush1.msra.mxu0 0.0
    %321 = vmatprep.subr.mxu0 0.0
    %322 = vmatpush1.msra.mxu0 0.0
    %323 = vmatprep.subr.mxu0 0.0
    %324 = vmatpush1.msra.mxu0 0.0
    %325 = vmatprep.subr.mxu0 0.0
    %326 = vmatpush1.msra.mxu0 0.0
    %327 = vmatprep.subr.mxu0 0.0
    %328 = vmatpush1.msra.mxu0 0.0
    %329 = vmatprep.subr.mxu0 0.0
    %330 = vmatpush1.msra.mxu0 0.0
    %331 = vmatprep.subr.mxu0 0.0
    %332 = vmatpush1.msra.mxu0 0.0
    %333 = vmatprep.subr.mxu0 0.0
    %334 = vmatpush1.msra.mxu0 0.0
    %335 = vmatprep.subr.mxu0 0.0
    %336 = vmatpush1.msra.mxu0 0.0
    %337 = vmatprep.subr.mxu0 0.0
    %338 = vmatpush1.msra.mxu0 0.0
    %339 = vmatprep.subr.mxu0 0.0
    %340 = vmatpush1.msra.mxu0 0.0
    %341 = vmatprep.subr.mxu0 0.0
    %342 = vmatpush1.msra.mxu0 0.0
    %343 = vmatprep.subr.mxu0 0.0
    %344 = vmatpush1.msra.mxu0 0.0
    %345 = vmatprep.subr.mxu0 0.0
    %346 = vmatpush1.msra.mxu0 0.0
    %347 = vmatprep.subr.mxu0 0.0
    %348 = vmatpush1.msra.mxu0 0.0
    %349 = vmatprep.subr.mxu0 0.0
    %350 = vmatpush1.msra.mxu0 0.0
    %351 = vmatprep.subr.mxu0 0.0
    %352 = vmatpush1.msra.mxu0 0.0
    %353 = vmatprep.mubr.f32.mxu0 0.0
    %354 = vmatmul.mubr.f32.gmra.mrb[0].mxu0 %v287
    %v355 = vpop.f32.mrb[0].mxu0
    %v356 = vadd.f32 %v283, %v355
    %v357 = vpop.f32.mrb[0].mxu0
    %358 = vdwg.mxu0
    %v359 = vadd.s32 %v53, 1
    %v360 = vadd.s32 %v54, 1
    %vm361 = vcmp.eq.s32.totalorder %v359, %v360
    %v362 = vsel %vm361, 1.0, 0.0
    %v364 = vsel %vm57, %v362, 0
    %366 = vmatprep.subr.mxu0 0.0
    %367 = vmatpush1.msra.mxu0 %v46
    %368 = vmatprep.subr.mxu0 0.0
    %369 = vmatpush1.msra.mxu0 %v47
    %370 = vmatprep.subr.mxu0 0.0
    %371 = vmatpush1.msra.mxu0 0.0
    %372 = vmatprep.subr.mxu0 0.0
    %373 = vmatpush1.msra.mxu0 0.0
    %374 = vmatprep.subr.mxu0 0.0
    %375 = vmatpush1.msra.mxu0 0.0
    %376 = vmatprep.subr.mxu0 0.0
    %377 = vmatpush1.msra.mxu0 0.0
    %378 = vmatprep.subr.mxu0 0.0
    %379 = vmatpush1.msra.mxu0 0.0
    %380 = vmatprep.subr.mxu0 0.0
    %381 = vmatpush1.msra.mxu0 0.0
    %382 = vmatprep.subr.mxu0 0.0
    %383 = vmatpush1.msra.mxu0 0.0
    %384 = vmatprep.subr.mxu0 0.0
    %385 = vmatpush1.msra.mxu0 0.0
    %386 = vmatprep.subr.mxu0 0.0
    %387 = vmatpush1.msra.mxu0 0.0
    %388 = vmatprep.subr.mxu0 0.0
    %389 = vmatpush1.msra.mxu0 0.0
    %390 = vmatprep.subr.mxu0 0.0
    %391 = vmatpush1.msra.mxu0 0.0
    %392 = vmatprep.subr.mxu0 0.0
    %393 = vmatpush1.msra.mxu0 0.0
    %394 = vmatprep.subr.mxu0 0.0
    %395 = vmatpush1.msra.mxu0 0.0
    %396 = vmatprep.subr.mxu0 0.0
    %397 = vmatpush1.msra.mxu0 0.0
    %398 = vmatprep.subr.mxu0 0.0
    %399 = vmatpush1.msra.mxu0 0.0
    %400 = vmatprep.subr.mxu0 0.0
    %401 = vmatpush1.msra.mxu0 0.0
    %402 = vmatprep.subr.mxu0 0.0
    %403 = vmatpush1.msra.mxu0 0.0
    %404 = vmatprep.subr.mxu0 0.0
    %405 = vmatpush1.msra.mxu0 0.0
    %406 = vmatprep.subr.mxu0 0.0
    %407 = vmatpush1.msra.mxu0 0.0
    %408 = vmatprep.subr.mxu0 0.0
    %409 = vmatpush1.msra.mxu0 0.0
    %410 = vmatprep.subr.mxu0 0.0
    %411 = vmatpush1.msra.mxu0 0.0
    %412 = vmatprep.subr.mxu0 0.0
    %413 = vmatpush1.msra.mxu0 0.0
    %414 = vmatprep.subr.mxu0 0.0
    %415 = vmatpush1.msra.mxu0 0.0
    %416 = vmatprep.subr.mxu0 0.0
    %417 = vmatpush1.msra.mxu0 0.0
    %418 = vmatprep.subr.mxu0 0.0
    %419 = vmatpush1.msra.mxu0 0.0
    %420 = vmatprep.subr.mxu0 0.0
    %421 = vmatpush1.msra.mxu0 0.0
    %422 = vmatprep.subr.mxu0 0.0
    %423 = vmatpush1.msra.mxu0 0.0
    %424 = vmatprep.subr.mxu0 0.0
    %425 = vmatpush1.msra.mxu0 0.0
    %426 = vmatprep.subr.mxu0 0.0
    %427 = vmatpush1.msra.mxu0 0.0
    %428 = vmatprep.subr.mxu0 0.0
    %429 = vmatpush1.msra.mxu0 0.0
    %430 = vmatprep.mubr.f32.mxu0 0.0
    %431 = vmatmul.mubr.f32.gmra.mrb[0].mxu0 %v364
    %v432 = vpop.f32.mrb[0].mxu0
    %v433 = vadd.f32 0.0, %v432
    %v434 = vpop.f32.mrb[0].mxu0
    %435 = vdwg.mxu0
    %v436 = vadd.s32 %v131, 32
    %v437 = vadd.s32 %v132, 32
    %vm438 = vcmp.eq.s32.totalorder %v31, %v436
    %vm439 = vcmp.eq.s32.totalorder %v31, %v437
    %v440 = vsel %vm438, 1.0, 0.0
    %v441 = vsel %vm439, 1.0, 0.0
    %v443 = vsel %vm57, %v433, 0
    %445 = vmatprep.subr.mxu0 0.0
    %446 = vmatpush1.msra.mxu0 %v440
    %447 = vmatprep.subr.mxu0 0.0
    %448 = vmatpush1.msra.mxu0 %v441
    %449 = vmatprep.subr.mxu0 0.0
    %450 = vmatpush1.msra.mxu0 0.0
    %451 = vmatprep.subr.mxu0 0.0
    %452 = vmatpush1.msra.mxu0 0.0
    %453 = vmatprep.subr.mxu0 0.0
    %454 = vmatpush1.msra.mxu0 0.0
    %455 = vmatprep.subr.mxu0 0.0
    %456 = vmatpush1.msra.mxu0 0.0
    %457 = vmatprep.subr.mxu0 0.0
    %458 = vmatpush1.msra.mxu0 0.0
    %459 = vmatprep.subr.mxu0 0.0
    %460 = vmatpush1.msra.mxu0 0.0
    %461 = vmatprep.subr.mxu0 0.0
    %462 = vmatpush1.msra.mxu0 0.0
    %463 = vmatprep.subr.mxu0 0.0
    %464 = vmatpush1.msra.mxu0 0.0
    %465 = vmatprep.subr.mxu0 0.0
    %466 = vmatpush1.msra.mxu0 0.0
    %467 = vmatprep.subr.mxu0 0.0
    %468 = vmatpush1.msra.mxu0 0.0
    %469 = vmatprep.subr.mxu0 0.0
    %470 = vmatpush1.msra.mxu0 0.0
    %471 = vmatprep.subr.mxu0 0.0
    %472 = vmatpush1.msra.mxu0 0.0
    %473 = vmatprep.subr.mxu0 0.0
    %474 = vmatpush1.msra.mxu0 0.0
    %475 = vmatprep.subr.mxu0 0.0
    %476 = vmatpush1.msra.mxu0 0.0
    %477 = vmatprep.subr.mxu0 0.0
    %478 = vmatpush1.msra.mxu0 0.0
    %479 = vmatprep.subr.mxu0 0.0
    %480 = vmatpush1.msra.mxu0 0.0
    %481 = vmatprep.subr.mxu0 0.0
    %482 = vmatpush1.msra.mxu0 0.0
    %483 = vmatprep.subr.mxu0 0.0
    %484 = vmatpush1.msra.mxu0 0.0
    %485 = vmatprep.subr.mxu0 0.0
    %486 = vmatpush1.msra.mxu0 0.0
    %487 = vmatprep.subr.mxu0 0.0
    %488 = vmatpush1.msra.mxu0 0.0
    %489 = vmatprep.subr.mxu0 0.0
    %490 = vmatpush1.msra.mxu0 0.0
    %491 = vmatprep.subr.mxu0 0.0
    %492 = vmatpush1.msra.mxu0 0.0
    %493 = vmatprep.subr.mxu0 0.0
    %494 = vmatpush1.msra.mxu0 0.0
    %495 = vmatprep.subr.mxu0 0.0
    %496 = vmatpush1.msra.mxu0 0.0
    %497 = vmatprep.subr.mxu0 0.0
    %498 = vmatpush1.msra.mxu0 0.0
    %499 = vmatprep.subr.mxu0 0.0
    %500 = vmatpush1.msra.mxu0 0.0
    %501 = vmatprep.subr.mxu0 0.0
    %502 = vmatpush1.msra.mxu0 0.0
    %503 = vmatprep.subr.mxu0 0.0
    %504 = vmatpush1.msra.mxu0 0.0
    %505 = vmatprep.subr.mxu0 0.0
    %506 = vmatpush1.msra.mxu0 0.0
    %507 = vmatprep.subr.mxu0 0.0
    %508 = vmatpush1.msra.mxu0 0.0
    %509 = vmatprep.mubr.f32.mxu0 0.0
    %510 = vmatmul.mubr.f32.gmra.mrb[0].mxu0 %v443
    %v511 = vpop.f32.mrb[0].mxu0
    %v512 = vadd.f32 0.0, %v511
    %v513 = vpop.f32.mrb[0].mxu0
    %514 = vdwg.mxu0
    %v515 = vadd.f32 %v356, %v512
    %516 = vmatprep.subr.mxu0 0.0
    %517 = vmatpush1.msra.mxu0 %v51
    %518 = vmatprep.subr.mxu0 0.0
    %519 = vmatpush1.msra.mxu0 %v52
    %520 = vmatprep.subr.mxu0 0.0
    %521 = vmatpush1.msra.mxu0 0.0
    %522 = vmatprep.subr.mxu0 0.0
    %523 = vmatpush1.msra.mxu0 0.0
    %524 = vmatprep.subr.mxu0 0.0
    %525 = vmatpush1.msra.mxu0 0.0
    %526 = vmatprep.subr.mxu0 0.0
    %527 = vmatpush1.msra.mxu0 0.0
    %528 = vmatprep.subr.mxu0 0.0
    %529 = vmatpush1.msra.mxu0 0.0
    %530 = vmatprep.subr.mxu0 0.0
    %531 = vmatpush1.msra.mxu0 0.0
    %532 = vmatprep.subr.mxu0 0.0
    %533 = vmatpush1.msra.mxu0 0.0
    %534 = vmatprep.subr.mxu0 0.0
    %535 = vmatpush1.msra.mxu0 0.0
    %536 = vmatprep.subr.mxu0 0.0
    %537 = vmatpush1.msra.mxu0 0.0
    %538 = vmatprep.subr.mxu0 0.0
    %539 = vmatpush1.msra.mxu0 0.0
    %540 = vmatprep.subr.mxu0 0.0
    %541 = vmatpush1.msra.mxu0 0.0
    %542 = vmatprep.subr.mxu0 0.0
    %543 = vmatpush1.msra.mxu0 0.0
    %544 = vmatprep.subr.mxu0 0.0
    %545 = vmatpush1.msra.mxu0 0.0
    %546 = vmatprep.subr.mxu0 0.0
    %547 = vmatpush1.msra.mxu0 0.0
    %548 = vmatprep.subr.mxu0 0.0
    %549 = vmatpush1.msra.mxu0 0.0
    %550 = vmatprep.subr.mxu0 0.0
    %551 = vmatpush1.msra.mxu0 0.0
    %552 = vmatprep.subr.mxu0 0.0
    %553 = vmatpush1.msra.mxu0 0.0
    %554 = vmatprep.subr.mxu0 0.0
    %555 = vmatpush1.msra.mxu0 0.0
    %556 = vmatprep.subr.mxu0 0.0
    %557 = vmatpush1.msra.mxu0 0.0
    %558 = vmatprep.subr.mxu0 0.0
    %559 = vmatpush1.msra.mxu0 0.0
    %560 = vmatprep.subr.mxu0 0.0
    %561 = vmatpush1.msra.mxu0 0.0
    %562 = vmatprep.subr.mxu0 0.0
    %563 = vmatpush1.msra.mxu0 0.0
    %564 = vmatprep.subr.mxu0 0.0
    %565 = vmatpush1.msra.mxu0 0.0
    %566 = vmatprep.subr.mxu0 0.0
    %567 = vmatpush1.msra.mxu0 0.0
    %568 = vmatprep.subr.mxu0 0.0
    %569 = vmatpush1.msra.mxu0 0.0
    %570 = vmatprep.subr.mxu0 0.0
    %571 = vmatpush1.msra.mxu0 0.0
    %572 = vmatprep.subr.mxu0 0.0
    %573 = vmatpush1.msra.mxu0 0.0
    %574 = vmatprep.subr.mxu0 0.0
    %575 = vmatpush1.msra.mxu0 0.0
    %576 = vmatprep.subr.mxu0 0.0
    %577 = vmatpush1.msra.mxu0 0.0
    %578 = vmatprep.subr.mxu0 0.0
    %579 = vmatpush1.msra.mxu0 0.0
    %580 = vmatprep.mubr.f32.mxu0 0.0
    %581 = vmatmul.mubr.f32.gmra.mrb[0].mxu0 %v364
    %v582 = vpop.f32.mrb[0].mxu0
    %v583 = vadd.f32 0.0, %v582
    %v584 = vpop.f32.mrb[0].mxu0
    %585 = vdwg.mxu0
    %v586 = vadd.s32 %v436, 1
    %v587 = vadd.s32 %v437, 1
    %vm588 = vcmp.eq.s32.totalorder %v31, %v586
    %vm589 = vcmp.eq.s32.totalorder %v31, %v587
    %v590 = vsel %vm588, 1.0, 0.0
    %v591 = vsel %vm589, 1.0, 0.0
    %v593 = vsel %vm57, %v583, 0
    %595 = vmatprep.subr.mxu0 0.0
    %596 = vmatpush1.msra.mxu0 %v590
    %597 = vmatprep.subr.mxu0 0.0
    %598 = vmatpush1.msra.mxu0 %v591
    %599 = vmatprep.subr.mxu0 0.0
    %600 = vmatpush1.msra.mxu0 0.0
    %601 = vmatprep.subr.mxu0 0.0
    %602 = vmatpush1.msra.mxu0 0.0
    %603 = vmatprep.subr.mxu0 0.0
    %604 = vmatpush1.msra.mxu0 0.0
    %605 = vmatprep.subr.mxu0 0.0
    %606 = vmatpush1.msra.mxu0 0.0
    %607 = vmatprep.subr.mxu0 0.0
    %608 = vmatpush1.msra.mxu0 0.0
    %609 = vmatprep.subr.mxu0 0.0
    %610 = vmatpush1.msra.mxu0 0.0
    %611 = vmatprep.subr.mxu0 0.0
    %612 = vmatpush1.msra.mxu0 0.0
    %613 = vmatprep.subr.mxu0 0.0
    %614 = vmatpush1.msra.mxu0 0.0
    %615 = vmatprep.subr.mxu0 0.0
    %616 = vmatpush1.msra.mxu0 0.0
    %617 = vmatprep.subr.mxu0 0.0
    %618 = vmatpush1.msra.mxu0 0.0
    %619 = vmatprep.subr.mxu0 0.0
    %620 = vmatpush1.msra.mxu0 0.0
    %621 = vmatprep.subr.mxu0 0.0
    %622 = vmatpush1.msra.mxu0 0.0
    %623 = vmatprep.subr.mxu0 0.0
    %624 = vmatpush1.msra.mxu0 0.0
    %625 = vmatprep.subr.mxu0 0.0
    %626 = vmatpush1.msra.mxu0 0.0
    %627 = vmatprep.subr.mxu0 0.0
    %628 = vmatpush1.msra.mxu0 0.0
    %629 = vmatprep.subr.mxu0 0.0
    %630 = vmatpush1.msra.mxu0 0.0
    %631 = vmatprep.subr.mxu0 0.0
    %632 = vmatpush1.msra.mxu0 0.0
    %633 = vmatprep.subr.mxu0 0.0
    %634 = vmatpush1.msra.mxu0 0.0
    %635 = vmatprep.subr.mxu0 0.0
    %636 = vmatpush1.msra.mxu0 0.0
    %637 = vmatprep.subr.mxu0 0.0
    %638 = vmatpush1.msra.mxu0 0.0
    %639 = vmatprep.subr.mxu0 0.0
    %640 = vmatpush1.msra.mxu0 0.0
    %641 = vmatprep.subr.mxu0 0.0
    %642 = vmatpush1.msra.mxu0 0.0
    %643 = vmatprep.subr.mxu0 0.0
    %644 = vmatpush1.msra.mxu0 0.0
    %645 = vmatprep.subr.mxu0 0.0
    %646 = vmatpush1.msra.mxu0 0.0
    %647 = vmatprep.subr.mxu0 0.0
    %648 = vmatpush1.msra.mxu0 0.0
    %649 = vmatprep.subr.mxu0 0.0
    %650 = vmatpush1.msra.mxu0 0.0
    %651 = vmatprep.subr.mxu0 0.0
    %652 = vmatpush1.msra.mxu0 0.0
    %653 = vmatprep.subr.mxu0 0.0
    %654 = vmatpush1.msra.mxu0 0.0
    %655 = vmatprep.subr.mxu0 0.0
    %656 = vmatpush1.msra.mxu0 0.0
    %657 = vmatprep.subr.mxu0 0.0
    %658 = vmatpush1.msra.mxu0 0.0
    %659 = vmatprep.mubr.f32.mxu0 0.0
    %660 = vmatmul.mubr.f32.gmra.mrb[0].mxu0 %v593
    %v661 = vpop.f32.mrb[0].mxu0
    %v662 = vadd.f32 0.0, %v661
    %v663 = vpop.f32.mrb[0].mxu0
    %664 = vdwg.mxu0
    %v665 = vadd.f32 %v515, %v662
    %v666 = vadd.s32 %v53, 2
    %vm667 = vcmp.eq.s32.totalorder %v666, %v54
    %v668 = vsel %vm667, 1.0, 0.0
    %v670 = vsel %vm57, %v668, 0
    %672 = vmatprep.subr.mxu0 0.0
    %673 = vmatpush1.msra.mxu0 %v36
    %674 = vmatprep.subr.mxu0 0.0
    %675 = vmatpush1.msra.mxu0 %v37
    %676 = vmatprep.subr.mxu0 0.0
    %677 = vmatpush1.msra.mxu0 0.0
    %678 = vmatprep.subr.mxu0 0.0
    %679 = vmatpush1.msra.mxu0 0.0
    %680 = vmatprep.subr.mxu0 0.0
    %681 = vmatpush1.msra.mxu0 0.0
    %682 = vmatprep.subr.mxu0 0.0
    %683 = vmatpush1.msra.mxu0 0.0
    %684 = vmatprep.subr.mxu0 0.0
    %685 = vmatpush1.msra.mxu0 0.0
    %686 = vmatprep.subr.mxu0 0.0
    %687 = vmatpush1.msra.mxu0 0.0
    %688 = vmatprep.subr.mxu0 0.0
    %689 = vmatpush1.msra.mxu0 0.0
    %690 = vmatprep.subr.mxu0 0.0
    %691 = vmatpush1.msra.mxu0 0.0
    %692 = vmatprep.subr.mxu0 0.0
    %693 = vmatpush1.msra.mxu0 0.0
    %694 = vmatprep.subr.mxu0 0.0
    %695 = vmatpush1.msra.mxu0 0.0
    %696 = vmatprep.subr.mxu0 0.0
    %697 = vmatpush1.msra.mxu0 0.0
    %698 = vmatprep.subr.mxu0 0.0
    %699 = vmatpush1.msra.mxu0 0.0
    %700 = vmatprep.subr.mxu0 0.0
    %701 = vmatpush1.msra.mxu0 0.0
    %702 = vmatprep.subr.mxu0 0.0
    %703 = vmatpush1.msra.mxu0 0.0
    %704 = vmatprep.subr.mxu0 0.0
    %705 = vmatpush1.msra.mxu0 0.0
    %706 = vmatprep.subr.mxu0 0.0
    %707 = vmatpush1.msra.mxu0 0.0
    %708 = vmatprep.subr.mxu0 0.0
    %709 = vmatpush1.msra.mxu0 0.0
    %710 = vmatprep.subr.mxu0 0.0
    %711 = vmatpush1.msra.mxu0 0.0
    %712 = vmatprep.subr.mxu0 0.0
    %713 = vmatpush1.msra.mxu0 0.0
    %714 = vmatprep.subr.mxu0 0.0
    %715 = vmatpush1.msra.mxu0 0.0
    %716 = vmatprep.subr.mxu0 0.0
    %717 = vmatpush1.msra.mxu0 0.0
    %718 = vmatprep.subr.mxu0 0.0
    %719 = vmatpush1.msra.mxu0 0.0
    %720 = vmatprep.subr.mxu0 0.0
    %721 = vmatpush1.msra.mxu0 0.0
    %722 = vmatprep.subr.mxu0 0.0
    %723 = vmatpush1.msra.mxu0 0.0
    %724 = vmatprep.subr.mxu0 0.0
    %725 = vmatpush1.msra.mxu0 0.0
    %726 = vmatprep.subr.mxu0 0.0
    %727 = vmatpush1.msra.mxu0 0.0
    %728 = vmatprep.subr.mxu0 0.0
    %729 = vmatpush1.msra.mxu0 0.0
    %730 = vmatprep.subr.mxu0 0.0
    %731 = vmatpush1.msra.mxu0 0.0
    %732 = vmatprep.subr.mxu0 0.0
    %733 = vmatpush1.msra.mxu0 0.0
    %734 = vmatprep.subr.mxu0 0.0
    %735 = vmatpush1.msra.mxu0 0.0
    %736 = vmatprep.mubr.f32.mxu0 0.0
    %737 = vmatmul.mubr.f32.gmra.mrb[0].mxu0 %v670
    %v738 = vpop.f32.mrb[0].mxu0
    %v739 = vadd.f32 0.0, %v738
    %v740 = vpop.f32.mrb[0].mxu0
    %741 = vdwg.mxu0
    %v742 = vadd.s32 %v131, 64
    %v743 = vadd.s32 %v132, 64
    %vm744 = vcmp.eq.s32.totalorder %v31, %v742
    %vm745 = vcmp.eq.s32.totalorder %v31, %v743
    %v746 = vsel %vm744, 1.0, 0.0
    %v747 = vsel %vm745, 1.0, 0.0
    %v749 = vsel %vm57, %v739, 0
    %751 = vmatprep.subr.mxu0 0.0
    %752 = vmatpush1.msra.mxu0 %v746
    %753 = vmatprep.subr.mxu0 0.0
    %754 = vmatpush1.msra.mxu0 %v747
    %755 = vmatprep.subr.mxu0 0.0
    %756 = vmatpush1.msra.mxu0 0.0
    %757 = vmatprep.subr.mxu0 0.0
    %758 = vmatpush1.msra.mxu0 0.0
    %759 = vmatprep.subr.mxu0 0.0
    %760 = vmatpush1.msra.mxu0 0.0
    %761 = vmatprep.subr.mxu0 0.0
    %762 = vmatpush1.msra.mxu0 0.0
    %763 = vmatprep.subr.mxu0 0.0
    %764 = vmatpush1.msra.mxu0 0.0
    %765 = vmatprep.subr.mxu0 0.0
    %766 = vmatpush1.msra.mxu0 0.0
    %767 = vmatprep.subr.mxu0 0.0
    %768 = vmatpush1.msra.mxu0 0.0
    %769 = vmatprep.subr.mxu0 0.0
    %770 = vmatpush1.msra.mxu0 0.0
    %771 = vmatprep.subr.mxu0 0.0
    %772 = vmatpush1.msra.mxu0 0.0
    %773 = vmatprep.subr.mxu0 0.0
    %774 = vmatpush1.msra.mxu0 0.0
    %775 = vmatprep.subr.mxu0 0.0
    %776 = vmatpush1.msra.mxu0 0.0
    %777 = vmatprep.subr.mxu0 0.0
    %778 = vmatpush1.msra.mxu0 0.0
    %779 = vmatprep.subr.mxu0 0.0
    %780 = vmatpush1.msra.mxu0 0.0
    %781 = vmatprep.subr.mxu0 0.0
    %782 = vmatpush1.msra.mxu0 0.0
    %783 = vmatprep.subr.mxu0 0.0
    %784 = vmatpush1.msra.mxu0 0.0
    %785 = vmatprep.subr.mxu0 0.0
    %786 = vmatpush1.msra.mxu0 0.0
    %787 = vmatprep.subr.mxu0 0.0
    %788 = vmatpush1.msra.mxu0 0.0
    %789 = vmatprep.subr.mxu0 0.0
    %790 = vmatpush1.msra.mxu0 0.0
    %791 = vmatprep.subr.mxu0 0.0
    %792 = vmatpush1.msra.mxu0 0.0
    %793 = vmatprep.subr.mxu0 0.0
    %794 = vmatpush1.msra.mxu0 0.0
    %795 = vmatprep.subr.mxu0 0.0
    %796 = vmatpush1.msra.mxu0 0.0
    %797 = vmatprep.subr.mxu0 0.0
    %798 = vmatpush1.msra.mxu0 0.0
    %799 = vmatprep.subr.mxu0 0.0
    %800 = vmatpush1.msra.mxu0 0.0
    %801 = vmatprep.subr.mxu0 0.0
    %802 = vmatpush1.msra.mxu0 0.0
    %803 = vmatprep.subr.mxu0 0.0
    %804 = vmatpush1.msra.mxu0 0.0
    %805 = vmatprep.subr.mxu0 0.0
    %806 = vmatpush1.msra.mxu0 0.0
    %807 = vmatprep.subr.mxu0 0.0
    %808 = vmatpush1.msra.mxu0 0.0
    %809 = vmatprep.subr.mxu0 0.0
    %810 = vmatpush1.msra.mxu0 0.0
    %811 = vmatprep.subr.mxu0 0.0
    %812 = vmatpush1.msra.mxu0 0.0
    %813 = vmatprep.subr.mxu0 0.0
    %814 = vmatpush1.msra.mxu0 0.0
    %815 = vmatprep.mubr.f32.mxu0 0.0
    %816 = vmatmul.mubr.f32.gmra.mrb[0].mxu0 %v749
    %v817 = vpop.f32.mrb[0].mxu0
    %v818 = vadd.f32 0.0, %v817
    %v819 = vpop.f32.mrb[0].mxu0
    %820 = vdwg.mxu0
    %v821 = vadd.f32 %v665, %v818
    %822 = vmatprep.subr.mxu0 0.0
    %823 = vmatpush1.msra.mxu0 %v41
    %824 = vmatprep.subr.mxu0 0.0
    %825 = vmatpush1.msra.mxu0 %v42
    %826 = vmatprep.subr.mxu0 0.0
    %827 = vmatpush1.msra.mxu0 0.0
    %828 = vmatprep.subr.mxu0 0.0
    %829 = vmatpush1.msra.mxu0 0.0
    %830 = vmatprep.subr.mxu0 0.0
    %831 = vmatpush1.msra.mxu0 0.0
    %832 = vmatprep.subr.mxu0 0.0
    %833 = vmatpush1.msra.mxu0 0.0
    %834 = vmatprep.subr.mxu0 0.0
    %835 = vmatpush1.msra.mxu0 0.0
    %836 = vmatprep.subr.mxu0 0.0
    %837 = vmatpush1.msra.mxu0 0.0
    %838 = vmatprep.subr.mxu0 0.0
    %839 = vmatpush1.msra.mxu0 0.0
    %840 = vmatprep.subr.mxu0 0.0
    %841 = vmatpush1.msra.mxu0 0.0
    %842 = vmatprep.subr.mxu0 0.0
    %843 = vmatpush1.msra.mxu0 0.0
    %844 = vmatprep.subr.mxu0 0.0
    %845 = vmatpush1.msra.mxu0 0.0
    %846 = vmatprep.subr.mxu0 0.0
    %847 = vmatpush1.msra.mxu0 0.0
    %848 = vmatprep.subr.mxu0 0.0
    %849 = vmatpush1.msra.mxu0 0.0
    %850 = vmatprep.subr.mxu0 0.0
    %851 = vmatpush1.msra.mxu0 0.0
    %852 = vmatprep.subr.mxu0 0.0
    %853 = vmatpush1.msra.mxu0 0.0
    %854 = vmatprep.subr.mxu0 0.0
    %855 = vmatpush1.msra.mxu0 0.0
    %856 = vmatprep.subr.mxu0 0.0
    %857 = vmatpush1.msra.mxu0 0.0
    %858 = vmatprep.subr.mxu0 0.0
    %859 = vmatpush1.msra.mxu0 0.0
    %860 = vmatprep.subr.mxu0 0.0
    %861 = vmatpush1.msra.mxu0 0.0
    %862 = vmatprep.subr.mxu0 0.0
    %863 = vmatpush1.msra.mxu0 0.0
    %864 = vmatprep.subr.mxu0 0.0
    %865 = vmatpush1.msra.mxu0 0.0
    %866 = vmatprep.subr.mxu0 0.0
    %867 = vmatpush1.msra.mxu0 0.0
    %868 = vmatprep.subr.mxu0 0.0
    %869 = vmatpush1.msra.mxu0 0.0
    %870 = vmatprep.subr.mxu0 0.0
    %871 = vmatpush1.msra.mxu0 0.0
    %872 = vmatprep.subr.mxu0 0.0
    %873 = vmatpush1.msra.mxu0 0.0
    %874 = vmatprep.subr.mxu0 0.0
    %875 = vmatpush1.msra.mxu0 0.0
    %876 = vmatprep.subr.mxu0 0.0
    %877 = vmatpush1.msra.mxu0 0.0
    %878 = vmatprep.subr.mxu0 0.0
    %879 = vmatpush1.msra.mxu0 0.0
    %880 = vmatprep.subr.mxu0 0.0
    %881 = vmatpush1.msra.mxu0 0.0
    %882 = vmatprep.subr.mxu0 0.0
    %883 = vmatpush1.msra.mxu0 0.0
    %884 = vmatprep.subr.mxu0 0.0
    %885 = vmatpush1.msra.mxu0 0.0
    %886 = vmatprep.mubr.f32.mxu0 0.0
    %887 = vmatmul.mubr.f32.gmra.mrb[0].mxu0 %v670
    %v888 = vpop.f32.mrb[0].mxu0
    %v889 = vadd.f32 0.0, %v888
    %v890 = vpop.f32.mrb[0].mxu0
    %891 = vdwg.mxu0
    %v892 = vadd.s32 %v742, 1
    %v893 = vadd.s32 %v743, 1
    %vm894 = vcmp.eq.s32.totalorder %v31, %v892
    %vm895 = vcmp.eq.s32.totalorder %v31, %v893
    %v896 = vsel %vm894, 1.0, 0.0
    %v897 = vsel %vm895, 1.0, 0.0
    %v899 = vsel %vm57, %v889, 0
    %901 = vmatprep.subr.mxu0 0.0
    %902 = vmatpush1.msra.mxu0 %v896
    %903 = vmatprep.subr.mxu0 0.0
    %904 = vmatpush1.msra.mxu0 %v897
    %905 = vmatprep.subr.mxu0 0.0
    %906 = vmatpush1.msra.mxu0 0.0
    %907 = vmatprep.subr.mxu0 0.0
    %908 = vmatpush1.msra.mxu0 0.0
    %909 = vmatprep.subr.mxu0 0.0
    %910 = vmatpush1.msra.mxu0 0.0
    %911 = vmatprep.subr.mxu0 0.0
    %912 = vmatpush1.msra.mxu0 0.0
    %913 = vmatprep.subr.mxu0 0.0
    %914 = vmatpush1.msra.mxu0 0.0
    %915 = vmatprep.subr.mxu0 0.0
    %916 = vmatpush1.msra.mxu0 0.0
    %917 = vmatprep.subr.mxu0 0.0
    %918 = vmatpush1.msra.mxu0 0.0
    %919 = vmatprep.subr.mxu0 0.0
    %920 = vmatpush1.msra.mxu0 0.0
    %921 = vmatprep.subr.mxu0 0.0
    %922 = vmatpush1.msra.mxu0 0.0
    %923 = vmatprep.subr.mxu0 0.0
    %924 = vmatpush1.msra.mxu0 0.0
    %925 = vmatprep.subr.mxu0 0.0
    %926 = vmatpush1.msra.mxu0 0.0
    %927 = vmatprep.subr.mxu0 0.0
    %928 = vmatpush1.msra.mxu0 0.0
    %929 = vmatprep.subr.mxu0 0.0
    %930 = vmatpush1.msra.mxu0 0.0
    %931 = vmatprep.subr.mxu0 0.0
    %932 = vmatpush1.msra.mxu0 0.0
    %933 = vmatprep.subr.mxu0 0.0
    %934 = vmatpush1.msra.mxu0 0.0
    %935 = vmatprep.subr.mxu0 0.0
    %936 = vmatpush1.msra.mxu0 0.0
    %937 = vmatprep.subr.mxu0 0.0
    %938 = vmatpush1.msra.mxu0 0.0
    %939 = vmatprep.subr.mxu0 0.0
    %940 = vmatpush1.msra.mxu0 0.0
    %941 = vmatprep.subr.mxu0 0.0
    %942 = vmatpush1.msra.mxu0 0.0
    %943 = vmatprep.subr.mxu0 0.0
    %944 = vmatpush1.msra.mxu0 0.0
    %945 = vmatprep.subr.mxu0 0.0
    %946 = vmatpush1.msra.mxu0 0.0
    %947 = vmatprep.subr.mxu0 0.0
    %948 = vmatpush1.msra.mxu0 0.0
    %949 = vmatprep.subr.mxu0 0.0
    %950 = vmatpush1.msra.mxu0 0.0
    %951 = vmatprep.subr.mxu0 0.0
    %952 = vmatpush1.msra.mxu0 0.0
    %953 = vmatprep.subr.mxu0 0.0
    %954 = vmatpush1.msra.mxu0 0.0
    %955 = vmatprep.subr.mxu0 0.0
    %956 = vmatpush1.msra.mxu0 0.0
    %957 = vmatprep.subr.mxu0 0.0
    %958 = vmatpush1.msra.mxu0 0.0
    %959 = vmatprep.subr.mxu0 0.0
    %960 = vmatpush1.msra.mxu0 0.0
    %961 = vmatprep.subr.mxu0 0.0
    %962 = vmatpush1.msra.mxu0 0.0
    %963 = vmatprep.subr.mxu0 0.0
    %964 = vmatpush1.msra.mxu0 0.0
    %965 = vmatprep.mubr.f32.mxu0 0.0
    %966 = vmatmul.mubr.f32.gmra.mrb[0].mxu0 %v899
    %v967 = vpop.f32.mrb[0].mxu0
    %v968 = vadd.f32 0.0, %v967
    %v969 = vpop.f32.mrb[0].mxu0
    %970 = vdwg.mxu0
    %v971 = vadd.f32 %v821, %v968
    %v972 = vadd.s32 %v53, 3
    %vm973 = vcmp.eq.s32.totalorder %v972, %v360
    %v974 = vsel %vm973, 1.0, 0.0
    %v976 = vsel %vm57, %v974, 0
    %978 = vmatprep.subr.mxu0 0.0
    %979 = vmatpush1.msra.mxu0 %v46
    %980 = vmatprep.subr.mxu0 0.0
    %981 = vmatpush1.msra.mxu0 %v47
    %982 = vmatprep.subr.mxu0 0.0
    %983 = vmatpush1.msra.mxu0 0.0
    %984 = vmatprep.subr.mxu0 0.0
    %985 = vmatpush1.msra.mxu0 0.0
    %986 = vmatprep.subr.mxu0 0.0
    %987 = vmatpush1.msra.mxu0 0.0
    %988 = vmatprep.subr.mxu0 0.0
    %989 = vmatpush1.msra.mxu0 0.0
    %990 = vmatprep.subr.mxu0 0.0
    %991 = vmatpush1.msra.mxu0 0.0
    %992 = vmatprep.subr.mxu0 0.0
    %993 = vmatpush1.msra.mxu0 0.0
    %994 = vmatprep.subr.mxu0 0.0
    %995 = vmatpush1.msra.mxu0 0.0
    %996 = vmatprep.subr.mxu0 0.0
    %997 = vmatpush1.msra.mxu0 0.0
    %998 = vmatprep.subr.mxu0 0.0
    %999 = vmatpush1.msra.mxu0 0.0
    %1000 = vmatprep.subr.mxu0 0.0
    %1001 = vmatpush1.msra.mxu0 0.0
    %1002 = vmatprep.subr.mxu0 0.0
    %1003 = vmatpush1.msra.mxu0 0.0
    %1004 = vmatprep.subr.mxu0 0.0
    %1005 = vmatpush1.msra.mxu0 0.0
    %1006 = vmatprep.subr.mxu0 0.0
    %1007 = vmatpush1.msra.mxu0 0.0
    %1008 = vmatprep.subr.mxu0 0.0
    %1009 = vmatpush1.msra.mxu0 0.0
    %1010 = vmatprep.subr.mxu0 0.0
    %1011 = vmatpush1.msra.mxu0 0.0
    %1012 = vmatprep.subr.mxu0 0.0
    %1013 = vmatpush1.msra.mxu0 0.0
    %1014 = vmatprep.subr.mxu0 0.0
    %1015 = vmatpush1.msra.mxu0 0.0
    %1016 = vmatprep.subr.mxu0 0.0
    %1017 = vmatpush1.msra.mxu0 0.0
    %1018 = vmatprep.subr.mxu0 0.0
    %1019 = vmatpush1.msra.mxu0 0.0
    %1020 = vmatprep.subr.mxu0 0.0
    %1021 = vmatpush1.msra.mxu0 0.0
    %1022 = vmatprep.subr.mxu0 0.0
    %1023 = vmatpush1.msra.mxu0 0.0
    %1024 = vmatprep.subr.mxu0 0.0
    %1025 = vmatpush1.msra.mxu0 0.0
    %1026 = vmatprep.subr.mxu0 0.0
    %1027 = vmatpush1.msra.mxu0 0.0
    %1028 = vmatprep.subr.mxu0 0.0
    %1029 = vmatpush1.msra.mxu0 0.0
    %1030 = vmatprep.subr.mxu0 0.0
    %1031 = vmatpush1.msra.mxu0 0.0
    %1032 = vmatprep.subr.mxu0 0.0
    %1033 = vmatpush1.msra.mxu0 0.0
    %1034 = vmatprep.subr.mxu0 0.0
    %1035 = vmatpush1.msra.mxu0 0.0
    %1036 = vmatprep.subr.mxu0 0.0
    %1037 = vmatpush1.msra.mxu0 0.0
    %1038 = vmatprep.subr.mxu0 0.0
    %1039 = vmatpush1.msra.mxu0 0.0
    %1040 = vmatprep.subr.mxu0 0.0
    %1041 = vmatpush1.msra.mxu0 0.0
    %1042 = vmatprep.mubr.f32.mxu0 0.0
    %1043 = vmatmul.mubr.f32.gmra.mrb[0].mxu0 %v976
    %v1044 = vpop.f32.mrb[0].mxu0
    %v1045 = vadd.f32 0.0, %v1044
    %v1046 = vpop.f32.mrb[0].mxu0
    %1047 = vdwg.mxu0
    %v1048 = vadd.s32 %v131, 96
    %v1049 = vadd.s32 %v132, 96
    %vm1050 = vcmp.eq.s32.totalorder %v31, %v1048
    %vm1051 = vcmp.eq.s32.totalorder %v31, %v1049
    %v1052 = vsel %vm1050, 1.0, 0.0
    %v1053 = vsel %vm1051, 1.0, 0.0
    %v1055 = vsel %vm57, %v1045, 0
    %1057 = vmatprep.subr.mxu0 0.0
    %1058 = vmatpush1.msra.mxu0 %v1052
    %1059 = vmatprep.subr.mxu0 0.0
    %1060 = vmatpush1.msra.mxu0 %v1053
    %1061 = vmatprep.subr.mxu0 0.0
    %1062 = vmatpush1.msra.mxu0 0.0
    %1063 = vmatprep.subr.mxu0 0.0
    %1064 = vmatpush1.msra.mxu0 0.0
    %1065 = vmatprep.subr.mxu0 0.0
    %1066 = vmatpush1.msra.mxu0 0.0
    %1067 = vmatprep.subr.mxu0 0.0
    %1068 = vmatpush1.msra.mxu0 0.0
    %1069 = vmatprep.subr.mxu0 0.0
    %1070 = vmatpush1.msra.mxu0 0.0
    %1071 = vmatprep.subr.mxu0 0.0
    %1072 = vmatpush1.msra.mxu0 0.0
    %1073 = vmatprep.subr.mxu0 0.0
    %1074 = vmatpush1.msra.mxu0 0.0
    %1075 = vmatprep.subr.mxu0 0.0
    %1076 = vmatpush1.msra.mxu0 0.0
    %1077 = vmatprep.subr.mxu0 0.0
    %1078 = vmatpush1.msra.mxu0 0.0
    %1079 = vmatprep.subr.mxu0 0.0
    %1080 = vmatpush1.msra.mxu0 0.0
    %1081 = vmatprep.subr.mxu0 0.0
    %1082 = vmatpush1.msra.mxu0 0.0
    %1083 = vmatprep.subr.mxu0 0.0
    %1084 = vmatpush1.msra.mxu0 0.0
    %1085 = vmatprep.subr.mxu0 0.0
    %1086 = vmatpush1.msra.mxu0 0.0
    %1087 = vmatprep.subr.mxu0 0.0
    %1088 = vmatpush1.msra.mxu0 0.0
    %1089 = vmatprep.subr.mxu0 0.0
    %1090 = vmatpush1.msra.mxu0 0.0
    %1091 = vmatprep.subr.mxu0 0.0
    %1092 = vmatpush1.msra.mxu0 0.0
    %1093 = vmatprep.subr.mxu0 0.0
    %1094 = vmatpush1.msra.mxu0 0.0
    %1095 = vmatprep.subr.mxu0 0.0
    %1096 = vmatpush1.msra.mxu0 0.0
    %1097 = vmatprep.subr.mxu0 0.0
    %1098 = vmatpush1.msra.mxu0 0.0
    %1099 = vmatprep.subr.mxu0 0.0
    %1100 = vmatpush1.msra.mxu0 0.0
    %1101 = vmatprep.subr.mxu0 0.0
    %1102 = vmatpush1.msra.mxu0 0.0
    %1103 = vmatprep.subr.mxu0 0.0
    %1104 = vmatpush1.msra.mxu0 0.0
    %1105 = vmatprep.subr.mxu0 0.0
    %1106 = vmatpush1.msra.mxu0 0.0
    %1107 = vmatprep.subr.mxu0 0.0
    %1108 = vmatpush1.msra.mxu0 0.0
    %1109 = vmatprep.subr.mxu0 0.0
    %1110 = vmatpush1.msra.mxu0 0.0
    %1111 = vmatprep.subr.mxu0 0.0
    %1112 = vmatpush1.msra.mxu0 0.0
    %1113 = vmatprep.subr.mxu0 0.0
    %1114 = vmatpush1.msra.mxu0 0.0
    %1115 = vmatprep.subr.mxu0 0.0
    %1116 = vmatpush1.msra.mxu0 0.0
    %1117 = vmatprep.subr.mxu0 0.0
    %1118 = vmatpush1.msra.mxu0 0.0
    %1119 = vmatprep.subr.mxu0 0.0
    %1120 = vmatpush1.msra.mxu0 0.0
    %1121 = vmatprep.mubr.f32.mxu0 0.0
    %1122 = vmatmul.mubr.f32.gmra.mrb[0].mxu0 %v1055
    %v1123 = vpop.f32.mrb[0].mxu0
    %v1124 = vadd.f32 0.0, %v1123
    %v1125 = vpop.f32.mrb[0].mxu0
    %1126 = vdwg.mxu0
    %v1127 = vadd.f32 %v971, %v1124
    %1128 = vmatprep.subr.mxu0 0.0
    %1129 = vmatpush1.msra.mxu0 %v51
    %1130 = vmatprep.subr.mxu0 0.0
    %1131 = vmatpush1.msra.mxu0 %v52
    %1132 = vmatprep.subr.mxu0 0.0
    %1133 = vmatpush1.msra.mxu0 0.0
    %1134 = vmatprep.subr.mxu0 0.0
    %1135 = vmatpush1.msra.mxu0 0.0
    %1136 = vmatprep.subr.mxu0 0.0
    %1137 = vmatpush1.msra.mxu0 0.0
    %1138 = vmatprep.subr.mxu0 0.0
    %1139 = vmatpush1.msra.mxu0 0.0
    %1140 = vmatprep.subr.mxu0 0.0
    %1141 = vmatpush1.msra.mxu0 0.0
    %1142 = vmatprep.subr.mxu0 0.0
    %1143 = vmatpush1.msra.mxu0 0.0
    %1144 = vmatprep.subr.mxu0 0.0
    %1145 = vmatpush1.msra.mxu0 0.0
    %1146 = vmatprep.subr.mxu0 0.0
    %1147 = vmatpush1.msra.mxu0 0.0
    %1148 = vmatprep.subr.mxu0 0.0
    %1149 = vmatpush1.msra.mxu0 0.0
    %1150 = vmatprep.subr.mxu0 0.0
    %1151 = vmatpush1.msra.mxu0 0.0
    %1152 = vmatprep.subr.mxu0 0.0
    %1153 = vmatpush1.msra.mxu0 0.0
    %1154 = vmatprep.subr.mxu0 0.0
    %1155 = vmatpush1.msra.mxu0 0.0
    %1156 = vmatprep.subr.mxu0 0.0
    %1157 = vmatpush1.msra.mxu0 0.0
    %1158 = vmatprep.subr.mxu0 0.0
    %1159 = vmatpush1.msra.mxu0 0.0
    %1160 = vmatprep.subr.mxu0 0.0
    %1161 = vmatpush1.msra.mxu0 0.0
    %1162 = vmatprep.subr.mxu0 0.0
    %1163 = vmatpush1.msra.mxu0 0.0
    %1164 = vmatprep.subr.mxu0 0.0
    %1165 = vmatpush1.msra.mxu0 0.0
    %1166 = vmatprep.subr.mxu0 0.0
    %1167 = vmatpush1.msra.mxu0 0.0
    %1168 = vmatprep.subr.mxu0 0.0
    %1169 = vmatpush1.msra.mxu0 0.0
    %1170 = vmatprep.subr.mxu0 0.0
    %1171 = vmatpush1.msra.mxu0 0.0
    %1172 = vmatprep.subr.mxu0 0.0
    %1173 = vmatpush1.msra.mxu0 0.0
    %1174 = vmatprep.subr.mxu0 0.0
    %1175 = vmatpush1.msra.mxu0 0.0
    %1176 = vmatprep.subr.mxu0 0.0
    %1177 = vmatpush1.msra.mxu0 0.0
    %1178 = vmatprep.subr.mxu0 0.0
    %1179 = vmatpush1.msra.mxu0 0.0
    %1180 = vmatprep.subr.mxu0 0.0
    %1181 = vmatpush1.msra.mxu0 0.0
    %1182 = vmatprep.subr.mxu0 0.0
    %1183 = vmatpush1.msra.mxu0 0.0
    %1184 = vmatprep.subr.mxu0 0.0
    %1185 = vmatpush1.msra.mxu0 0.0
    %1186 = vmatprep.subr.mxu0 0.0
    %1187 = vmatpush1.msra.mxu0 0.0
    %1188 = vmatprep.subr.mxu0 0.0
    %1189 = vmatpush1.msra.mxu0 0.0
    %1190 = vmatprep.subr.mxu0 0.0
    %1191 = vmatpush1.msra.mxu0 0.0
    %1192 = vmatprep.mubr.f32.mxu0 0.0
    %1193 = vmatmul.mubr.f32.gmra.mrb[0].mxu0 %v976
    %v1194 = vpop.f32.mrb[0].mxu0
    %v1195 = vadd.f32 0.0, %v1194
    %v1196 = vpop.f32.mrb[0].mxu0
    %1197 = vdwg.mxu0
    %v1198 = vadd.s32 %v1048, 1
    %v1199 = vadd.s32 %v1049, 1
    %vm1200 = vcmp.eq.s32.totalorder %v31, %v1198
    %vm1201 = vcmp.eq.s32.totalorder %v31, %v1199
    %v1202 = vsel %vm1200, 1.0, 0.0
    %v1203 = vsel %vm1201, 1.0, 0.0
    %v1205 = vsel %vm57, %v1195, 0
    %1207 = vmatprep.subr.mxu0 0.0
    %1208 = vmatpush1.msra.mxu0 %v1202
    %1209 = vmatprep.subr.mxu0 0.0
    %1210 = vmatpush1.msra.mxu0 %v1203
    %1211 = vmatprep.subr.mxu0 0.0
    %1212 = vmatpush1.msra.mxu0 0.0
    %1213 = vmatprep.subr.mxu0 0.0
    %1214 = vmatpush1.msra.mxu0 0.0
    %1215 = vmatprep.subr.mxu0 0.0
    %1216 = vmatpush1.msra.mxu0 0.0
    %1217 = vmatprep.subr.mxu0 0.0
    %1218 = vmatpush1.msra.mxu0 0.0
    %1219 = vmatprep.subr.mxu0 0.0
    %1220 = vmatpush1.msra.mxu0 0.0
    %1221 = vmatprep.subr.mxu0 0.0
    %1222 = vmatpush1.msra.mxu0 0.0
    %1223 = vmatprep.subr.mxu0 0.0
    %1224 = vmatpush1.msra.mxu0 0.0
    %1225 = vmatprep.subr.mxu0 0.0
    %1226 = vmatpush1.msra.mxu0 0.0
    %1227 = vmatprep.subr.mxu0 0.0
    %1228 = vmatpush1.msra.mxu0 0.0
    %1229 = vmatprep.subr.mxu0 0.0
    %1230 = vmatpush1.msra.mxu0 0.0
    %1231 = vmatprep.subr.mxu0 0.0
    %1232 = vmatpush1.msra.mxu0 0.0
    %1233 = vmatprep.subr.mxu0 0.0
    %1234 = vmatpush1.msra.mxu0 0.0
    %1235 = vmatprep.subr.mxu0 0.0
    %1236 = vmatpush1.msra.mxu0 0.0
    %1237 = vmatprep.subr.mxu0 0.0
    %1238 = vmatpush1.msra.mxu0 0.0
    %1239 = vmatprep.subr.mxu0 0.0
    %1240 = vmatpush1.msra.mxu0 0.0
    %1241 = vmatprep.subr.mxu0 0.0
    %1242 = vmatpush1.msra.mxu0 0.0
    %1243 = vmatprep.subr.mxu0 0.0
    %1244 = vmatpush1.msra.mxu0 0.0
    %1245 = vmatprep.subr.mxu0 0.0
    %1246 = vmatpush1.msra.mxu0 0.0
    %1247 = vmatprep.subr.mxu0 0.0
    %1248 = vmatpush1.msra.mxu0 0.0
    %1249 = vmatprep.subr.mxu0 0.0
    %1250 = vmatpush1.msra.mxu0 0.0
    %1251 = vmatprep.subr.mxu0 0.0
    %1252 = vmatpush1.msra.mxu0 0.0
    %1253 = vmatprep.subr.mxu0 0.0
    %1254 = vmatpush1.msra.mxu0 0.0
    %1255 = vmatprep.subr.mxu0 0.0
    %1256 = vmatpush1.msra.mxu0 0.0
    %1257 = vmatprep.subr.mxu0 0.0
    %1258 = vmatpush1.msra.mxu0 0.0
    %1259 = vmatprep.subr.mxu0 0.0
    %1260 = vmatpush1.msra.mxu0 0.0
    %1261 = vmatprep.subr.mxu0 0.0
    %1262 = vmatpush1.msra.mxu0 0.0
    %1263 = vmatprep.subr.mxu0 0.0
    %1264 = vmatpush1.msra.mxu0 0.0
    %1265 = vmatprep.subr.mxu0 0.0
    %1266 = vmatpush1.msra.mxu0 0.0
    %1267 = vmatprep.subr.mxu0 0.0
    %1268 = vmatpush1.msra.mxu0 0.0
    %1269 = vmatprep.subr.mxu0 0.0
    %1270 = vmatpush1.msra.mxu0 0.0
    %1271 = vmatprep.mubr.f32.mxu0 0.0
    %1272 = vmatmul.mubr.f32.gmra.mrb[0].mxu0 %v1205
    %v1273 = vpop.f32.mrb[0].mxu0
    %v1274 = vadd.f32 0.0, %v1273
    %v1275 = vpop.f32.mrb[0].mxu0
    %1276 = vdwg.mxu0
    %v1277 = vadd.f32 %v1127, %v1274
    %1278 = vst [vmem:[#allocation6] sm:$0xff] %v1277
    %1279 = vst [vmem:[#allocation6 + $0x8] sm:$0xff] %v1277
    %1280 = vst [vmem:[#allocation6 + $0x10] sm:$0xff] %v1277
    %1281 = vst [vmem:[#allocation6 + $0x18] sm:$0xff] %v1277
    %s1282 = scalar_lea.vmem [#allocation3], 64
    %v1283 = vld [vmem:[%s1282] sm:$0xff]
    %v1284 = vld [vmem:[%s1282 + $0x8] sm:$0xff]
    %v1285 = vmul.f32 %v1283, %v35
    %v1286 = vmul.f32 %v1284, %v35
    %s1287 = scalar_lea.vmem [#allocation3], 80
    %v1288 = vld [vmem:[%s1287] sm:$0xff]
    %v1289 = vld [vmem:[%s1287 + $0x8] sm:$0xff]
    %v1290 = vmul.f32 %v1288, %v35
    %v1291 = vmul.f32 %v1289, %v35
    %s1292 = scalar_lea.vmem [#allocation3], 96
    %v1293 = vld [vmem:[%s1292] sm:$0xff]
    %v1294 = vld [vmem:[%s1292 + $0x8] sm:$0xff]
    %v1295 = vmul.f32 %v1293, %v35
    %v1296 = vmul.f32 %v1294, %v35
    %s1297 = scalar_lea.vmem [#allocation3], 112
    %v1298 = vld [vmem:[%s1297] sm:$0xff]
    %v1299 = vld [vmem:[%s1297 + $0x8] sm:$0xff]
    %v1300 = vmul.f32 %v1298, %v35
    %v1301 = vmul.f32 %v1299, %v35
    %1302 = vmatprep.subr.mxu0 0.0
    %1303 = vmatpush1.msra.mxu0 %v1285
    %1304 = vmatprep.subr.mxu0 0.0
    %1305 = vmatpush1.msra.mxu0 %v1286
    %1306 = vmatprep.subr.mxu0 0.0
    %1307 = vmatpush1.msra.mxu0 0.0
    %1308 = vmatprep.subr.mxu0 0.0
    %1309 = vmatpush1.msra.mxu0 0.0
    %1310 = vmatprep.subr.mxu0 0.0
    %1311 = vmatpush1.msra.mxu0 0.0
    %1312 = vmatprep.subr.mxu0 0.0
    %1313 = vmatpush1.msra.mxu0 0.0
    %1314 = vmatprep.subr.mxu0 0.0
    %1315 = vmatpush1.msra.mxu0 0.0
    %1316 = vmatprep.subr.mxu0 0.0
    %1317 = vmatpush1.msra.mxu0 0.0
    %1318 = vmatprep.subr.mxu0 0.0
    %1319 = vmatpush1.msra.mxu0 0.0
    %1320 = vmatprep.subr.mxu0 0.0
    %1321 = vmatpush1.msra.mxu0 0.0
    %1322 = vmatprep.subr.mxu0 0.0
    %1323 = vmatpush1.msra.mxu0 0.0
    %1324 = vmatprep.subr.mxu0 0.0
    %1325 = vmatpush1.msra.mxu0 0.0
    %1326 = vmatprep.subr.mxu0 0.0
    %1327 = vmatpush1.msra.mxu0 0.0
    %1328 = vmatprep.subr.mxu0 0.0
    %1329 = vmatpush1.msra.mxu0 0.0
    %1330 = vmatprep.subr.mxu0 0.0
    %1331 = vmatpush1.msra.mxu0 0.0
    %1332 = vmatprep.subr.mxu0 0.0
    %1333 = vmatpush1.msra.mxu0 0.0
    %1334 = vmatprep.subr.mxu0 0.0
    %1335 = vmatpush1.msra.mxu0 0.0
    %1336 = vmatprep.subr.mxu0 0.0
    %1337 = vmatpush1.msra.mxu0 0.0
    %1338 = vmatprep.subr.mxu0 0.0
    %1339 = vmatpush1.msra.mxu0 0.0
    %1340 = vmatprep.subr.mxu0 0.0
    %1341 = vmatpush1.msra.mxu0 0.0
    %1342 = vmatprep.subr.mxu0 0.0
    %1343 = vmatpush1.msra.mxu0 0.0
    %1344 = vmatprep.subr.mxu0 0.0
    %1345 = vmatpush1.msra.mxu0 0.0
    %1346 = vmatprep.subr.mxu0 0.0
    %1347 = vmatpush1.msra.mxu0 0.0
    %1348 = vmatprep.subr.mxu0 0.0
    %1349 = vmatpush1.msra.mxu0 0.0
    %1350 = vmatprep.subr.mxu0 0.0
    %1351 = vmatpush1.msra.mxu0 0.0
    %1352 = vmatprep.subr.mxu0 0.0
    %1353 = vmatpush1.msra.mxu0 0.0
    %1354 = vmatprep.subr.mxu0 0.0
    %1355 = vmatpush1.msra.mxu0 0.0
    %1356 = vmatprep.subr.mxu0 0.0
    %1357 = vmatpush1.msra.mxu0 0.0
    %1358 = vmatprep.subr.mxu0 0.0
    %1359 = vmatpush1.msra.mxu0 0.0
    %1360 = vmatprep.subr.mxu0 0.0
    %1361 = vmatpush1.msra.mxu0 0.0
    %1362 = vmatprep.subr.mxu0 0.0
    %1363 = vmatpush1.msra.mxu0 0.0
    %1364 = vmatprep.subr.mxu0 0.0
    %1365 = vmatpush1.msra.mxu0 0.0
    %1366 = vmatprep.mubr.f32.mxu0 0.0
    %1367 = vmatmul.mubr.f32.gmra.mrb[0].mxu0 %v59
    %v1368 = vpop.f32.mrb[0].mxu0
    %v1369 = vadd.f32 0.0, %v1368
    %v1370 = vpop.f32.mrb[0].mxu0
    %1371 = vdwg.mxu0
    %1372 = vmatprep.subr.mxu0 0.0
    %1373 = vmatpush1.msra.mxu0 %v1290
    %1374 = vmatprep.subr.mxu0 0.0
    %1375 = vmatpush1.msra.mxu0 %v1291
    %1376 = vmatprep.subr.mxu0 0.0
    %1377 = vmatpush1.msra.mxu0 0.0
    %1378 = vmatprep.subr.mxu0 0.0
    %1379 = vmatpush1.msra.mxu0 0.0
    %1380 = vmatprep.subr.mxu0 0.0
    %1381 = vmatpush1.msra.mxu0 0.0
    %1382 = vmatprep.subr.mxu0 0.0
    %1383 = vmatpush1.msra.mxu0 0.0
    %1384 = vmatprep.subr.mxu0 0.0
    %1385 = vmatpush1.msra.mxu0 0.0
    %1386 = vmatprep.subr.mxu0 0.0
    %1387 = vmatpush1.msra.mxu0 0.0
    %1388 = vmatprep.subr.mxu0 0.0
    %1389 = vmatpush1.msra.mxu0 0.0
    %1390 = vmatprep.subr.mxu0 0.0
    %1391 = vmatpush1.msra.mxu0 0.0
    %1392 = vmatprep.subr.mxu0 0.0
    %1393 = vmatpush1.msra.mxu0 0.0
    %1394 = vmatprep.subr.mxu0 0.0
    %1395 = vmatpush1.msra.mxu0 0.0
    %1396 = vmatprep.subr.mxu0 0.0
    %1397 = vmatpush1.msra.mxu0 0.0
    %1398 = vmatprep.subr.mxu0 0.0
    %1399 = vmatpush1.msra.mxu0 0.0
    %1400 = vmatprep.subr.mxu0 0.0
    %1401 = vmatpush1.msra.mxu0 0.0
    %1402 = vmatprep.subr.mxu0 0.0
    %1403 = vmatpush1.msra.mxu0 0.0
    %1404 = vmatprep.subr.mxu0 0.0
    %1405 = vmatpush1.msra.mxu0 0.0
    %1406 = vmatprep.subr.mxu0 0.0
    %1407 = vmatpush1.msra.mxu0 0.0
    %1408 = vmatprep.subr.mxu0 0.0
    %1409 = vmatpush1.msra.mxu0 0.0
    %1410 = vmatprep.subr.mxu0 0.0
    %1411 = vmatpush1.msra.mxu0 0.0
    %1412 = vmatprep.subr.mxu0 0.0
    %1413 = vmatpush1.msra.mxu0 0.0
    %1414 = vmatprep.subr.mxu0 0.0
    %1415 = vmatpush1.msra.mxu0 0.0
    %1416 = vmatprep.subr.mxu0 0.0
    %1417 = vmatpush1.msra.mxu0 0.0
    %1418 = vmatprep.subr.mxu0 0.0
    %1419 = vmatpush1.msra.mxu0 0.0
    %1420 = vmatprep.subr.mxu0 0.0
    %1421 = vmatpush1.msra.mxu0 0.0
    %1422 = vmatprep.subr.mxu0 0.0
    %1423 = vmatpush1.msra.mxu0 0.0
    %1424 = vmatprep.subr.mxu0 0.0
    %1425 = vmatpush1.msra.mxu0 0.0
    %1426 = vmatprep.subr.mxu0 0.0
    %1427 = vmatpush1.msra.mxu0 0.0
    %1428 = vmatprep.subr.mxu0 0.0
    %1429 = vmatpush1.msra.mxu0 0.0
    %1430 = vmatprep.subr.mxu0 0.0
    %1431 = vmatpush1.msra.mxu0 0.0
    %1432 = vmatprep.subr.mxu0 0.0
    %1433 = vmatpush1.msra.mxu0 0.0
    %1434 = vmatprep.subr.mxu0 0.0
    %1435 = vmatpush1.msra.mxu0 0.0
    %1436 = vmatprep.mubr.f32.mxu0 0.0
    %1437 = vmatmul.mubr.f32.gmra.mrb[0].mxu0 %v59
    %v1438 = vpop.f32.mrb[0].mxu0
    %v1439 = vadd.f32 0.0, %v1438
    %v1440 = vpop.f32.mrb[0].mxu0
    %1441 = vdwg.mxu0
    %v1443 = vsel %vm57, %v1439, 0
    %1445 = vmatprep.subr.mxu0 0.0
    %1446 = vmatpush1.msra.mxu0 %v211
    %1447 = vmatprep.subr.mxu0 0.0
    %1448 = vmatpush1.msra.mxu0 %v212
    %1449 = vmatprep.subr.mxu0 0.0
    %1450 = vmatpush1.msra.mxu0 0.0
    %1451 = vmatprep.subr.mxu0 0.0
    %1452 = vmatpush1.msra.mxu0 0.0
    %1453 = vmatprep.subr.mxu0 0.0
    %1454 = vmatpush1.msra.mxu0 0.0
    %1455 = vmatprep.subr.mxu0 0.0
    %1456 = vmatpush1.msra.mxu0 0.0
    %1457 = vmatprep.subr.mxu0 0.0
    %1458 = vmatpush1.msra.mxu0 0.0
    %1459 = vmatprep.subr.mxu0 0.0
    %1460 = vmatpush1.msra.mxu0 0.0
    %1461 = vmatprep.subr.mxu0 0.0
    %1462 = vmatpush1.msra.mxu0 0.0
    %1463 = vmatprep.subr.mxu0 0.0
    %1464 = vmatpush1.msra.mxu0 0.0
    %1465 = vmatprep.subr.mxu0 0.0
    %1466 = vmatpush1.msra.mxu0 0.0
    %1467 = vmatprep.subr.mxu0 0.0
    %1468 = vmatpush1.msra.mxu0 0.0
    %1469 = vmatprep.subr.mxu0 0.0
    %1470 = vmatpush1.msra.mxu0 0.0
    %1471 = vmatprep.subr.mxu0 0.0
    %1472 = vmatpush1.msra.mxu0 0.0
    %1473 = vmatprep.subr.mxu0 0.0
    %1474 = vmatpush1.msra.mxu0 0.0
    %1475 = vmatprep.subr.mxu0 0.0
    %1476 = vmatpush1.msra.mxu0 0.0
    %1477 = vmatprep.subr.mxu0 0.0
    %1478 = vmatpush1.msra.mxu0 0.0
    %1479 = vmatprep.subr.mxu0 0.0
    %1480 = vmatpush1.msra.mxu0 0.0
    %1481 = vmatprep.subr.mxu0 0.0
    %1482 = vmatpush1.msra.mxu0 0.0
    %1483 = vmatprep.subr.mxu0 0.0
    %1484 = vmatpush1.msra.mxu0 0.0
    %1485 = vmatprep.subr.mxu0 0.0
    %1486 = vmatpush1.msra.mxu0 0.0
    %1487 = vmatprep.subr.mxu0 0.0
    %1488 = vmatpush1.msra.mxu0 0.0
    %1489 = vmatprep.subr.mxu0 0.0
    %1490 = vmatpush1.msra.mxu0 0.0
    %1491 = vmatprep.subr.mxu0 0.0
    %1492 = vmatpush1.msra.mxu0 0.0
    %1493 = vmatprep.subr.mxu0 0.0
    %1494 = vmatpush1.msra.mxu0 0.0
    %1495 = vmatprep.subr.mxu0 0.0
    %1496 = vmatpush1.msra.mxu0 0.0
    %1497 = vmatprep.subr.mxu0 0.0
    %1498 = vmatpush1.msra.mxu0 0.0
    %1499 = vmatprep.subr.mxu0 0.0
    %1500 = vmatpush1.msra.mxu0 0.0
    %1501 = vmatprep.subr.mxu0 0.0
    %1502 = vmatpush1.msra.mxu0 0.0
    %1503 = vmatprep.subr.mxu0 0.0
    %1504 = vmatpush1.msra.mxu0 0.0
    %1505 = vmatprep.subr.mxu0 0.0
    %1506 = vmatpush1.msra.mxu0 0.0
    %1507 = vmatprep.subr.mxu0 0.0
    %1508 = vmatpush1.msra.mxu0 0.0
    %1509 = vmatprep.mubr.f32.mxu0 0.0
    %1510 = vmatmul.mubr.f32.gmra.mrb[0].mxu0 %v1443
    %v1511 = vpop.f32.mrb[0].mxu0
    %v1512 = vadd.f32 0.0, %v1511
    %v1513 = vpop.f32.mrb[0].mxu0
    %1514 = vdwg.mxu0
    %v1516 = vsel %vm57, %v1369, 0
    %1518 = vmatprep.subr.mxu0 0.0
    %1519 = vmatpush1.msra.mxu0 %v135
    %1520 = vmatprep.subr.mxu0 0.0
    %1521 = vmatpush1.msra.mxu0 %v136
    %1522 = vmatprep.subr.mxu0 0.0
    %1523 = vmatpush1.msra.mxu0 0.0
    %1524 = vmatprep.subr.mxu0 0.0
    %1525 = vmatpush1.msra.mxu0 0.0
    %1526 = vmatprep.subr.mxu0 0.0
    %1527 = vmatpush1.msra.mxu0 0.0
    %1528 = vmatprep.subr.mxu0 0.0
    %1529 = vmatpush1.msra.mxu0 0.0
    %1530 = vmatprep.subr.mxu0 0.0
    %1531 = vmatpush1.msra.mxu0 0.0
    %1532 = vmatprep.subr.mxu0 0.0
    %1533 = vmatpush1.msra.mxu0 0.0
    %1534 = vmatprep.subr.mxu0 0.0
    %1535 = vmatpush1.msra.mxu0 0.0
    %1536 = vmatprep.subr.mxu0 0.0
    %1537 = vmatpush1.msra.mxu0 0.0
    %1538 = vmatprep.subr.mxu0 0.0
    %1539 = vmatpush1.msra.mxu0 0.0
    %1540 = vmatprep.subr.mxu0 0.0
    %1541 = vmatpush1.msra.mxu0 0.0
    %1542 = vmatprep.subr.mxu0 0.0
    %1543 = vmatpush1.msra.mxu0 0.0
    %1544 = vmatprep.subr.mxu0 0.0
    %1545 = vmatpush1.msra.mxu0 0.0
    %1546 = vmatprep.subr.mxu0 0.0
    %1547 = vmatpush1.msra.mxu0 0.0
    %1548 = vmatprep.subr.mxu0 0.0
    %1549 = vmatpush1.msra.mxu0 0.0
    %1550 = vmatprep.subr.mxu0 0.0
    %1551 = vmatpush1.msra.mxu0 0.0
    %1552 = vmatprep.subr.mxu0 0.0
    %1553 = vmatpush1.msra.mxu0 0.0
    %1554 = vmatprep.subr.mxu0 0.0
    %1555 = vmatpush1.msra.mxu0 0.0
    %1556 = vmatprep.subr.mxu0 0.0
    %1557 = vmatpush1.msra.mxu0 0.0
    %1558 = vmatprep.subr.mxu0 0.0
    %1559 = vmatpush1.msra.mxu0 0.0
    %1560 = vmatprep.subr.mxu0 0.0
    %1561 = vmatpush1.msra.mxu0 0.0
    %1562 = vmatprep.subr.mxu0 0.0
    %1563 = vmatpush1.msra.mxu0 0.0
    %1564 = vmatprep.subr.mxu0 0.0
    %1565 = vmatpush1.msra.mxu0 0.0
    %1566 = vmatprep.subr.mxu0 0.0
    %1567 = vmatpush1.msra.mxu0 0.0
    %1568 = vmatprep.subr.mxu0 0.0
    %1569 = vmatpush1.msra.mxu0 0.0
    %1570 = vmatprep.subr.mxu0 0.0
    %1571 = vmatpush1.msra.mxu0 0.0
    %1572 = vmatprep.subr.mxu0 0.0
    %1573 = vmatpush1.msra.mxu0 0.0
    %1574 = vmatprep.subr.mxu0 0.0
    %1575 = vmatpush1.msra.mxu0 0.0
    %1576 = vmatprep.subr.mxu0 0.0
    %1577 = vmatpush1.msra.mxu0 0.0
    %1578 = vmatprep.subr.mxu0 0.0
    %1579 = vmatpush1.msra.mxu0 0.0
    %1580 = vmatprep.subr.mxu0 0.0
    %1581 = vmatpush1.msra.mxu0 0.0
    %1582 = vmatprep.mubr.f32.mxu0 0.0
    %1583 = vmatmul.mubr.f32.gmra.mrb[0].mxu0 %v1516
    %v1584 = vpop.f32.mrb[0].mxu0
    %v1585 = vadd.f32 %v1512, %v1584
    %v1586 = vpop.f32.mrb[0].mxu0
    %1587 = vdwg.mxu0
    %1588 = vmatprep.subr.mxu0 0.0
    %1589 = vmatpush1.msra.mxu0 %v1295
    %1590 = vmatprep.subr.mxu0 0.0
    %1591 = vmatpush1.msra.mxu0 %v1296
    %1592 = vmatprep.subr.mxu0 0.0
    %1593 = vmatpush1.msra.mxu0 0.0
    %1594 = vmatprep.subr.mxu0 0.0
    %1595 = vmatpush1.msra.mxu0 0.0
    %1596 = vmatprep.subr.mxu0 0.0
    %1597 = vmatpush1.msra.mxu0 0.0
    %1598 = vmatprep.subr.mxu0 0.0
    %1599 = vmatpush1.msra.mxu0 0.0
    %1600 = vmatprep.subr.mxu0 0.0
    %1601 = vmatpush1.msra.mxu0 0.0
    %1602 = vmatprep.subr.mxu0 0.0
    %1603 = vmatpush1.msra.mxu0 0.0
    %1604 = vmatprep.subr.mxu0 0.0
    %1605 = vmatpush1.msra.mxu0 0.0
    %1606 = vmatprep.subr.mxu0 0.0
    %1607 = vmatpush1.msra.mxu0 0.0
    %1608 = vmatprep.subr.mxu0 0.0
    %1609 = vmatpush1.msra.mxu0 0.0
    %1610 = vmatprep.subr.mxu0 0.0
    %1611 = vmatpush1.msra.mxu0 0.0
    %1612 = vmatprep.subr.mxu0 0.0
    %1613 = vmatpush1.msra.mxu0 0.0
    %1614 = vmatprep.subr.mxu0 0.0
    %1615 = vmatpush1.msra.mxu0 0.0
    %1616 = vmatprep.subr.mxu0 0.0
    %1617 = vmatpush1.msra.mxu0 0.0
    %1618 = vmatprep.subr.mxu0 0.0
    %1619 = vmatpush1.msra.mxu0 0.0
    %1620 = vmatprep.subr.mxu0 0.0
    %1621 = vmatpush1.msra.mxu0 0.0
    %1622 = vmatprep.subr.mxu0 0.0
    %1623 = vmatpush1.msra.mxu0 0.0
    %1624 = vmatprep.subr.mxu0 0.0
    %1625 = vmatpush1.msra.mxu0 0.0
    %1626 = vmatprep.subr.mxu0 0.0
    %1627 = vmatpush1.msra.mxu0 0.0
    %1628 = vmatprep.subr.mxu0 0.0
    %1629 = vmatpush1.msra.mxu0 0.0
    %1630 = vmatprep.subr.mxu0 0.0
    %1631 = vmatpush1.msra.mxu0 0.0
    %1632 = vmatprep.subr.mxu0 0.0
    %1633 = vmatpush1.msra.mxu0 0.0
    %1634 = vmatprep.subr.mxu0 0.0
    %1635 = vmatpush1.msra.mxu0 0.0
    %1636 = vmatprep.subr.mxu0 0.0
    %1637 = vmatpush1.msra.mxu0 0.0
    %1638 = vmatprep.subr.mxu0 0.0
    %1639 = vmatpush1.msra.mxu0 0.0
    %1640 = vmatprep.subr.mxu0 0.0
    %1641 = vmatpush1.msra.mxu0 0.0
    %1642 = vmatprep.subr.mxu0 0.0
    %1643 = vmatpush1.msra.mxu0 0.0
    %1644 = vmatprep.subr.mxu0 0.0
    %1645 = vmatpush1.msra.mxu0 0.0
    %1646 = vmatprep.subr.mxu0 0.0
    %1647 = vmatpush1.msra.mxu0 0.0
    %1648 = vmatprep.subr.mxu0 0.0
    %1649 = vmatpush1.msra.mxu0 0.0
    %1650 = vmatprep.subr.mxu0 0.0
    %1651 = vmatpush1.msra.mxu0 0.0
    %1652 = vmatprep.mubr.f32.mxu0 0.0
    %1653 = vmatmul.mubr.f32.gmra.mrb[0].mxu0 %v364
    %v1654 = vpop.f32.mrb[0].mxu0
    %v1655 = vadd.f32 0.0, %v1654
    %v1656 = vpop.f32.mrb[0].mxu0
    %1657 = vdwg.mxu0
    %v1659 = vsel %vm57, %v1655, 0
    %1661 = vmatprep.subr.mxu0 0.0
    %1662 = vmatpush1.msra.mxu0 %v440
    %1663 = vmatprep.subr.mxu0 0.0
    %1664 = vmatpush1.msra.mxu0 %v441
    %1665 = vmatprep.subr.mxu0 0.0
    %1666 = vmatpush1.msra.mxu0 0.0
    %1667 = vmatprep.subr.mxu0 0.0
    %1668 = vmatpush1.msra.mxu0 0.0
    %1669 = vmatprep.subr.mxu0 0.0
    %1670 = vmatpush1.msra.mxu0 0.0
    %1671 = vmatprep.subr.mxu0 0.0
    %1672 = vmatpush1.msra.mxu0 0.0
    %1673 = vmatprep.subr.mxu0 0.0
    %1674 = vmatpush1.msra.mxu0 0.0
    %1675 = vmatprep.subr.mxu0 0.0
    %1676 = vmatpush1.msra.mxu0 0.0
    %1677 = vmatprep.subr.mxu0 0.0
    %1678 = vmatpush1.msra.mxu0 0.0
    %1679 = vmatprep.subr.mxu0 0.0
    %1680 = vmatpush1.msra.mxu0 0.0
    %1681 = vmatprep.subr.mxu0 0.0
    %1682 = vmatpush1.msra.mxu0 0.0
    %1683 = vmatprep.subr.mxu0 0.0
    %1684 = vmatpush1.msra.mxu0 0.0
    %1685 = vmatprep.subr.mxu0 0.0
    %1686 = vmatpush1.msra.mxu0 0.0
    %1687 = vmatprep.subr.mxu0 0.0
    %1688 = vmatpush1.msra.mxu0 0.0
    %1689 = vmatprep.subr.mxu0 0.0
    %1690 = vmatpush1.msra.mxu0 0.0
    %1691 = vmatprep.subr.mxu0 0.0
    %1692 = vmatpush1.msra.mxu0 0.0
    %1693 = vmatprep.subr.mxu0 0.0
    %1694 = vmatpush1.msra.mxu0 0.0
    %1695 = vmatprep.subr.mxu0 0.0
    %1696 = vmatpush1.msra.mxu0 0.0
    %1697 = vmatprep.subr.mxu0 0.0
    %1698 = vmatpush1.msra.mxu0 0.0
    %1699 = vmatprep.subr.mxu0 0.0
    %1700 = vmatpush1.msra.mxu0 0.0
    %1701 = vmatprep.subr.mxu0 0.0
    %1702 = vmatpush1.msra.mxu0 0.0
    %1703 = vmatprep.subr.mxu0 0.0
    %1704 = vmatpush1.msra.mxu0 0.0
    %1705 = vmatprep.subr.mxu0 0.0
    %1706 = vmatpush1.msra.mxu0 0.0
    %1707 = vmatprep.subr.mxu0 0.0
    %1708 = vmatpush1.msra.mxu0 0.0
    %1709 = vmatprep.subr.mxu0 0.0
    %1710 = vmatpush1.msra.mxu0 0.0
    %1711 = vmatprep.subr.mxu0 0.0
    %1712 = vmatpush1.msra.mxu0 0.0
    %1713 = vmatprep.subr.mxu0 0.0
    %1714 = vmatpush1.msra.mxu0 0.0
    %1715 = vmatprep.subr.mxu0 0.0
    %1716 = vmatpush1.msra.mxu0 0.0
    %1717 = vmatprep.subr.mxu0 0.0
    %1718 = vmatpush1.msra.mxu0 0.0
    %1719 = vmatprep.subr.mxu0 0.0
    %1720 = vmatpush1.msra.mxu0 0.0
    %1721 = vmatprep.subr.mxu0 0.0
    %1722 = vmatpush1.msra.mxu0 0.0
    %1723 = vmatprep.subr.mxu0 0.0
    %1724 = vmatpush1.msra.mxu0 0.0
    %1725 = vmatprep.mubr.f32.mxu0 0.0
    %1726 = vmatmul.mubr.f32.gmra.mrb[0].mxu0 %v1659
    %v1727 = vpop.f32.mrb[0].mxu0
    %v1728 = vadd.f32 0.0, %v1727
    %v1729 = vpop.f32.mrb[0].mxu0
    %1730 = vdwg.mxu0
    %v1731 = vadd.f32 %v1585, %v1728
    %1732 = vmatprep.subr.mxu0 0.0
    %1733 = vmatpush1.msra.mxu0 %v1300
    %1734 = vmatprep.subr.mxu0 0.0
    %1735 = vmatpush1.msra.mxu0 %v1301
    %1736 = vmatprep.subr.mxu0 0.0
    %1737 = vmatpush1.msra.mxu0 0.0
    %1738 = vmatprep.subr.mxu0 0.0
    %1739 = vmatpush1.msra.mxu0 0.0
    %1740 = vmatprep.subr.mxu0 0.0
    %1741 = vmatpush1.msra.mxu0 0.0
    %1742 = vmatprep.subr.mxu0 0.0
    %1743 = vmatpush1.msra.mxu0 0.0
    %1744 = vmatprep.subr.mxu0 0.0
    %1745 = vmatpush1.msra.mxu0 0.0
    %1746 = vmatprep.subr.mxu0 0.0
    %1747 = vmatpush1.msra.mxu0 0.0
    %1748 = vmatprep.subr.mxu0 0.0
    %1749 = vmatpush1.msra.mxu0 0.0
    %1750 = vmatprep.subr.mxu0 0.0
    %1751 = vmatpush1.msra.mxu0 0.0
    %1752 = vmatprep.subr.mxu0 0.0
    %1753 = vmatpush1.msra.mxu0 0.0
    %1754 = vmatprep.subr.mxu0 0.0
    %1755 = vmatpush1.msra.mxu0 0.0
    %1756 = vmatprep.subr.mxu0 0.0
    %1757 = vmatpush1.msra.mxu0 0.0
    %1758 = vmatprep.subr.mxu0 0.0
    %1759 = vmatpush1.msra.mxu0 0.0
    %1760 = vmatprep.subr.mxu0 0.0
    %1761 = vmatpush1.msra.mxu0 0.0
    %1762 = vmatprep.subr.mxu0 0.0
    %1763 = vmatpush1.msra.mxu0 0.0
    %1764 = vmatprep.subr.mxu0 0.0
    %1765 = vmatpush1.msra.mxu0 0.0
    %1766 = vmatprep.subr.mxu0 0.0
    %1767 = vmatpush1.msra.mxu0 0.0
    %1768 = vmatprep.subr.mxu0 0.0
    %1769 = vmatpush1.msra.mxu0 0.0
    %1770 = vmatprep.subr.mxu0 0.0
    %1771 = vmatpush1.msra.mxu0 0.0
    %1772 = vmatprep.subr.mxu0 0.0
    %1773 = vmatpush1.msra.mxu0 0.0
    %1774 = vmatprep.subr.mxu0 0.0
    %1775 = vmatpush1.msra.mxu0 0.0
    %1776 = vmatprep.subr.mxu0 0.0
    %1777 = vmatpush1.msra.mxu0 0.0
    %1778 = vmatprep.subr.mxu0 0.0
    %1779 = vmatpush1.msra.mxu0 0.0
    %1780 = vmatprep.subr.mxu0 0.0
    %1781 = vmatpush1.msra.mxu0 0.0
    %1782 = vmatprep.subr.mxu0 0.0
    %1783 = vmatpush1.msra.mxu0 0.0
    %1784 = vmatprep.subr.mxu0 0.0
    %1785 = vmatpush1.msra.mxu0 0.0
    %1786 = vmatprep.subr.mxu0 0.0
    %1787 = vmatpush1.msra.mxu0 0.0
    %1788 = vmatprep.subr.mxu0 0.0
    %1789 = vmatpush1.msra.mxu0 0.0
    %1790 = vmatprep.subr.mxu0 0.0
    %1791 = vmatpush1.msra.mxu0 0.0
    %1792 = vmatprep.subr.mxu0 0.0
    %1793 = vmatpush1.msra.mxu0 0.0
    %1794 = vmatprep.subr.mxu0 0.0
    %1795 = vmatpush1.msra.mxu0 0.0
    %1796 = vmatprep.mubr.f32.mxu0 0.0
    %1797 = vmatmul.mubr.f32.gmra.mrb[0].mxu0 %v364
    %v1798 = vpop.f32.mrb[0].mxu0
    %v1799 = vadd.f32 0.0, %v1798
    %v1800 = vpop.f32.mrb[0].mxu0
    %1801 = vdwg.mxu0
    %v1803 = vsel %vm57, %v1799, 0
    %1805 = vmatprep.subr.mxu0 0.0
    %1806 = vmatpush1.msra.mxu0 %v590
    %1807 = vmatprep.subr.mxu0 0.0
    %1808 = vmatpush1.msra.mxu0 %v591
    %1809 = vmatprep.subr.mxu0 0.0
    %1810 = vmatpush1.msra.mxu0 0.0
    %1811 = vmatprep.subr.mxu0 0.0
    %1812 = vmatpush1.msra.mxu0 0.0
    %1813 = vmatprep.subr.mxu0 0.0
    %1814 = vmatpush1.msra.mxu0 0.0
    %1815 = vmatprep.subr.mxu0 0.0
    %1816 = vmatpush1.msra.mxu0 0.0
    %1817 = vmatprep.subr.mxu0 0.0
    %1818 = vmatpush1.msra.mxu0 0.0
    %1819 = vmatprep.subr.mxu0 0.0
    %1820 = vmatpush1.msra.mxu0 0.0
    %1821 = vmatprep.subr.mxu0 0.0
    %1822 = vmatpush1.msra.mxu0 0.0
    %1823 = vmatprep.subr.mxu0 0.0
    %1824 = vmatpush1.msra.mxu0 0.0
    %1825 = vmatprep.subr.mxu0 0.0
    %1826 = vmatpush1.msra.mxu0 0.0
    %1827 = vmatprep.subr.mxu0 0.0
    %1828 = vmatpush1.msra.mxu0 0.0
    %1829 = vmatprep.subr.mxu0 0.0
    %1830 = vmatpush1.msra.mxu0 0.0
    %1831 = vmatprep.subr.mxu0 0.0
    %1832 = vmatpush1.msra.mxu0 0.0
    %1833 = vmatprep.subr.mxu0 0.0
    %1834 = vmatpush1.msra.mxu0 0.0
    %1835 = vmatprep.subr.mxu0 0.0
    %1836 = vmatpush1.msra.mxu0 0.0
    %1837 = vmatprep.subr.mxu0 0.0
    %1838 = vmatpush1.msra.mxu0 0.0
    %1839 = vmatprep.subr.mxu0 0.0
    %1840 = vmatpush1.msra.mxu0 0.0
    %1841 = vmatprep.subr.mxu0 0.0
    %1842 = vmatpush1.msra.mxu0 0.0
    %1843 = vmatprep.subr.mxu0 0.0
    %1844 = vmatpush1.msra.mxu0 0.0
    %1845 = vmatprep.subr.mxu0 0.0
    %1846 = vmatpush1.msra.mxu0 0.0
    %1847 = vmatprep.subr.mxu0 0.0
    %1848 = vmatpush1.msra.mxu0 0.0
    %1849 = vmatprep.subr.mxu0 0.0
    %1850 = vmatpush1.msra.mxu0 0.0
    %1851 = vmatprep.subr.mxu0 0.0
    %1852 = vmatpush1.msra.mxu0 0.0
    %1853 = vmatprep.subr.mxu0 0.0
    %1854 = vmatpush1.msra.mxu0 0.0
    %1855 = vmatprep.subr.mxu0 0.0
    %1856 = vmatpush1.msra.mxu0 0.0
    %1857 = vmatprep.subr.mxu0 0.0
    %1858 = vmatpush1.msra.mxu0 0.0
    %1859 = vmatprep.subr.mxu0 0.0
    %1860 = vmatpush1.msra.mxu0 0.0
    %1861 = vmatprep.subr.mxu0 0.0
    %1862 = vmatpush1.msra.mxu0 0.0
    %1863 = vmatprep.subr.mxu0 0.0
    %1864 = vmatpush1.msra.mxu0 0.0
    %1865 = vmatprep.subr.mxu0 0.0
    %1866 = vmatpush1.msra.mxu0 0.0
    %1867 = vmatprep.subr.mxu0 0.0
    %1868 = vmatpush1.msra.mxu0 0.0
    %1869 = vmatprep.mubr.f32.mxu0 0.0
    %1870 = vmatmul.mubr.f32.gmra.mrb[0].mxu0 %v1803
    %v1871 = vpop.f32.mrb[0].mxu0
    %v1872 = vadd.f32 0.0, %v1871
    %v1873 = vpop.f32.mrb[0].mxu0
    %1874 = vdwg.mxu0
    %v1875 = vadd.f32 %v1731, %v1872
    %1876 = vmatprep.subr.mxu0 0.0
    %1877 = vmatpush1.msra.mxu0 %v1285
    %1878 = vmatprep.subr.mxu0 0.0
    %1879 = vmatpush1.msra.mxu0 %v1286
    %1880 = vmatprep.subr.mxu0 0.0
    %1881 = vmatpush1.msra.mxu0 0.0
    %1882 = vmatprep.subr.mxu0 0.0
    %1883 = vmatpush1.msra.mxu0 0.0
    %1884 = vmatprep.subr.mxu0 0.0
    %1885 = vmatpush1.msra.mxu0 0.0
    %1886 = vmatprep.subr.mxu0 0.0
    %1887 = vmatpush1.msra.mxu0 0.0
    %1888 = vmatprep.subr.mxu0 0.0
    %1889 = vmatpush1.msra.mxu0 0.0
    %1890 = vmatprep.subr.mxu0 0.0
    %1891 = vmatpush1.msra.mxu0 0.0
    %1892 = vmatprep.subr.mxu0 0.0
    %1893 = vmatpush1.msra.mxu0 0.0
    %1894 = vmatprep.subr.mxu0 0.0
    %1895 = vmatpush1.msra.mxu0 0.0
    %1896 = vmatprep.subr.mxu0 0.0
    %1897 = vmatpush1.msra.mxu0 0.0
    %1898 = vmatprep.subr.mxu0 0.0
    %1899 = vmatpush1.msra.mxu0 0.0
    %1900 = vmatprep.subr.mxu0 0.0
    %1901 = vmatpush1.msra.mxu0 0.0
    %1902 = vmatprep.subr.mxu0 0.0
    %1903 = vmatpush1.msra.mxu0 0.0
    %1904 = vmatprep.subr.mxu0 0.0
    %1905 = vmatpush1.msra.mxu0 0.0
    %1906 = vmatprep.subr.mxu0 0.0
    %1907 = vmatpush1.msra.mxu0 0.0
    %1908 = vmatprep.subr.mxu0 0.0
    %1909 = vmatpush1.msra.mxu0 0.0
    %1910 = vmatprep.subr.mxu0 0.0
    %1911 = vmatpush1.msra.mxu0 0.0
    %1912 = vmatprep.subr.mxu0 0.0
    %1913 = vmatpush1.msra.mxu0 0.0
    %1914 = vmatprep.subr.mxu0 0.0
    %1915 = vmatpush1.msra.mxu0 0.0
    %1916 = vmatprep.subr.mxu0 0.0
    %1917 = vmatpush1.msra.mxu0 0.0
    %1918 = vmatprep.subr.mxu0 0.0
    %1919 = vmatpush1.msra.mxu0 0.0
    %1920 = vmatprep.subr.mxu0 0.0
    %1921 = vmatpush1.msra.mxu0 0.0
    %1922 = vmatprep.subr.mxu0 0.0
    %1923 = vmatpush1.msra.mxu0 0.0
    %1924 = vmatprep.subr.mxu0 0.0
    %1925 = vmatpush1.msra.mxu0 0.0
    %1926 = vmatprep.subr.mxu0 0.0
    %1927 = vmatpush1.msra.mxu0 0.0
    %1928 = vmatprep.subr.mxu0 0.0
    %1929 = vmatpush1.msra.mxu0 0.0
    %1930 = vmatprep.subr.mxu0 0.0
    %1931 = vmatpush1.msra.mxu0 0.0
    %1932 = vmatprep.subr.mxu0 0.0
    %1933 = vmatpush1.msra.mxu0 0.0
    %1934 = vmatprep.subr.mxu0 0.0
    %1935 = vmatpush1.msra.mxu0 0.0
    %1936 = vmatprep.subr.mxu0 0.0
    %1937 = vmatpush1.msra.mxu0 0.0
    %1938 = vmatprep.subr.mxu0 0.0
    %1939 = vmatpush1.msra.mxu0 0.0
    %1940 = vmatprep.mubr.f32.mxu0 0.0
    %1941 = vmatmul.mubr.f32.gmra.mrb[0].mxu0 %v670
    %v1942 = vpop.f32.mrb[0].mxu0
    %v1943 = vadd.f32 0.0, %v1942
    %v1944 = vpop.f32.mrb[0].mxu0
    %1945 = vdwg.mxu0
    %v1947 = vsel %vm57, %v1943, 0
    %1949 = vmatprep.subr.mxu0 0.0
    %1950 = vmatpush1.msra.mxu0 %v746
    %1951 = vmatprep.subr.mxu0 0.0
    %1952 = vmatpush1.msra.mxu0 %v747
    %1953 = vmatprep.subr.mxu0 0.0
    %1954 = vmatpush1.msra.mxu0 0.0
    %1955 = vmatprep.subr.mxu0 0.0
    %1956 = vmatpush1.msra.mxu0 0.0
    %1957 = vmatprep.subr.mxu0 0.0
    %1958 = vmatpush1.msra.mxu0 0.0
    %1959 = vmatprep.subr.mxu0 0.0
    %1960 = vmatpush1.msra.mxu0 0.0
    %1961 = vmatprep.subr.mxu0 0.0
    %1962 = vmatpush1.msra.mxu0 0.0
    %1963 = vmatprep.subr.mxu0 0.0
    %1964 = vmatpush1.msra.mxu0 0.0
    %1965 = vmatprep.subr.mxu0 0.0
    %1966 = vmatpush1.msra.mxu0 0.0
    %1967 = vmatprep.subr.mxu0 0.0
    %1968 = vmatpush1.msra.mxu0 0.0
    %1969 = vmatprep.subr.mxu0 0.0
    %1970 = vmatpush1.msra.mxu0 0.0
    %1971 = vmatprep.subr.mxu0 0.0
    %1972 = vmatpush1.msra.mxu0 0.0
    %1973 = vmatprep.subr.mxu0 0.0
    %1974 = vmatpush1.msra.mxu0 0.0
    %1975 = vmatprep.subr.mxu0 0.0
    %1976 = vmatpush1.msra.mxu0 0.0
    %1977 = vmatprep.subr.mxu0 0.0
    %1978 = vmatpush1.msra.mxu0 0.0
    %1979 = vmatprep.subr.mxu0 0.0
    %1980 = vmatpush1.msra.mxu0 0.0
    %1981 = vmatprep.subr.mxu0 0.0
    %1982 = vmatpush1.msra.mxu0 0.0
    %1983 = vmatprep.subr.mxu0 0.0
    %1984 = vmatpush1.msra.mxu0 0.0
    %1985 = vmatprep.subr.mxu0 0.0
    %1986 = vmatpush1.msra.mxu0 0.0
    %1987 = vmatprep.subr.mxu0 0.0
    %1988 = vmatpush1.msra.mxu0 0.0
    %1989 = vmatprep.subr.mxu0 0.0
    %1990 = vmatpush1.msra.mxu0 0.0
    %1991 = vmatprep.subr.mxu0 0.0
    %1992 = vmatpush1.msra.mxu0 0.0
    %1993 = vmatprep.subr.mxu0 0.0
    %1994 = vmatpush1.msra.mxu0 0.0
    %1995 = vmatprep.subr.mxu0 0.0
    %1996 = vmatpush1.msra.mxu0 0.0
    %1997 = vmatprep.subr.mxu0 0.0
    %1998 = vmatpush1.msra.mxu0 0.0
    %1999 = vmatprep.subr.mxu0 0.0
    %2000 = vmatpush1.msra.mxu0 0.0
    %2001 = vmatprep.subr.mxu0 0.0
    %2002 = vmatpush1.msra.mxu0 0.0
    %2003 = vmatprep.subr.mxu0 0.0
    %2004 = vmatpush1.msra.mxu0 0.0
    %2005 = vmatprep.subr.mxu0 0.0
    %2006 = vmatpush1.msra.mxu0 0.0
    %2007 = vmatprep.subr.mxu0 0.0
    %2008 = vmatpush1.msra.mxu0 0.0
    %2009 = vmatprep.subr.mxu0 0.0
    %2010 = vmatpush1.msra.mxu0 0.0
    %2011 = vmatprep.subr.mxu0 0.0
    %2012 = vmatpush1.msra.mxu0 0.0
    %2013 = vmatprep.mubr.f32.mxu0 0.0
    %2014 = vmatmul.mubr.f32.gmra.mrb[0].mxu0 %v1947
    %v2015 = vpop.f32.mrb[0].mxu0
    %v2016 = vadd.f32 0.0, %v2015
    %v2017 = vpop.f32.mrb[0].mxu0
    %2018 = vdwg.mxu0
    %v2019 = vadd.f32 %v1875, %v2016
    %2020 = vmatprep.subr.mxu0 0.0
    %2021 = vmatpush1.msra.mxu0 %v1290
    %2022 = vmatprep.subr.mxu0 0.0
    %2023 = vmatpush1.msra.mxu0 %v1291
    %2024 = vmatprep.subr.mxu0 0.0
    %2025 = vmatpush1.msra.mxu0 0.0
    %2026 = vmatprep.subr.mxu0 0.0
    %2027 = vmatpush1.msra.mxu0 0.0
    %2028 = vmatprep.subr.mxu0 0.0
    %2029 = vmatpush1.msra.mxu0 0.0
    %2030 = vmatprep.subr.mxu0 0.0
    %2031 = vmatpush1.msra.mxu0 0.0
    %2032 = vmatprep.subr.mxu0 0.0
    %2033 = vmatpush1.msra.mxu0 0.0
    %2034 = vmatprep.subr.mxu0 0.0
    %2035 = vmatpush1.msra.mxu0 0.0
    %2036 = vmatprep.subr.mxu0 0.0
    %2037 = vmatpush1.msra.mxu0 0.0
    %2038 = vmatprep.subr.mxu0 0.0
    %2039 = vmatpush1.msra.mxu0 0.0
    %2040 = vmatprep.subr.mxu0 0.0
    %2041 = vmatpush1.msra.mxu0 0.0
    %2042 = vmatprep.subr.mxu0 0.0
    %2043 = vmatpush1.msra.mxu0 0.0
    %2044 = vmatprep.subr.mxu0 0.0
    %2045 = vmatpush1.msra.mxu0 0.0
    %2046 = vmatprep.subr.mxu0 0.0
    %2047 = vmatpush1.msra.mxu0 0.0
    %2048 = vmatprep.subr.mxu0 0.0
    %2049 = vmatpush1.msra.mxu0 0.0
    %2050 = vmatprep.subr.mxu0 0.0
    %2051 = vmatpush1.msra.mxu0 0.0
    %2052 = vmatprep.subr.mxu0 0.0
    %2053 = vmatpush1.msra.mxu0 0.0
    %2054 = vmatprep.subr.mxu0 0.0
    %2055 = vmatpush1.msra.mxu0 0.0
    %2056 = vmatprep.subr.mxu0 0.0
    %2057 = vmatpush1.msra.mxu0 0.0
    %2058 = vmatprep.subr.mxu0 0.0
    %2059 = vmatpush1.msra.mxu0 0.0
    %2060 = vmatprep.subr.mxu0 0.0
    %2061 = vmatpush1.msra.mxu0 0.0
    %2062 = vmatprep.subr.mxu0 0.0
    %2063 = vmatpush1.msra.mxu0 0.0
    %2064 = vmatprep.subr.mxu0 0.0
    %2065 = vmatpush1.msra.mxu0 0.0
    %2066 = vmatprep.subr.mxu0 0.0
    %2067 = vmatpush1.msra.mxu0 0.0
    %2068 = vmatprep.subr.mxu0 0.0
    %2069 = vmatpush1.msra.mxu0 0.0
    %2070 = vmatprep.subr.mxu0 0.0
    %2071 = vmatpush1.msra.mxu0 0.0
    %2072 = vmatprep.subr.mxu0 0.0
    %2073 = vmatpush1.msra.mxu0 0.0
    %2074 = vmatprep.subr.mxu0 0.0
    %2075 = vmatpush1.msra.mxu0 0.0
    %2076 = vmatprep.subr.mxu0 0.0
    %2077 = vmatpush1.msra.mxu0 0.0
    %2078 = vmatprep.subr.mxu0 0.0
    %2079 = vmatpush1.msra.mxu0 0.0
    %2080 = vmatprep.subr.mxu0 0.0
    %2081 = vmatpush1.msra.mxu0 0.0
    %2082 = vmatprep.subr.mxu0 0.0
    %2083 = vmatpush1.msra.mxu0 0.0
    %2084 = vmatprep.mubr.f32.mxu0 0.0
    %2085 = vmatmul.mubr.f32.gmra.mrb[0].mxu0 %v670
    %v2086 = vpop.f32.mrb[0].mxu0
    %v2087 = vadd.f32 0.0, %v2086
    %v2088 = vpop.f32.mrb[0].mxu0
    %2089 = vdwg.mxu0
    %v2091 = vsel %vm57, %v2087, 0
    %2093 = vmatprep.subr.mxu0 0.0
    %2094 = vmatpush1.msra.mxu0 %v896
    %2095 = vmatprep.subr.mxu0 0.0
    %2096 = vmatpush1.msra.mxu0 %v897
    %2097 = vmatprep.subr.mxu0 0.0
    %2098 = vmatpush1.msra.mxu0 0.0
    %2099 = vmatprep.subr.mxu0 0.0
    %2100 = vmatpush1.msra.mxu0 0.0
    %2101 = vmatprep.subr.mxu0 0.0
    %2102 = vmatpush1.msra.mxu0 0.0
    %2103 = vmatprep.subr.mxu0 0.0
    %2104 = vmatpush1.msra.mxu0 0.0
    %2105 = vmatprep.subr.mxu0 0.0
    %2106 = vmatpush1.msra.mxu0 0.0
    %2107 = vmatprep.subr.mxu0 0.0
    %2108 = vmatpush1.msra.mxu0 0.0
    %2109 = vmatprep.subr.mxu0 0.0
    %2110 = vmatpush1.msra.mxu0 0.0
    %2111 = vmatprep.subr.mxu0 0.0
    %2112 = vmatpush1.msra.mxu0 0.0
    %2113 = vmatprep.subr.mxu0 0.0
    %2114 = vmatpush1.msra.mxu0 0.0
    %2115 = vmatprep.subr.mxu0 0.0
    %2116 = vmatpush1.msra.mxu0 0.0
    %2117 = vmatprep.subr.mxu0 0.0
    %2118 = vmatpush1.msra.mxu0 0.0
    %2119 = vmatprep.subr.mxu0 0.0
    %2120 = vmatpush1.msra.mxu0 0.0
    %2121 = vmatprep.subr.mxu0 0.0
    %2122 = vmatpush1.msra.mxu0 0.0
    %2123 = vmatprep.subr.mxu0 0.0
    %2124 = vmatpush1.msra.mxu0 0.0
    %2125 = vmatprep.subr.mxu0 0.0
    %2126 = vmatpush1.msra.mxu0 0.0
    %2127 = vmatprep.subr.mxu0 0.0
    %2128 = vmatpush1.msra.mxu0 0.0
    %2129 = vmatprep.subr.mxu0 0.0
    %2130 = vmatpush1.msra.mxu0 0.0
    %2131 = vmatprep.subr.mxu0 0.0
    %2132 = vmatpush1.msra.mxu0 0.0
    %2133 = vmatprep.subr.mxu0 0.0
    %2134 = vmatpush1.msra.mxu0 0.0
    %2135 = vmatprep.subr.mxu0 0.0
    %2136 = vmatpush1.msra.mxu0 0.0
    %2137 = vmatprep.subr.mxu0 0.0
    %2138 = vmatpush1.msra.mxu0 0.0
    %2139 = vmatprep.subr.mxu0 0.0
    %2140 = vmatpush1.msra.mxu0 0.0
    %2141 = vmatprep.subr.mxu0 0.0
    %2142 = vmatpush1.msra.mxu0 0.0
    %2143 = vmatprep.subr.mxu0 0.0
    %2144 = vmatpush1.msra.mxu0 0.0
    %2145 = vmatprep.subr.mxu0 0.0
    %2146 = vmatpush1.msra.mxu0 0.0
    %2147 = vmatprep.subr.mxu0 0.0
    %2148 = vmatpush1.msra.mxu0 0.0
    %2149 = vmatprep.subr.mxu0 0.0
    %2150 = vmatpush1.msra.mxu0 0.0
    %2151 = vmatprep.subr.mxu0 0.0
    %2152 = vmatpush1.msra.mxu0 0.0
    %2153 = vmatprep.subr.mxu0 0.0
    %2154 = vmatpush1.msra.mxu0 0.0
    %2155 = vmatprep.subr.mxu0 0.0
    %2156 = vmatpush1.msra.mxu0 0.0
    %2157 = vmatprep.mubr.f32.mxu0 0.0
    %2158 = vmatmul.mubr.f32.gmra.mrb[0].mxu0 %v2091
    %v2159 = vpop.f32.mrb[0].mxu0
    %v2160 = vadd.f32 0.0, %v2159
    %v2161 = vpop.f32.mrb[0].mxu0
    %2162 = vdwg.mxu0
    %v2163 = vadd.f32 %v2019, %v2160
    %2164 = vmatprep.subr.mxu0 0.0
    %2165 = vmatpush1.msra.mxu0 %v1295
    %2166 = vmatprep.subr.mxu0 0.0
    %2167 = vmatpush1.msra.mxu0 %v1296
    %2168 = vmatprep.subr.mxu0 0.0
    %2169 = vmatpush1.msra.mxu0 0.0
    %2170 = vmatprep.subr.mxu0 0.0
    %2171 = vmatpush1.msra.mxu0 0.0
    %2172 = vmatprep.subr.mxu0 0.0
    %2173 = vmatpush1.msra.mxu0 0.0
    %2174 = vmatprep.subr.mxu0 0.0
    %2175 = vmatpush1.msra.mxu0 0.0
    %2176 = vmatprep.subr.mxu0 0.0
    %2177 = vmatpush1.msra.mxu0 0.0
    %2178 = vmatprep.subr.mxu0 0.0
    %2179 = vmatpush1.msra.mxu0 0.0
    %2180 = vmatprep.subr.mxu0 0.0
    %2181 = vmatpush1.msra.mxu0 0.0
    %2182 = vmatprep.subr.mxu0 0.0
    %2183 = vmatpush1.msra.mxu0 0.0
    %2184 = vmatprep.subr.mxu0 0.0
    %2185 = vmatpush1.msra.mxu0 0.0
    %2186 = vmatprep.subr.mxu0 0.0
    %2187 = vmatpush1.msra.mxu0 0.0
    %2188 = vmatprep.subr.mxu0 0.0
    %2189 = vmatpush1.msra.mxu0 0.0
    %2190 = vmatprep.subr.mxu0 0.0
    %2191 = vmatpush1.msra.mxu0 0.0
    %2192 = vmatprep.subr.mxu0 0.0
    %2193 = vmatpush1.msra.mxu0 0.0
    %2194 = vmatprep.subr.mxu0 0.0
    %2195 = vmatpush1.msra.mxu0 0.0
    %2196 = vmatprep.subr.mxu0 0.0
    %2197 = vmatpush1.msra.mxu0 0.0
    %2198 = vmatprep.subr.mxu0 0.0
    %2199 = vmatpush1.msra.mxu0 0.0
    %2200 = vmatprep.subr.mxu0 0.0
    %2201 = vmatpush1.msra.mxu0 0.0
    %2202 = vmatprep.subr.mxu0 0.0
    %2203 = vmatpush1.msra.mxu0 0.0
    %2204 = vmatprep.subr.mxu0 0.0
    %2205 = vmatpush1.msra.mxu0 0.0
    %2206 = vmatprep.subr.mxu0 0.0
    %2207 = vmatpush1.msra.mxu0 0.0
    %2208 = vmatprep.subr.mxu0 0.0
    %2209 = vmatpush1.msra.mxu0 0.0
    %2210 = vmatprep.subr.mxu0 0.0
    %2211 = vmatpush1.msra.mxu0 0.0
    %2212 = vmatprep.subr.mxu0 0.0
    %2213 = vmatpush1.msra.mxu0 0.0
    %2214 = vmatprep.subr.mxu0 0.0
    %2215 = vmatpush1.msra.mxu0 0.0
    %2216 = vmatprep.subr.mxu0 0.0
    %2217 = vmatpush1.msra.mxu0 0.0
    %2218 = vmatprep.subr.mxu0 0.0
    %2219 = vmatpush1.msra.mxu0 0.0
    %2220 = vmatprep.subr.mxu0 0.0
    %2221 = vmatpush1.msra.mxu0 0.0
    %2222 = vmatprep.subr.mxu0 0.0
    %2223 = vmatpush1.msra.mxu0 0.0
    %2224 = vmatprep.subr.mxu0 0.0
    %2225 = vmatpush1.msra.mxu0 0.0
    %2226 = vmatprep.subr.mxu0 0.0
    %2227 = vmatpush1.msra.mxu0 0.0
    %2228 = vmatprep.mubr.f32.mxu0 0.0
    %2229 = vmatmul.mubr.f32.gmra.mrb[0].mxu0 %v976
    %v2230 = vpop.f32.mrb[0].mxu0
    %v2231 = vadd.f32 0.0, %v2230
    %v2232 = vpop.f32.mrb[0].mxu0
    %2233 = vdwg.mxu0
    %v2235 = vsel %vm57, %v2231, 0
    %2237 = vmatprep.subr.mxu0 0.0
    %2238 = vmatpush1.msra.mxu0 %v1052
    %2239 = vmatprep.subr.mxu0 0.0
    %2240 = vmatpush1.msra.mxu0 %v1053
    %2241 = vmatprep.subr.mxu0 0.0
    %2242 = vmatpush1.msra.mxu0 0.0
    %2243 = vmatprep.subr.mxu0 0.0
    %2244 = vmatpush1.msra.mxu0 0.0
    %2245 = vmatprep.subr.mxu0 0.0
    %2246 = vmatpush1.msra.mxu0 0.0
    %2247 = vmatprep.subr.mxu0 0.0
    %2248 = vmatpush1.msra.mxu0 0.0
    %2249 = vmatprep.subr.mxu0 0.0
    %2250 = vmatpush1.msra.mxu0 0.0
    %2251 = vmatprep.subr.mxu0 0.0
    %2252 = vmatpush1.msra.mxu0 0.0
    %2253 = vmatprep.subr.mxu0 0.0
    %2254 = vmatpush1.msra.mxu0 0.0
    %2255 = vmatprep.subr.mxu0 0.0
    %2256 = vmatpush1.msra.mxu0 0.0
    %2257 = vmatprep.subr.mxu0 0.0
    %2258 = vmatpush1.msra.mxu0 0.0
    %2259 = vmatprep.subr.mxu0 0.0
    %2260 = vmatpush1.msra.mxu0 0.0
    %2261 = vmatprep.subr.mxu0 0.0
    %2262 = vmatpush1.msra.mxu0 0.0
    %2263 = vmatprep.subr.mxu0 0.0
    %2264 = vmatpush1.msra.mxu0 0.0
    %2265 = vmatprep.subr.mxu0 0.0
    %2266 = vmatpush1.msra.mxu0 0.0
    %2267 = vmatprep.subr.mxu0 0.0
    %2268 = vmatpush1.msra.mxu0 0.0
    %2269 = vmatprep.subr.mxu0 0.0
    %2270 = vmatpush1.msra.mxu0 0.0
    %2271 = vmatprep.subr.mxu0 0.0
    %2272 = vmatpush1.msra.mxu0 0.0
    %2273 = vmatprep.subr.mxu0 0.0
    %2274 = vmatpush1.msra.mxu0 0.0
    %2275 = vmatprep.subr.mxu0 0.0
    %2276 = vmatpush1.msra.mxu0 0.0
    %2277 = vmatprep.subr.mxu0 0.0
    %2278 = vmatpush1.msra.mxu0 0.0
    %2279 = vmatprep.subr.mxu0 0.0
    %2280 = vmatpush1.msra.mxu0 0.0
    %2281 = vmatprep.subr.mxu0 0.0
    %2282 = vmatpush1.msra.mxu0 0.0
    %2283 = vmatprep.subr.mxu0 0.0
    %2284 = vmatpush1.msra.mxu0 0.0
    %2285 = vmatprep.subr.mxu0 0.0
    %2286 = vmatpush1.msra.mxu0 0.0
    %2287 = vmatprep.subr.mxu0 0.0
    %2288 = vmatpush1.msra.mxu0 0.0
    %2289 = vmatprep.subr.mxu0 0.0
    %2290 = vmatpush1.msra.mxu0 0.0
    %2291 = vmatprep.subr.mxu0 0.0
    %2292 = vmatpush1.msra.mxu0 0.0
    %2293 = vmatprep.subr.mxu0 0.0
    %2294 = vmatpush1.msra.mxu0 0.0
    %2295 = vmatprep.subr.mxu0 0.0
    %2296 = vmatpush1.msra.mxu0 0.0
    %2297 = vmatprep.subr.mxu0 0.0
    %2298 = vmatpush1.msra.mxu0 0.0
    %2299 = vmatprep.subr.mxu0 0.0
    %2300 = vmatpush1.msra.mxu0 0.0
    %2301 = vmatprep.mubr.f32.mxu0 0.0
    %2302 = vmatmul.mubr.f32.gmra.mrb[0].mxu0 %v2235
    %v2303 = vpop.f32.mrb[0].mxu0
    %v2304 = vadd.f32 0.0, %v2303
    %v2305 = vpop.f32.mrb[0].mxu0
    %2306 = vdwg.mxu0
    %v2307 = vadd.f32 %v2163, %v2304
    %2308 = vmatprep.subr.mxu0 0.0
    %2309 = vmatpush1.msra.mxu0 %v1300
    %2310 = vmatprep.subr.mxu0 0.0
    %2311 = vmatpush1.msra.mxu0 %v1301
    %2312 = vmatprep.subr.mxu0 0.0
    %2313 = vmatpush1.msra.mxu0 0.0
    %2314 = vmatprep.subr.mxu0 0.0
    %2315 = vmatpush1.msra.mxu0 0.0
    %2316 = vmatprep.subr.mxu0 0.0
    %2317 = vmatpush1.msra.mxu0 0.0
    %2318 = vmatprep.subr.mxu0 0.0
    %2319 = vmatpush1.msra.mxu0 0.0
    %2320 = vmatprep.subr.mxu0 0.0
    %2321 = vmatpush1.msra.mxu0 0.0
    %2322 = vmatprep.subr.mxu0 0.0
    %2323 = vmatpush1.msra.mxu0 0.0
    %2324 = vmatprep.subr.mxu0 0.0
    %2325 = vmatpush1.msra.mxu0 0.0
    %2326 = vmatprep.subr.mxu0 0.0
    %2327 = vmatpush1.msra.mxu0 0.0
    %2328 = vmatprep.subr.mxu0 0.0
    %2329 = vmatpush1.msra.mxu0 0.0
    %2330 = vmatprep.subr.mxu0 0.0
    %2331 = vmatpush1.msra.mxu0 0.0
    %2332 = vmatprep.subr.mxu0 0.0
    %2333 = vmatpush1.msra.mxu0 0.0
    %2334 = vmatprep.subr.mxu0 0.0
    %2335 = vmatpush1.msra.mxu0 0.0
    %2336 = vmatprep.subr.mxu0 0.0
    %2337 = vmatpush1.msra.mxu0 0.0
    %2338 = vmatprep.subr.mxu0 0.0
    %2339 = vmatpush1.msra.mxu0 0.0
    %2340 = vmatprep.subr.mxu0 0.0
    %2341 = vmatpush1.msra.mxu0 0.0
    %2342 = vmatprep.subr.mxu0 0.0
    %2343 = vmatpush1.msra.mxu0 0.0
    %2344 = vmatprep.subr.mxu0 0.0
    %2345 = vmatpush1.msra.mxu0 0.0
    %2346 = vmatprep.subr.mxu0 0.0
    %2347 = vmatpush1.msra.mxu0 0.0
    %2348 = vmatprep.subr.mxu0 0.0
    %2349 = vmatpush1.msra.mxu0 0.0
    %2350 = vmatprep.subr.mxu0 0.0
    %2351 = vmatpush1.msra.mxu0 0.0
    %2352 = vmatprep.subr.mxu0 0.0
    %2353 = vmatpush1.msra.mxu0 0.0
    %2354 = vmatprep.subr.mxu0 0.0
    %2355 = vmatpush1.msra.mxu0 0.0
    %2356 = vmatprep.subr.mxu0 0.0
    %2357 = vmatpush1.msra.mxu0 0.0
    %2358 = vmatprep.subr.mxu0 0.0
    %2359 = vmatpush1.msra.mxu0 0.0
    %2360 = vmatprep.subr.mxu0 0.0
    %2361 = vmatpush1.msra.mxu0 0.0
    %2362 = vmatprep.subr.mxu0 0.0
    %2363 = vmatpush1.msra.mxu0 0.0
    %2364 = vmatprep.subr.mxu0 0.0
    %2365 = vmatpush1.msra.mxu0 0.0
    %2366 = vmatprep.subr.mxu0 0.0
    %2367 = vmatpush1.msra.mxu0 0.0
    %2368 = vmatprep.subr.mxu0 0.0
    %2369 = vmatpush1.msra.mxu0 0.0
    %2370 = vmatprep.subr.mxu0 0.0
    %2371 = vmatpush1.msra.mxu0 0.0
    %2372 = vmatprep.mubr.f32.mxu0 0.0
    %2373 = vmatmul.mubr.f32.gmra.mrb[0].mxu0 %v976
    %v2374 = vpop.f32.mrb[0].mxu0
    %v2375 = vadd.f32 0.0, %v2374
    %v2376 = vpop.f32.mrb[0].mxu0
    %2377 = vdwg.mxu0
    %v2379 = vsel %vm57, %v2375, 0
    %2381 = vmatprep.subr.mxu0 0.0
    %2382 = vmatpush1.msra.mxu0 %v1202
    %2383 = vmatprep.subr.mxu0 0.0
    %2384 = vmatpush1.msra.mxu0 %v1203
    %2385 = vmatprep.subr.mxu0 0.0
    %2386 = vmatpush1.msra.mxu0 0.0
    %2387 = vmatprep.subr.mxu0 0.0
    %2388 = vmatpush1.msra.mxu0 0.0
    %2389 = vmatprep.subr.mxu0 0.0
    %2390 = vmatpush1.msra.mxu0 0.0
    %2391 = vmatprep.subr.mxu0 0.0
    %2392 = vmatpush1.msra.mxu0 0.0
    %2393 = vmatprep.subr.mxu0 0.0
    %2394 = vmatpush1.msra.mxu0 0.0
    %2395 = vmatprep.subr.mxu0 0.0
    %2396 = vmatpush1.msra.mxu0 0.0
    %2397 = vmatprep.subr.mxu0 0.0
    %2398 = vmatpush1.msra.mxu0 0.0
    %2399 = vmatprep.subr.mxu0 0.0
    %2400 = vmatpush1.msra.mxu0 0.0
    %2401 = vmatprep.subr.mxu0 0.0
    %2402 = vmatpush1.msra.mxu0 0.0
    %2403 = vmatprep.subr.mxu0 0.0
    %2404 = vmatpush1.msra.mxu0 0.0
    %2405 = vmatprep.subr.mxu0 0.0
    %2406 = vmatpush1.msra.mxu0 0.0
    %2407 = vmatprep.subr.mxu0 0.0
    %2408 = vmatpush1.msra.mxu0 0.0
    %2409 = vmatprep.subr.mxu0 0.0
    %2410 = vmatpush1.msra.mxu0 0.0
    %2411 = vmatprep.subr.mxu0 0.0
    %2412 = vmatpush1.msra.mxu0 0.0
    %2413 = vmatprep.subr.mxu0 0.0
    %2414 = vmatpush1.msra.mxu0 0.0
    %2415 = vmatprep.subr.mxu0 0.0
    %2416 = vmatpush1.msra.mxu0 0.0
    %2417 = vmatprep.subr.mxu0 0.0
    %2418 = vmatpush1.msra.mxu0 0.0
    %2419 = vmatprep.subr.mxu0 0.0
    %2420 = vmatpush1.msra.mxu0 0.0
    %2421 = vmatprep.subr.mxu0 0.0
    %2422 = vmatpush1.msra.mxu0 0.0
    %2423 = vmatprep.subr.mxu0 0.0
    %2424 = vmatpush1.msra.mxu0 0.0
    %2425 = vmatprep.subr.mxu0 0.0
    %2426 = vmatpush1.msra.mxu0 0.0
    %2427 = vmatprep.subr.mxu0 0.0
    %2428 = vmatpush1.msra.mxu0 0.0
    %2429 = vmatprep.subr.mxu0 0.0
    %2430 = vmatpush1.msra.mxu0 0.0
    %2431 = vmatprep.subr.mxu0 0.0
    %2432 = vmatpush1.msra.mxu0 0.0
    %2433 = vmatprep.subr.mxu0 0.0
    %2434 = vmatpush1.msra.mxu0 0.0
    %2435 = vmatprep.subr.mxu0 0.0
    %2436 = vmatpush1.msra.mxu0 0.0
    %2437 = vmatprep.subr.mxu0 0.0
    %2438 = vmatpush1.msra.mxu0 0.0
    %2439 = vmatprep.subr.mxu0 0.0
    %2440 = vmatpush1.msra.mxu0 0.0
    %2441 = vmatprep.subr.mxu0 0.0
    %2442 = vmatpush1.msra.mxu0 0.0
    %2443 = vmatprep.subr.mxu0 0.0
    %2444 = vmatpush1.msra.mxu0 0.0
    %2445 = vmatprep.mubr.f32.mxu0 0.0
    %2446 = vmatmul.mubr.f32.gmra.mrb[0].mxu0 %v2379
    %v2447 = vpop.f32.mrb[0].mxu0
    %v2448 = vadd.f32 0.0, %v2447
    %v2449 = vpop.f32.mrb[0].mxu0
    %2450 = vdwg.mxu0
    %v2451 = vadd.f32 %v2307, %v2448
    %s2452 = scalar_lea.vmem [#allocation6], 32
    %2453 = vst [vmem:[%s2452] sm:$0xff] %v2451
    %2454 = vst [vmem:[%s2452 + $0x8] sm:$0xff] %v2451
    %2455 = vst [vmem:[%s2452 + $0x10] sm:$0xff] %v2451
    %2456 = vst [vmem:[%s2452 + $0x18] sm:$0xff] %v2451
    // Predicated region
    $region14: #{tpu_custom_call.1} parent=1 // pred_check
      _
    $region15: #{tpu_custom_call.1} parent=1 // pred_check_branch
      %2458 = sbr.rel (0) target = $region17
    $region16: #{tpu_custom_call.1} parent=1 // pred_region
      %s2460 = ssub.s32 1024, 1024
      %2461 = vsyncadd [#allocation5], %s2460
      %s2462 = sshll.u32 [#allocation6], 4
      %s2463 = int_to_ptr.vmem [resolvable:$true] %s2462
      %2468 = dma.vmem_to_hbm [thread:$0]  %s2463, 1024, %s2, [#allocation5], 128, 128, 8
    $region17: #{tpu_custom_call.1} parent=1 // pred_fallthru
      _
    // Predicated region
    $region18: #{tpu_custom_call.1} parent=1 // pred_check
      _
    $region19: #{tpu_custom_call.1} parent=1 // pred_check_branch
      %2470 = sbr.rel (0) target = $region21
    $region20: #{tpu_custom_call.1} parent=1 // pred_region
      %2471 = dma.done [#allocation5], 1024
    $region21: #{tpu_custom_call.1} parent=1 // pred_fallthru
      _
    %2472 = vsyncpa [#allocation4], 1
    %2473 = vsyncpa [#allocation5], 1

</llo_original>
